<compile_context>
chip_gen: v5e
topology: v5e:2x2
jax: 0.10.0
libtpu: 0.0.40
codegen_flags: <defaults>
</compile_context>

<pallas_src>
import jax
import jax.numpy as jnp
import numpy as np
from jax.experimental import pallas as pl
from jax.experimental.pallas import tpu as pltpu

IMG_FEAT = 2304   # InceptionNet4 output features
TXT_FEAT = 768    # BERT pooler output features
HIDDEN = 256
NUM_CLASS = 16
TK = 768          # K-tile over the 2304-dim image-feature reduction (3 steps)


def _round_up(n, m):
    return ((n + m - 1) // m) * m


def _head_kernel(x1_ref, x2_ref, w1_ref, w2_ref,
                 bcon_ref, bimg_ref, btxt_ref,
                 wfin_ref, bfin_ref, out_ref, acc_ref):
    """Fused MultiNet classifier head.

    Grid is (batch_tile, k_tile).  acc_ref accumulates y1 = x1 @ W1 over the
    K tiles of the 2304-dim reduction; on the last K step the (small) text
    matmul, the three ReLU branches and the final classifier run.
    The concat in `con` is folded into two matmuls (x1 @ W_con[:2304] and
    x2 @ W_con[2304:]), which is exactly equivalent.
    """
    k = pl.program_id(1)

    @pl.when(k == 0)
    def _():
        acc_ref[...] = jnp.zeros_like(acc_ref)

    # y1 partial: bf16 x bf16 -> f32 accumulate on the MXU.
    acc_ref[...] += jnp.dot(x1_ref[...], w1_ref[...],
                            preferred_element_type=jnp.float32)

    @pl.when(k == pl.num_programs(1) - 1)
    def _():
        y1 = acc_ref[...]                                   # (tb, 512) f32
        y2 = jnp.dot(x2_ref[...], w2_ref[...],
                     preferred_element_type=jnp.float32)     # (tb, 512) f32

        con = jnp.maximum(y1[:, :HIDDEN] + y2[:, :HIDDEN] + bcon_ref[...], 0.0)
        img = jnp.maximum(y1[:, HIDDEN:] + bimg_ref[...], 0.0)
        txt = jnp.maximum(y2[:, HIDDEN:] + btxt_ref[...], 0.0)

        fused = (con + img + txt).astype(wfin_ref.dtype)     # bf16 for MXU
        out_ref[...] = (jnp.dot(fused, wfin_ref[...],
                                preferred_element_type=jnp.float32)
                        + bfin_ref[...])


def multinet_light_head(x1, x2, packed):
    """x1: (B, 2304) image features, x2: (B, 768) text features -> (B, num_class)."""
    B = x1.shape[0]
    num_class = packed["num_class"]
    out_pad = packed["w_fin"].shape[1]

    # Batch tiling: pad B to a multiple of 8 (sublanes); tile at 128 rows for
    # large batches so weights stay resident across batch tiles.
    # (On v6e/v7x a 256-row tile is also a fine choice for very large B.)
    b_pad = _round_up(max(B, 8), 8)
    tile_b = 128 if b_pad > 128 else b_pad
    b_pad = _round_up(b_pad, tile_b)

    def pad_rows(x):
        x = x.astype(jnp.bfloat16)
        if x.shape[0] == b_pad:
            return x
        return jnp.pad(x, ((0, b_pad - x.shape[0]), (0, 0)))

    x1p = pad_rows(x1)
    x2p = pad_rows(x2)

    n_b = b_pad // tile_b
    n_k = IMG_FEAT // TK   # 3

    grid_spec = pltpu.PrefetchScalarGridSpec(
        num_scalar_prefetch=0,
        grid=(n_b, n_k),
        in_specs=[
            pl.BlockSpec((tile_b, TK), lambda i, k: (i, k)),          # x1
            pl.BlockSpec((tile_b, TXT_FEAT), lambda i, k: (i, 0)),    # x2
            pl.BlockSpec((TK, 2 * HIDDEN), lambda i, k: (k, 0)),      # W1
            pl.BlockSpec((TXT_FEAT, 2 * HIDDEN), lambda i, k: (0, 0)),  # W2 (resident)
            pl.BlockSpec((1, HIDDEN), lambda i, k: (0, 0)),           # b_con
            pl.BlockSpec((1, HIDDEN), lambda i, k: (0, 0)),           # b_img
            pl.BlockSpec((1, HIDDEN), lambda i, k: (0, 0)),           # b_txt
            pl.BlockSpec((HIDDEN, out_pad), lambda i, k: (0, 0)),     # w_fin (padded)
            pl.BlockSpec((1, out_pad), lambda i, k: (0, 0)),          # b_fin (padded)
        ],
        out_specs=pl.BlockSpec((tile_b, out_pad), lambda i, k: (i, 0)),
        scratch_shapes=[pltpu.VMEM((tile_b, 2 * HIDDEN), jnp.float32)],
    )

    out_padded = pl.pallas_call(
        _head_kernel,
        out_shape=jax.ShapeDtypeStruct((b_pad, out_pad), jnp.float32),
        grid_spec=grid_spec,
        compiler_params=pltpu.CompilerParams(
            dimension_semantics=("parallel", "arbitrary"),
            vmem_limit_bytes=16 << 20),
    )(x1p, x2p, packed["w1"], packed["w2"],
      packed["b_con"], packed["b_img"], packed["b_txt"],
      packed["w_fin"], packed["b_fin"])

    return out_padded[:B, :num_class]


def init_params(key, num_class=NUM_CLASS):
    """Deterministic synthetic weights, stored as (F_in, F_out) = torch W.T.

    Matmul operands stored in bf16 (halves HBM traffic); biases stay f32.
    """
    ks = jax.random.split(key, 8)
    scale = 0.02

    def w(k, shape, dtype=jnp.bfloat16):
        return (scale * jax.random.normal(k, shape, dtype=jnp.float32)).astype(dtype)

    return {
        "w_con": w(ks[0], (IMG_FEAT + TXT_FEAT, HIDDEN)),   # Linear(3072,256).weight.T
        "b_con": w(ks[1], (1, HIDDEN), jnp.float32),
        "w_img": w(ks[2], (IMG_FEAT, HIDDEN)),
        "b_img": w(ks[3], (1, HIDDEN), jnp.float32),
        "w_txt": w(ks[4], (TXT_FEAT, HIDDEN)),
        "b_txt": w(ks[5], (1, HIDDEN), jnp.float32),
        "w_fin": w(ks[6], (HIDDEN, num_class)),
        "b_fin": w(ks[7], (1, num_class), jnp.float32),
    }


def pack_params(p):
    """One-time weight repack for the kernel.

    W1 = [w_con[:2304] | w_img] -> (2304, 512); W2 = [w_con[2304:] | w_txt]
    -> (768, 512); final classifier padded to 128 output lanes.
    """
    w_con = p["w_con"]
    w1 = jnp.concatenate([w_con[:IMG_FEAT], p["w_img"]], axis=1)
    w2 = jnp.concatenate([w_con[IMG_FEAT:], p["w_txt"]], axis=1)
    num_class = p["w_fin"].shape[1]
    out_pad = _round_up(num_class, 128)
    w_fin_p = jnp.zeros((HIDDEN, out_pad), p["w_fin"].dtype).at[:, :num_class].set(p["w_fin"])
    b_fin_p = jnp.zeros((1, out_pad), jnp.float32).at[:, :num_class].set(p["b_fin"])
    return {
        "w1": w1, "w2": w2,
        "b_con": p["b_con"], "b_img": p["b_img"], "b_txt": p["b_txt"],
        "w_fin": w_fin_p, "b_fin": b_fin_p,
        "num_class": num_class,
    }


def reference_head(x1, x2, params):
    """Pure-JAX/f32 reference mirroring the PyTorch forward exactly
    (computed from the same bf16-stored weights/features)."""
    f32 = jnp.float32
    x1 = x1.astype(f32)
    x2 = x2.astype(f32)
    cat = jnp.concatenate([x1, x2], axis=1)
    con = jax.nn.relu(cat @ params["w_con"].astype(f32) + params["b_con"])
    img = jax.nn.relu(x1 @ params["w_img"].astype(f32) + params["b_img"])
    txt = jax.nn.relu(x2 @ params["w_txt"].astype(f32) + params["b_txt"])
    return (con + img + txt) @ params["w_fin"].astype(f32) + params["b_fin"]


if __name__ == "__main__":
    key = jax.random.PRNGKey(0)
    k_x1, k_x2, k_p = jax.random.split(key, 3)

    B = 2
    # Precomputed feature inputs (see TODO(synk) comments above), stored bf16.
    x1 = jax.random.normal(k_x1, (B, IMG_FEAT), dtype=jnp.float32).astype(jnp.bfloat16)
    x2 = jax.random.normal(k_x2, (B, TXT_FEAT), dtype=jnp.float32).astype(jnp.bfloat16)

    params = init_params(k_p, NUM_CLASS)
    packed = pack_params(params)

    out = multinet_light_head(x1, x2, packed)
    out = jax.block_until_ready(out)

    ref = reference_head(x1, x2, params)
    # bf16 operand storage (f32 accumulation) -> loosened tolerance vs. the
    # old pure-f32 kernel; this is the expected precision trade-off.
    np.testing.assert_allclose(np.asarray(out), np.asarray(ref, dtype=np.float32),
                               rtol=1e-2, atol=1e-2)
    assert out.shape == (B, NUM_CLASS)

    print("KERNEL_OK")
</pallas_src>

<mosaic_0001>
module attributes {stable_mosaic.version = 11 : i64} {
  func.func @_head_kernel(%arg0: i32, %arg1: i32, %arg2: memref<8x768xbf16, #tpu.memory_space<vmem>>, %arg3: memref<8x768xbf16, #tpu.memory_space<vmem>>, %arg4: memref<768x512xbf16, #tpu.memory_space<vmem>>, %arg5: memref<768x512xbf16, #tpu.memory_space<vmem>>, %arg6: memref<1x256xf32, #tpu.memory_space<vmem>>, %arg7: memref<1x256xf32, #tpu.memory_space<vmem>>, %arg8: memref<1x256xf32, #tpu.memory_space<vmem>>, %arg9: memref<256x128xbf16, #tpu.memory_space<vmem>>, %arg10: memref<1x128xf32, #tpu.memory_space<vmem>>, %arg11: memref<8x128xf32, #tpu.memory_space<vmem>>, %arg12: memref<8x512xf32, #tpu.memory_space<vmem>>) attributes {dimension_semantics = [#tpu.dimension_semantics<parallel>, #tpu.dimension_semantics<arbitrary>], iteration_bounds = array<i64: 1, 3>, scalar_prefetch = 0 : i64, scratch_operands = 1 : i64, tpu.core_type = #tpu.core_type<tc>, window_params = [{transform_indices = @transform_0, window_bounds = array<i64: 8, 768>}, {transform_indices = @transform_1, window_bounds = array<i64: 8, 768>}, {transform_indices = @transform_2, window_bounds = array<i64: 768, 512>}, {pipeline_mode = #tpu.pipeline_mode<synchronous>, transform_indices = @transform_3, window_bounds = array<i64: 768, 512>}, {pipeline_mode = #tpu.pipeline_mode<synchronous>, transform_indices = @transform_4, window_bounds = array<i64: 1, 256>}, {pipeline_mode = #tpu.pipeline_mode<synchronous>, transform_indices = @transform_5, window_bounds = array<i64: 1, 256>}, {pipeline_mode = #tpu.pipeline_mode<synchronous>, transform_indices = @transform_6, window_bounds = array<i64: 1, 256>}, {pipeline_mode = #tpu.pipeline_mode<synchronous>, transform_indices = @transform_7, window_bounds = array<i64: 256, 128>}, {pipeline_mode = #tpu.pipeline_mode<synchronous>, transform_indices = @transform_8, window_bounds = array<i64: 1, 128>}, {transform_indices = @transform_9, window_bounds = array<i64: 8, 128>}]} {
    %c0_i32 = arith.constant 0 : i32
    %0 = arith.cmpi eq, %arg1, %c0_i32 : i32
    %1 = arith.extui %0 : i1 to i32
    %c0_i32_0 = arith.constant 0 : i32
    %2 = arith.cmpi ne, %1, %c0_i32_0 : i32
    scf.if %2 {
      %cst_9 = arith.constant 0.000000e+00 : f32
      %12 = vector.broadcast %cst_9 : f32 to vector<8x512xf32>
      %c0_10 = arith.constant 0 : index
      %c0_11 = arith.constant 0 : index
      %13 = vector.load %arg12[%c0_10, %c0_11] : memref<8x512xf32, #tpu.memory_space<vmem>>, vector<8x512xf32>
      tpu.vector_store %arg12[%c0_10, %c0_11], %12 {strides = array<i32>} : memref<8x512xf32, #tpu.memory_space<vmem>>, vector<8x512xf32>,
    } else {
    }
    %c0 = arith.constant 0 : index
    %c0_1 = arith.constant 0 : index
    %3 = vector.load %arg12[%c0, %c0_1] : memref<8x512xf32, #tpu.memory_space<vmem>>, vector<8x512xf32>
    %c0_2 = arith.constant 0 : index
    %c0_3 = arith.constant 0 : index
    %4 = vector.load %arg2[%c0_2, %c0_3] : memref<8x768xbf16, #tpu.memory_space<vmem>>, vector<8x768xbf16>
    %c0_4 = arith.constant 0 : index
    %c0_5 = arith.constant 0 : index
    %5 = vector.load %arg4[%c0_4, %c0_5] : memref<768x512xbf16, #tpu.memory_space<vmem>>, vector<768x512xbf16>
    %cst = arith.constant dense<0.000000e+00> : vector<8x512xf32>
    %6 = tpu.matmul %4, %5, %cst {dimension_numbers = #tpu.dot_dimension_numbers<[1], [0], [0], [1], [0, 0, 1, 1], [], []>} : vector<8x768xbf16>, vector<768x512xbf16>, vector<8x512xf32> -> vector<8x512xf32>
    %7 = arith.addf %3, %6 : vector<8x512xf32>
    %c0_6 = arith.constant 0 : index
    %c0_7 = arith.constant 0 : index
    %8 = vector.load %arg12[%c0_6, %c0_7] : memref<8x512xf32, #tpu.memory_space<vmem>>, vector<8x512xf32>
    tpu.vector_store %arg12[%c0_6, %c0_7], %7 {strides = array<i32>} : memref<8x512xf32, #tpu.memory_space<vmem>>, vector<8x512xf32>,
    %c2_i32 = arith.constant 2 : i32
    %9 = arith.cmpi eq, %arg1, %c2_i32 : i32
    %10 = arith.extui %9 : i1 to i32
    %c0_i32_8 = arith.constant 0 : i32
    %11 = arith.cmpi ne, %10, %c0_i32_8 : i32
    scf.if %11 {
      %c0_9 = arith.constant 0 : index
      %c0_10 = arith.constant 0 : index
      %12 = vector.load %arg12[%c0_9, %c0_10] : memref<8x512xf32, #tpu.memory_space<vmem>>, vector<8x512xf32>
      %c0_11 = arith.constant 0 : index
      %c0_12 = arith.constant 0 : index
      %13 = vector.load %arg3[%c0_11, %c0_12] : memref<8x768xbf16, #tpu.memory_space<vmem>>, vector<8x768xbf16>
      %c0_13 = arith.constant 0 : index
      %c0_14 = arith.constant 0 : index
      %14 = vector.load %arg5[%c0_13, %c0_14] : memref<768x512xbf16, #tpu.memory_space<vmem>>, vector<768x512xbf16>
      %cst_15 = arith.constant dense<0.000000e+00> : vector<8x512xf32>
      %15 = tpu.matmul %13, %14, %cst_15 {dimension_numbers = #tpu.dot_dimension_numbers<[1], [0], [0], [1], [0, 0, 1, 1], [], []>} : vector<8x768xbf16>, vector<768x512xbf16>, vector<8x512xf32> -> vector<8x512xf32>
      %16 = vector.extract_strided_slice %12 {offsets = [0, 0], sizes = [8, 256], strides = [1, 1]} : vector<8x512xf32> to vector<8x256xf32>
      %17 = vector.extract_strided_slice %15 {offsets = [0, 0], sizes = [8, 256], strides = [1, 1]} : vector<8x512xf32> to vector<8x256xf32>
      %18 = arith.addf %16, %17 : vector<8x256xf32>
      %c0_16 = arith.constant 0 : index
      %c0_17 = arith.constant 0 : index
      %19 = vector.load %arg6[%c0_16, %c0_17] : memref<1x256xf32, #tpu.memory_space<vmem>>, vector<1x256xf32>
      %20 = vector.broadcast %19 : vector<1x256xf32> to vector<8x256xf32>
      %21 = arith.addf %18, %20 : vector<8x256xf32>
      %cst_18 = arith.constant 0.000000e+00 : f32
      %22 = vector.broadcast %cst_18 : f32 to vector<8x256xf32>
      %23 = arith.maximumf %21, %22 : vector<8x256xf32>
      %24 = vector.extract_strided_slice %12 {offsets = [0, 256], sizes = [8, 256], strides = [1, 1]} : vector<8x512xf32> to vector<8x256xf32>
      %c0_19 = arith.constant 0 : index
      %c0_20 = arith.constant 0 : index
      %25 = vector.load %arg7[%c0_19, %c0_20] : memref<1x256xf32, #tpu.memory_space<vmem>>, vector<1x256xf32>
      %26 = vector.broadcast %25 : vector<1x256xf32> to vector<8x256xf32>
      %27 = arith.addf %24, %26 : vector<8x256xf32>
      %cst_21 = arith.constant 0.000000e+00 : f32
      %28 = vector.broadcast %cst_21 : f32 to vector<8x256xf32>
      %29 = arith.maximumf %27, %28 : vector<8x256xf32>
      %30 = vector.extract_strided_slice %15 {offsets = [0, 256], sizes = [8, 256], strides = [1, 1]} : vector<8x512xf32> to vector<8x256xf32>
      %c0_22 = arith.constant 0 : index
      %c0_23 = arith.constant 0 : index
      %31 = vector.load %arg8[%c0_22, %c0_23] : memref<1x256xf32, #tpu.memory_space<vmem>>, vector<1x256xf32>
      %32 = vector.broadcast %31 : vector<1x256xf32> to vector<8x256xf32>
      %33 = arith.addf %30, %32 : vector<8x256xf32>
      %cst_24 = arith.constant 0.000000e+00 : f32
      %34 = vector.broadcast %cst_24 : f32 to vector<8x256xf32>
      %35 = arith.maximumf %33, %34 : vector<8x256xf32>
      %36 = arith.addf %23, %29 : vector<8x256xf32>
      %37 = arith.addf %36, %35 : vector<8x256xf32>
      %38 = arith.truncf %37 : vector<8x256xf32> to vector<8x256xbf16>
      %c0_25 = arith.constant 0 : index
      %c0_26 = arith.constant 0 : index
      %39 = vector.load %arg9[%c0_25, %c0_26] : memref<256x128xbf16, #tpu.memory_space<vmem>>, vector<256x128xbf16>
      %cst_27 = arith.constant dense<0.000000e+00> : vector<8x128xf32>
      %40 = tpu.matmul %38, %39, %cst_27 {dimension_numbers = #tpu.dot_dimension_numbers<[1], [0], [0], [1], [0, 0, 1, 1], [], []>} : vector<8x256xbf16>, vector<256x128xbf16>, vector<8x128xf32> -> vector<8x128xf32>
      %c0_28 = arith.constant 0 : index
      %c0_29 = arith.constant 0 : index
      %41 = vector.load %arg10[%c0_28, %c0_29] : memref<1x128xf32, #tpu.memory_space<vmem>>, vector<1x128xf32>
      %42 = vector.broadcast %41 : vector<1x128xf32> to vector<8x128xf32>
      %43 = arith.addf %40, %42 : vector<8x128xf32>
      %c0_30 = arith.constant 0 : index
      %c0_31 = arith.constant 0 : index
      %44 = vector.load %arg11[%c0_30, %c0_31] : memref<8x128xf32, #tpu.memory_space<vmem>>, vector<8x128xf32>
      tpu.vector_store %arg11[%c0_30, %c0_31], %43 {strides = array<i32>} : memref<8x128xf32, #tpu.memory_space<vmem>>, vector<8x128xf32>,
    } else {
    }
    return
  }
  func.func @transform_0(%arg0: i32, %arg1: i32) -> (i32, i32) {
    %c0_i32 = arith.constant 0 : i32
    return %arg0, %arg1 : i32, i32
  }
  func.func @transform_1(%arg0: i32, %arg1: i32) -> (i32, i32) {
    %c0_i32 = arith.constant 0 : i32
    %c0_i32_0 = arith.constant 0 : i32
    return %arg0, %c0_i32 : i32, i32
  }
  func.func @transform_2(%arg0: i32, %arg1: i32) -> (i32, i32) {
    %c0_i32 = arith.constant 0 : i32
    %c0_i32_0 = arith.constant 0 : i32
    return %arg1, %c0_i32 : i32, i32
  }
  func.func @transform_3(%arg0: i32, %arg1: i32) -> (i32, i32) {
    %c0_i32 = arith.constant 0 : i32
    %c0_i32_0 = arith.constant 0 : i32
    %c0_i32_1 = arith.constant 0 : i32
    return %c0_i32, %c0_i32_0 : i32, i32
  }
  func.func @transform_4(%arg0: i32, %arg1: i32) -> (i32, i32) {
    %c0_i32 = arith.constant 0 : i32
    %c0_i32_0 = arith.constant 0 : i32
    %c0_i32_1 = arith.constant 0 : i32
    return %c0_i32, %c0_i32_0 : i32, i32
  }
  func.func @transform_5(%arg0: i32, %arg1: i32) -> (i32, i32) {
    %c0_i32 = arith.constant 0 : i32
    %c0_i32_0 = arith.constant 0 : i32
    %c0_i32_1 = arith.constant 0 : i32
    return %c0_i32, %c0_i32_0 : i32, i32
  }
  func.func @transform_6(%arg0: i32, %arg1: i32) -> (i32, i32) {
    %c0_i32 = arith.constant 0 : i32
    %c0_i32_0 = arith.constant 0 : i32
    %c0_i32_1 = arith.constant 0 : i32
    return %c0_i32, %c0_i32_0 : i32, i32
  }
  func.func @transform_7(%arg0: i32, %arg1: i32) -> (i32, i32) {
    %c0_i32 = arith.constant 0 : i32
    %c0_i32_0 = arith.constant 0 : i32
    %c0_i32_1 = arith.constant 0 : i32
    return %c0_i32, %c0_i32_0 : i32, i32
  }
  func.func @transform_8(%arg0: i32, %arg1: i32) -> (i32, i32) {
    %c0_i32 = arith.constant 0 : i32
    %c0_i32_0 = arith.constant 0 : i32
    %c0_i32_1 = arith.constant 0 : i32
    return %c0_i32, %c0_i32_0 : i32, i32
  }
  func.func @transform_9(%arg0: i32, %arg1: i32) -> (i32, i32) {
    %c0_i32 = arith.constant 0 : i32
    %c0_i32_0 = arith.constant 0 : i32
    return %arg0, %c0_i32 : i32, i32
  }
}

</mosaic_0001>

<llo_original>
// kernel: tpu_custom_call.1
$region0: #{tpu_custom_call.1}
  #allocation0 [shape = 'u32[]', space=smem, size = 0x4, offset = 0x4, fixed_abs, tag = 'smem constant byte address 0x4 - core index']
  #allocation1 [shape = 'u32[72,128]{1,0:T(1,128)}', space=vmem, size = 0x9000, scoped, tag = 'internal scratch']
  #allocation2 [shape = 'f32[8,512]{1,0:T(8,128)}', space=vmem, size = 0x4000, scoped, tag = 'scratch operand']
  %s0 = inlined_call_operand.hbm [shape: bf16[8,2304], index: 0, kind: input, shape index: {}]
  %s1 = inlined_call_operand.hbm [shape: bf16[8,768], index: 1, kind: input, shape index: {}]
  %s2 = inlined_call_operand.hbm [shape: bf16[2304,512], index: 2, kind: input, shape index: {}]
  %s3 = inlined_call_operand.hbm [shape: bf16[768,512], index: 3, kind: input, shape index: {}]
  %s4 = inlined_call_operand.hbm [shape: f32[1,256], index: 4, kind: input, shape index: {}]
  %s5 = inlined_call_operand.hbm [shape: f32[1,256], index: 5, kind: input, shape index: {}]
  %s6 = inlined_call_operand.hbm [shape: f32[1,256], index: 6, kind: input, shape index: {}]
  %s7 = inlined_call_operand.hbm [shape: bf16[256,128], index: 7, kind: input, shape index: {}]
  %s8 = inlined_call_operand.hbm [shape: f32[1,128], index: 8, kind: input, shape index: {}]
  %s9 = inlined_call_operand.hbm [shape: f32[8,128], index: 9, kind: output, shape index: {}]
  %s10 = sld [smem:[#allocation0]]
  $region113: #{tpu_custom_call.1} parent=0
    _
  %s12 = ssub.s32 1, %s10
  %s13 = scalar_select 0, %s12, %s10
  $region1: #{tpu_custom_call.1} parent=0
    #allocation3 [shape = 'u8[24576]{0}', space=vmem, size = 0x6000, scoped, tag = 'input window, operand 0']
    #allocation4 [shape = 's32[2]{0}', space=sflag, size = 0x8, scoped, tag = 'scoped memory for tpu_custom_call.1']
    #allocation5 [shape = 's32[2]{0}', space=sflag, size = 0x8, scoped, tag = 'scoped memory for tpu_custom_call.1']
    #allocation6 [shape = 'u8[12288]{0}', space=vmem, size = 0x3000, scoped, tag = 'input window, operand 1, single buffered']
    #allocation7 [shape = 's32[1]{0}', space=sflag, size = 0x4, scoped, tag = 'scoped memory for tpu_custom_call.1']
    #allocation8 [shape = 'u8[1572864]{0}', space=vmem, size = 0x180000, scoped, tag = 'input window, operand 2']
    #allocation9 [shape = 'u8[786432]{0}', space=vmem, size = 0xc0000, scoped, tag = 'input window, operand 3, single buffered']
    #allocation10 [shape = 'u8[1024]{0}', space=vmem, size = 0x400, scoped, tag = 'input window, operand 4, single buffered']
    #allocation11 [shape = 's32[1]{0}', space=sflag, size = 0x4, scoped, tag = 'scoped memory for tpu_custom_call.1']
    #allocation12 [shape = 'u8[1024]{0}', space=vmem, size = 0x400, scoped, tag = 'input window, operand 5, single buffered']
    #allocation13 [shape = 'u8[1024]{0}', space=vmem, size = 0x400, scoped, tag = 'input window, operand 6, single buffered']
    #allocation14 [shape = 's32[1]{0}', space=sflag, size = 0x4, scoped, tag = 'scoped memory for tpu_custom_call.1']
    #allocation15 [shape = 'u8[65536]{0}', space=vmem, size = 0x10000, scoped, tag = 'input window, operand 7, single buffered']
    #allocation16 [shape = 'u8[512]{0}', space=vmem, size = 0x400, scoped, tag = 'input window, operand 8, single buffered']
    #allocation17 [shape = 's32[1]{0}', space=sflag, size = 0x4, scoped, tag = 'scoped memory for tpu_custom_call.1']
    #allocation18 [shape = 'u8[4096]{0}', space=vmem, size = 0x1000, scoped, tag = 'output window, operand 0, single buffered']
    %14 = vsyncpa [#allocation4], 0
    %s15 = scalar_lea.sflag [#allocation4], 1
    %16 = vsyncpa %s15, 0
    %17 = vsyncpa [#allocation7], 0
    %18 = vsyncpa [#allocation11], 0
    %19 = vsyncpa [#allocation14], 0
    %20 = vsyncpa [#allocation17], 0
    %21 = vsyncpa [#allocation5], 0
    loop: start=0, step=1, limit=5
    $region2: #{tpu_custom_call.1} parent=1 // loop_pre_header
      _
    $region3: #{tpu_custom_call.1} parent=1 // loop_header
      %s23 = sphi 0, %s27
      %p24 = scmp.ge.s32.totalorder %s23, 5
      %s30 = sphi 0, %s42
      %s31 = sphi 0, %s38
      %s32 = sphi 0, %s30
      %s33 = sphi 0, %s31
      %s34 = sphi 0, %s32
      %s35 = sphi 0, %s33
      %s47 = sphi 0, %s49
      %s50 = sphi 0, %s47
      %s51 = sphi 0, %s50
      %s67 = sphi 0, %s51
      %s73 = sphi 0, %s75
      %s76 = sphi 0, %s73
      %s77 = sphi 0, %s76
      %s93 = sphi 0, %s77
      %s99 = sphi 0, %s101
      %s102 = sphi 0, %s99
      %s103 = sphi 0, %s102
      %s119 = sphi 0, %s103
      %s123 = sphi 0, %s123
      %s125 = sphi 0, %s123
      %s126 = sphi 0, %s125
      %s140 = sphi 0, %s126
      %s144 = sphi 0, %s144
      %s146 = sphi 0, %s144
      %s147 = sphi 0, %s146
      %s161 = sphi 0, %s147
      %s165 = sphi 0, %s165
      %s167 = sphi 0, %s165
      %s168 = sphi 0, %s167
      %s182 = sphi 0, %s168
      %s186 = sphi 0, %s186
      %s188 = sphi 0, %s186
      %s189 = sphi 0, %s188
      %s203 = sphi 0, %s189
      %s207 = sphi 0, %s207
      %s209 = sphi 0, %s207
      %s210 = sphi 0, %s209
      %s224 = sphi 0, %s210
      %s228 = sphi 0, %s228
      %s230 = sphi 0, %s228
      %s231 = sphi 0, %s230
      %s245 = sphi 0, %s231
      %s251 = sphi 0, %s253
      %s254 = sphi 0, %s251
      %s255 = sphi 0, %s254
      %s271 = sphi 0, %s255
    $region4: #{tpu_custom_call.1} parent=1 // loop_header_branch
      %26 = sbr.rel (%p24) target = $region8
    $region5: #{tpu_custom_call.1} parent=1 // loop_body
      %s28 = ssub.s32 %s23, 1
      %s29 = ssub.s32 %s23, 2
      %s36 = sadd.s32 1, %s31
      %p37 = scmp.ge.s32.totalorder %s36, 3
      %s38 = scalar_select %p37, 0, %s36
      %s39 = sadd.s32 1, %s30
      %s40 = scalar_select %p37, %s39, %s30
      %p41 = scmp.ge.s32.totalorder %s40, 1
      %s42 = scalar_select %p41, 0, %s40
      %s43 = ssub.s32 %s30, %s42
      %s44 = ssub.s32 %s31, %s38
      %s45 = sor.u32 %s43, %s44
      %p46 = scmp.eq.s32.totalorder %s45, 0
      %s48 = sadd.s32 %s47, 1
      %s49 = scalar_select %p46, %s47, %s48
      %p52 = pneg %p46
      %p53 = scmp.eq.s32.totalorder %s23, 2
      %p54 = por %p52, %p53
      %p55 = scmp.ne.s32.totalorder %s47, %s50
      %p56 = scmp.eq.s32.totalorder %s23, 0
      %p57 = por %p55, %p56
      %p58 = scmp.ne.s32.totalorder %s47, %s50
      %p59 = scmp.eq.s32.totalorder %s28, 2
      %p60 = por %p58, %p59
      %p61 = scmp.ne.s32.totalorder %s50, %s51
      %p62 = scmp.eq.s32.totalorder %s28, 0
      %p63 = por %p61, %p62
      %p64 = scmp.ne.s32.totalorder %s50, %s51
      %p65 = scmp.eq.s32.totalorder %s29, 2
      %p66 = por %p64, %p65
      %p68 = scmp.ne.s32.totalorder %s51, %s67
      %p69 = scmp.eq.s32.totalorder %s29, 0
      %p70 = por %p68, %p69
      %s71 = ssub.s32 %s30, %s42
      %p72 = scmp.eq.s32.totalorder %s71, 0
      %s74 = sadd.s32 %s73, 1
      %s75 = scalar_select %p72, %s73, %s74
      %p78 = pneg %p72
      %p79 = scmp.eq.s32.totalorder %s23, 2
      %p80 = por %p78, %p79
      %p81 = scmp.ne.s32.totalorder %s73, %s76
      %p82 = scmp.eq.s32.totalorder %s23, 0
      %p83 = por %p81, %p82
      %p84 = scmp.ne.s32.totalorder %s73, %s76
      %p85 = scmp.eq.s32.totalorder %s28, 2
      %p86 = por %p84, %p85
      %p87 = scmp.ne.s32.totalorder %s76, %s77
      %p88 = scmp.eq.s32.totalorder %s28, 0
      %p89 = por %p87, %p88
      %p90 = scmp.ne.s32.totalorder %s76, %s77
      %p91 = scmp.eq.s32.totalorder %s29, 2
      %p92 = por %p90, %p91
      %p94 = scmp.ne.s32.totalorder %s77, %s93
      %p95 = scmp.eq.s32.totalorder %s29, 0
      %p96 = por %p94, %p95
      %s97 = ssub.s32 %s31, %s38
      %p98 = scmp.eq.s32.totalorder %s97, 0
      %s100 = sadd.s32 %s99, 1
      %s101 = scalar_select %p98, %s99, %s100
      %p104 = pneg %p98
      %p105 = scmp.eq.s32.totalorder %s23, 2
      %p106 = por %p104, %p105
      %p107 = scmp.ne.s32.totalorder %s99, %s102
      %p108 = scmp.eq.s32.totalorder %s23, 0
      %p109 = por %p107, %p108
      %p110 = scmp.ne.s32.totalorder %s99, %s102
      %p111 = scmp.eq.s32.totalorder %s28, 2
      %p112 = por %p110, %p111
      %p113 = scmp.ne.s32.totalorder %s102, %s103
      %p114 = scmp.eq.s32.totalorder %s28, 0
      %p115 = por %p113, %p114
      %p116 = scmp.ne.s32.totalorder %s102, %s103
      %p117 = scmp.eq.s32.totalorder %s29, 2
      %p118 = por %p116, %p117
      %p120 = scmp.ne.s32.totalorder %s103, %s119
      %p121 = scmp.eq.s32.totalorder %s29, 0
      %p122 = por %p120, %p121
      %s124 = sadd.s32 %s123, 1
      %p127 = scmp.eq.s32.totalorder %s23, 2
      %p128 = scmp.ne.s32.totalorder %s123, %s125
      %p129 = scmp.eq.s32.totalorder %s23, 0
      %p130 = por %p128, %p129
      %p131 = scmp.ne.s32.totalorder %s123, %s125
      %p132 = scmp.eq.s32.totalorder %s28, 2
      %p133 = por %p131, %p132
      %p134 = scmp.ne.s32.totalorder %s125, %s126
      %p135 = scmp.eq.s32.totalorder %s28, 0
      %p136 = por %p134, %p135
      %p137 = scmp.ne.s32.totalorder %s125, %s126
      %p138 = scmp.eq.s32.totalorder %s29, 2
      %p139 = por %p137, %p138
      %p141 = scmp.ne.s32.totalorder %s126, %s140
      %p142 = scmp.eq.s32.totalorder %s29, 0
      %p143 = por %p141, %p142
      %s145 = sadd.s32 %s144, 1
      %p148 = scmp.eq.s32.totalorder %s23, 2
      %p149 = scmp.ne.s32.totalorder %s144, %s146
      %p150 = scmp.eq.s32.totalorder %s23, 0
      %p151 = por %p149, %p150
      %p152 = scmp.ne.s32.totalorder %s144, %s146
      %p153 = scmp.eq.s32.totalorder %s28, 2
      %p154 = por %p152, %p153
      %p155 = scmp.ne.s32.totalorder %s146, %s147
      %p156 = scmp.eq.s32.totalorder %s28, 0
      %p157 = por %p155, %p156
      %p158 = scmp.ne.s32.totalorder %s146, %s147
      %p159 = scmp.eq.s32.totalorder %s29, 2
      %p160 = por %p158, %p159
      %p162 = scmp.ne.s32.totalorder %s147, %s161
      %p163 = scmp.eq.s32.totalorder %s29, 0
      %p164 = por %p162, %p163
      %s166 = sadd.s32 %s165, 1
      %p169 = scmp.eq.s32.totalorder %s23, 2
      %p170 = scmp.ne.s32.totalorder %s165, %s167
      %p171 = scmp.eq.s32.totalorder %s23, 0
      %p172 = por %p170, %p171
      %p173 = scmp.ne.s32.totalorder %s165, %s167
      %p174 = scmp.eq.s32.totalorder %s28, 2
      %p175 = por %p173, %p174
      %p176 = scmp.ne.s32.totalorder %s167, %s168
      %p177 = scmp.eq.s32.totalorder %s28, 0
      %p178 = por %p176, %p177
      %p179 = scmp.ne.s32.totalorder %s167, %s168
      %p180 = scmp.eq.s32.totalorder %s29, 2
      %p181 = por %p179, %p180
      %p183 = scmp.ne.s32.totalorder %s168, %s182
      %p184 = scmp.eq.s32.totalorder %s29, 0
      %p185 = por %p183, %p184
      %s187 = sadd.s32 %s186, 1
      %p190 = scmp.eq.s32.totalorder %s23, 2
      %p191 = scmp.ne.s32.totalorder %s186, %s188
      %p192 = scmp.eq.s32.totalorder %s23, 0
      %p193 = por %p191, %p192
      %p194 = scmp.ne.s32.totalorder %s186, %s188
      %p195 = scmp.eq.s32.totalorder %s28, 2
      %p196 = por %p194, %p195
      %p197 = scmp.ne.s32.totalorder %s188, %s189
      %p198 = scmp.eq.s32.totalorder %s28, 0
      %p199 = por %p197, %p198
      %p200 = scmp.ne.s32.totalorder %s188, %s189
      %p201 = scmp.eq.s32.totalorder %s29, 2
      %p202 = por %p200, %p201
      %p204 = scmp.ne.s32.totalorder %s189, %s203
      %p205 = scmp.eq.s32.totalorder %s29, 0
      %p206 = por %p204, %p205
      %s208 = sadd.s32 %s207, 1
      %p211 = scmp.eq.s32.totalorder %s23, 2
      %p212 = scmp.ne.s32.totalorder %s207, %s209
      %p213 = scmp.eq.s32.totalorder %s23, 0
      %p214 = por %p212, %p213
      %p215 = scmp.ne.s32.totalorder %s207, %s209
      %p216 = scmp.eq.s32.totalorder %s28, 2
      %p217 = por %p215, %p216
      %p218 = scmp.ne.s32.totalorder %s209, %s210
      %p219 = scmp.eq.s32.totalorder %s28, 0
      %p220 = por %p218, %p219
      %p221 = scmp.ne.s32.totalorder %s209, %s210
      %p222 = scmp.eq.s32.totalorder %s29, 2
      %p223 = por %p221, %p222
      %p225 = scmp.ne.s32.totalorder %s210, %s224
      %p226 = scmp.eq.s32.totalorder %s29, 0
      %p227 = por %p225, %p226
      %s229 = sadd.s32 %s228, 1
      %p232 = scmp.eq.s32.totalorder %s23, 2
      %p233 = scmp.ne.s32.totalorder %s228, %s230
      %p234 = scmp.eq.s32.totalorder %s23, 0
      %p235 = por %p233, %p234
      %p236 = scmp.ne.s32.totalorder %s228, %s230
      %p237 = scmp.eq.s32.totalorder %s28, 2
      %p238 = por %p236, %p237
      %p239 = scmp.ne.s32.totalorder %s230, %s231
      %p240 = scmp.eq.s32.totalorder %s28, 0
      %p241 = por %p239, %p240
      %p242 = scmp.ne.s32.totalorder %s230, %s231
      %p243 = scmp.eq.s32.totalorder %s29, 2
      %p244 = por %p242, %p243
      %p246 = scmp.ne.s32.totalorder %s231, %s245
      %p247 = scmp.eq.s32.totalorder %s29, 0
      %p248 = por %p246, %p247
      %s249 = ssub.s32 %s30, %s42
      %p250 = scmp.eq.s32.totalorder %s249, 0
      %s252 = sadd.s32 %s251, 1
      %s253 = scalar_select %p250, %s251, %s252
      %p256 = pneg %p250
      %p257 = scmp.eq.s32.totalorder %s23, 2
      %p258 = por %p256, %p257
      %p259 = scmp.ne.s32.totalorder %s251, %s254
      %p260 = scmp.eq.s32.totalorder %s23, 0
      %p261 = por %p259, %p260
      %p262 = scmp.ne.s32.totalorder %s251, %s254
      %p263 = scmp.eq.s32.totalorder %s28, 2
      %p264 = por %p262, %p263
      %p265 = scmp.ne.s32.totalorder %s254, %s255
      %p266 = scmp.eq.s32.totalorder %s28, 0
      %p267 = por %p265, %p266
      %p268 = scmp.ne.s32.totalorder %s254, %s255
      %p269 = scmp.eq.s32.totalorder %s29, 2
      %p270 = por %p268, %p269
      %p272 = scmp.ne.s32.totalorder %s255, %s271
      %p273 = scmp.eq.s32.totalorder %s29, 0
      %p274 = por %p272, %p273
      %p275 = scmp.le.s32.totalorder 1, %s23
      %p276 = scmp.lt.s32.totalorder %s23, 4
      %p277 = pnand %p275, %p276
      %p278 = pneg %p277
      // Predicated region
      $region9: #{tpu_custom_call.1} parent=5 // pred_check
        _
      $region10: #{tpu_custom_call.1} parent=5 // pred_check_branch
        %280 = sbr.rel (%p277) target = $region12
      $region11: #{tpu_custom_call.1} parent=5 // pred_region
        %s281 = ssub.s32 %s23, 1
        // Predicated region
        $region13: #{tpu_custom_call.1} parent=11 // pred_check
          %p282 = pneg %p89
        $region14: #{tpu_custom_call.1} parent=11 // pred_check_branch
          %284 = sbr.rel (%p282) target = $region16
        $region15: #{tpu_custom_call.1} parent=11 // pred_region
          %286 = vsyncadd [#allocation7], 0
          %s287 = smul.addr %s32, 6
          %s288 = smul.addr %s287, 4
          %s289 = scalar_lea.hbm %s1, %s288
          %s291 = sshll.u32 %s289, 4
          %s292 = int_to_ptr.hbm [resolvable:$true] %s291
          %s293 = sshll.u32 [#allocation6], 4
          %s294 = int_to_ptr.vmem [resolvable:$true] %s293
          %296 = dma.hbm_to_vmem [thread:$0]  %s292, 384, %s294, [#allocation7]
        $region16: #{tpu_custom_call.1} parent=11 // pred_fallthru
          _
        // Predicated region
        $region17: #{tpu_custom_call.1} parent=11 // pred_check
          %p297 = pneg %p136
        $region18: #{tpu_custom_call.1} parent=11 // pred_check_branch
          %299 = sbr.rel (%p297) target = $region20
        $region19: #{tpu_custom_call.1} parent=11 // pred_region
          %301 = vsyncadd [#allocation7], 0
          %s302 = sshll.u32 %s3, 4
          %s303 = int_to_ptr.hbm [resolvable:$true] %s302
          %s304 = sshll.u32 [#allocation9], 4
          %s305 = int_to_ptr.vmem [resolvable:$true] %s304
          %310 = dma.hbm_to_vmem [thread:$0]  %s303, 24576, %s305, [#allocation7], 256, 256, 16
        $region20: #{tpu_custom_call.1} parent=11 // pred_fallthru
          _
        // Predicated region
        $region21: #{tpu_custom_call.1} parent=11 // pred_check
          %p311 = pneg %p157
        $region22: #{tpu_custom_call.1} parent=11 // pred_check_branch
          %313 = sbr.rel (%p311) target = $region24
        $region23: #{tpu_custom_call.1} parent=11 // pred_region
          %315 = vsyncadd [#allocation11], 0
          %s317 = sshll.u32 %s4, 4
          %s318 = int_to_ptr.hbm [resolvable:$true] %s317
          %s319 = sshll.u32 [#allocation10], 4
          %s320 = int_to_ptr.vmem [resolvable:$true] %s319
          %322 = dma.hbm_to_vmem [thread:$0]  %s318, 32, %s320, [#allocation11]
        $region24: #{tpu_custom_call.1} parent=11 // pred_fallthru
          _
        // Predicated region
        $region25: #{tpu_custom_call.1} parent=11 // pred_check
          %p323 = pneg %p178
        $region26: #{tpu_custom_call.1} parent=11 // pred_check_branch
          %325 = sbr.rel (%p323) target = $region28
        $region27: #{tpu_custom_call.1} parent=11 // pred_region
          %327 = vsyncadd [#allocation11], 0
          %s329 = sshll.u32 %s5, 4
          %s330 = int_to_ptr.hbm [resolvable:$true] %s329
          %s331 = sshll.u32 [#allocation12], 4
          %s332 = int_to_ptr.vmem [resolvable:$true] %s331
          %334 = dma.hbm_to_vmem [thread:$0]  %s330, 32, %s332, [#allocation11]
        $region28: #{tpu_custom_call.1} parent=11 // pred_fallthru
          _
        // Predicated region
        $region29: #{tpu_custom_call.1} parent=11 // pred_check
          %p335 = pneg %p199
        $region30: #{tpu_custom_call.1} parent=11 // pred_check_branch
          %337 = sbr.rel (%p335) target = $region32
        $region31: #{tpu_custom_call.1} parent=11 // pred_region
          %339 = vsyncadd [#allocation14], 0
          %s341 = sshll.u32 %s6, 4
          %s342 = int_to_ptr.hbm [resolvable:$true] %s341
          %s343 = sshll.u32 [#allocation13], 4
          %s344 = int_to_ptr.vmem [resolvable:$true] %s343
          %346 = dma.hbm_to_vmem [thread:$0]  %s342, 32, %s344, [#allocation14]
        $region32: #{tpu_custom_call.1} parent=11 // pred_fallthru
          _
        // Predicated region
        $region33: #{tpu_custom_call.1} parent=11 // pred_check
          %p347 = pneg %p220
        $region34: #{tpu_custom_call.1} parent=11 // pred_check_branch
          %349 = sbr.rel (%p347) target = $region36
        $region35: #{tpu_custom_call.1} parent=11 // pred_region
          %351 = vsyncadd [#allocation14], 0
          %s352 = sshll.u32 %s7, 4
          %s353 = int_to_ptr.hbm [resolvable:$true] %s352
          %s354 = sshll.u32 [#allocation15], 4
          %s355 = int_to_ptr.vmem [resolvable:$true] %s354
          %360 = dma.hbm_to_vmem [thread:$0]  %s353, 2048, %s355, [#allocation14], 64, 64, 4
        $region36: #{tpu_custom_call.1} parent=11 // pred_fallthru
          _
        // Predicated region
        $region37: #{tpu_custom_call.1} parent=11 // pred_check
          %p361 = pneg %p241
        $region38: #{tpu_custom_call.1} parent=11 // pred_check_branch
          %363 = sbr.rel (%p361) target = $region40
        $region39: #{tpu_custom_call.1} parent=11 // pred_region
          %365 = vsyncadd [#allocation17], 0
          %s367 = sshll.u32 %s8, 4
          %s368 = int_to_ptr.hbm [resolvable:$true] %s367
          %s369 = sshll.u32 [#allocation16], 4
          %s370 = int_to_ptr.vmem [resolvable:$true] %s369
          %372 = dma.hbm_to_vmem [thread:$0]  %s368, 16, %s370, [#allocation17]
        $region40: #{tpu_custom_call.1} parent=11 // pred_fallthru
          _
      $region12: #{tpu_custom_call.1} parent=5 // pred_fallthru
        _
      %p373 = scmp.lt.s32.totalorder %s23, 3
      // Predicated region
      $region41: #{tpu_custom_call.1} parent=5 // pred_check
        %p374 = pneg %p373
      $region42: #{tpu_custom_call.1} parent=5 // pred_check_branch
        %376 = sbr.rel (%p374) target = $region44
      $region43: #{tpu_custom_call.1} parent=5 // pred_region
        // Predicated region
        $region45: #{tpu_custom_call.1} parent=43 // pred_check
          %p377 = pneg %p57
        $region46: #{tpu_custom_call.1} parent=43 // pred_check_branch
          %379 = sbr.rel (%p377) target = $region48
        $region47: #{tpu_custom_call.1} parent=43 // pred_region
          %s380 = sand.u32 %s23, 1
          %s381 = scalar_lea.sflag [#allocation4], %s380
          %s382 = sand.u32 %s47, 1
          %s383 = smul.addr %s382, 24
          %s384 = scalar_lea.vmem [#allocation3], %s383
          %s385 = smul.u32 6, %s31
          %387 = vsyncadd %s381, 0
          %s388 = smul.addr %s30, 18
          %s389 = sadd.s32 %s385, %s388
          %s390 = smul.addr %s389, 4
          %s391 = scalar_lea.hbm %s0, %s390
          %s393 = sshll.u32 %s391, 4
          %s394 = int_to_ptr.hbm [resolvable:$true] %s393
          %s395 = sshll.u32 %s384, 4
          %s396 = int_to_ptr.vmem [resolvable:$true] %s395
          %398 = dma.hbm_to_vmem [thread:$0]  %s394, 384, %s396, %s381
        $region48: #{tpu_custom_call.1} parent=43 // pred_fallthru
          _
        // Predicated region
        $region49: #{tpu_custom_call.1} parent=43 // pred_check
          %p399 = pneg %p109
        $region50: #{tpu_custom_call.1} parent=43 // pred_check_branch
          %401 = sbr.rel (%p399) target = $region52
        $region51: #{tpu_custom_call.1} parent=43 // pred_region
          %s402 = sand.u32 %s23, 1
          %s403 = scalar_lea.sflag [#allocation4], %s402
          %s404 = sand.u32 %s99, 1
          %s405 = smul.addr %s404, 1536
          %s406 = scalar_lea.vmem [#allocation8], %s405
          %s407 = smul.u32 96, %s31
          %409 = vsyncadd %s403, 0
          %s410 = smul.addr %s407, 4
          %s411 = smul.addr %s410, 4
          %s412 = scalar_lea.hbm %s2, %s411
          %s413 = sshll.u32 %s412, 4
          %s414 = int_to_ptr.hbm [resolvable:$true] %s413
          %s415 = sshll.u32 %s406, 4
          %s416 = int_to_ptr.vmem [resolvable:$true] %s415
          %421 = dma.hbm_to_vmem [thread:$0]  %s414, 24576, %s416, %s403, 256, 256, 16
        $region52: #{tpu_custom_call.1} parent=43 // pred_fallthru
          _
      $region44: #{tpu_custom_call.1} parent=5 // pred_fallthru
        _
      %p422 = scmp.le.s32.totalorder 1, %s23
      %p423 = scmp.lt.s32.totalorder %s23, 4
      %p424 = pnand %p422, %p423
      %p425 = pneg %p424
      // Predicated region
      $region53: #{tpu_custom_call.1} parent=5 // pred_check
        _
      $region54: #{tpu_custom_call.1} parent=5 // pred_check_branch
        %427 = sbr.rel (%p424) target = $region56
      $region55: #{tpu_custom_call.1} parent=5 // pred_region
        %s428 = ssub.s32 %s23, 1
        %s429 = sand.u32 %s28, 1
        %s430 = scalar_lea.sflag [#allocation4], %s429
        %s431 = sand.u32 %s50, 1
        %s432 = smul.addr %s431, 24
        %s433 = scalar_lea.vmem [#allocation3], %s432
        // Predicated region
        $region57: #{tpu_custom_call.1} parent=55 // pred_check
          %p434 = pneg %p63
        $region58: #{tpu_custom_call.1} parent=55 // pred_check_branch
          %436 = sbr.rel (%p434) target = $region60
        $region59: #{tpu_custom_call.1} parent=55 // pred_region
          %438 = dma.done %s430, 384
        $region60: #{tpu_custom_call.1} parent=55 // pred_fallthru
          _
        // Predicated region
        $region61: #{tpu_custom_call.1} parent=55 // pred_check
          %p439 = pneg %p89
        $region62: #{tpu_custom_call.1} parent=55 // pred_check_branch
          %441 = sbr.rel (%p439) target = $region64
        $region63: #{tpu_custom_call.1} parent=55 // pred_region
          %443 = dma.done [#allocation7], 384
        $region64: #{tpu_custom_call.1} parent=55 // pred_fallthru
          _
        %s444 = sand.u32 %s28, 1
        %s445 = scalar_lea.sflag [#allocation4], %s444
        %s446 = sand.u32 %s102, 1
        %s447 = smul.addr %s446, 1536
        %s448 = scalar_lea.vmem [#allocation8], %s447
        // Predicated region
        $region65: #{tpu_custom_call.1} parent=55 // pred_check
          %p449 = pneg %p115
        $region66: #{tpu_custom_call.1} parent=55 // pred_check_branch
          %451 = sbr.rel (%p449) target = $region68
        $region67: #{tpu_custom_call.1} parent=55 // pred_region
          %453 = dma.done %s445, 24576
        $region68: #{tpu_custom_call.1} parent=55 // pred_fallthru
          _
        // Predicated region
        $region69: #{tpu_custom_call.1} parent=55 // pred_check
          %p454 = pneg %p136
        $region70: #{tpu_custom_call.1} parent=55 // pred_check_branch
          %456 = sbr.rel (%p454) target = $region72
        $region71: #{tpu_custom_call.1} parent=55 // pred_region
          %458 = dma.done [#allocation7], 24576
        $region72: #{tpu_custom_call.1} parent=55 // pred_fallthru
          _
        // Predicated region
        $region73: #{tpu_custom_call.1} parent=55 // pred_check
          %p459 = pneg %p157
        $region74: #{tpu_custom_call.1} parent=55 // pred_check_branch
          %461 = sbr.rel (%p459) target = $region76
        $region75: #{tpu_custom_call.1} parent=55 // pred_region
          %463 = dma.done [#allocation11], 32
        $region76: #{tpu_custom_call.1} parent=55 // pred_fallthru
          _
        // Predicated region
        $region77: #{tpu_custom_call.1} parent=55 // pred_check
          %p464 = pneg %p178
        $region78: #{tpu_custom_call.1} parent=55 // pred_check_branch
          %466 = sbr.rel (%p464) target = $region80
        $region79: #{tpu_custom_call.1} parent=55 // pred_region
          %468 = dma.done [#allocation11], 32
        $region80: #{tpu_custom_call.1} parent=55 // pred_fallthru
          _
        // Predicated region
        $region81: #{tpu_custom_call.1} parent=55 // pred_check
          %p469 = pneg %p199
        $region82: #{tpu_custom_call.1} parent=55 // pred_check_branch
          %471 = sbr.rel (%p469) target = $region84
        $region83: #{tpu_custom_call.1} parent=55 // pred_region
          %473 = dma.done [#allocation14], 32
        $region84: #{tpu_custom_call.1} parent=55 // pred_fallthru
          _
        // Predicated region
        $region85: #{tpu_custom_call.1} parent=55 // pred_check
          %p474 = pneg %p220
        $region86: #{tpu_custom_call.1} parent=55 // pred_check_branch
          %476 = sbr.rel (%p474) target = $region88
        $region87: #{tpu_custom_call.1} parent=55 // pred_region
          %478 = dma.done [#allocation14], 2048
        $region88: #{tpu_custom_call.1} parent=55 // pred_fallthru
          _
        // Predicated region
        $region89: #{tpu_custom_call.1} parent=55 // pred_check
          %p479 = pneg %p241
        $region90: #{tpu_custom_call.1} parent=55 // pred_check_branch
          %481 = sbr.rel (%p479) target = $region92
        $region91: #{tpu_custom_call.1} parent=55 // pred_region
          %483 = dma.done [#allocation17], 16
        $region92: #{tpu_custom_call.1} parent=55 // pred_fallthru
          _
        %s484 = sand.u32 %s28, 1
        %s485 = scalar_lea.sflag [#allocation4], %s484
        %s486 = sand.u32 %s50, 1
        %s487 = smul.addr %s486, 24
        %s488 = scalar_lea.vmem [#allocation3], %s487
        %p489 = pneg %p63
        %p490 = pneg %p60
        %p491 = pneg %p89
        %p492 = pneg %p86
        %s493 = sand.u32 %s28, 1
        %s494 = scalar_lea.sflag [#allocation4], %s493
        %s495 = sand.u32 %s102, 1
        %s496 = smul.addr %s495, 1536
        %s497 = scalar_lea.vmem [#allocation8], %s496
        %p498 = pneg %p115
        %p499 = pneg %p112
        %p500 = pneg %p136
        %p501 = pneg %p133
        %p502 = pneg %p157
        %p503 = pneg %p154
        %p504 = pneg %p178
        %p505 = pneg %p175
        %p506 = pneg %p199
        %p507 = pneg %p196
        %p508 = pneg %p220
        %p509 = pneg %p217
        %p510 = pneg %p241
        %p511 = pneg %p238
        %p512 = pneg %p267
        %p513 = pneg %p264
        %s514 = smul.u32 6, %s33
        %s515 = smul.u32 96, %s33
        %p516 = scmp.eq.s32.totalorder %s33, 0
        // Predicated region
        $region93: #{tpu_custom_call.1} parent=55 // pred_check
          %p517 = pneg %p516
        $region94: #{tpu_custom_call.1} parent=55 // pred_check_branch
          %519 = sbr.rel (%p517) target = $region96
        $region95: #{tpu_custom_call.1} parent=55 // pred_region
          %520 = vst [vmem:[#allocation2] sm:$0xff] 0.0
          %521 = vst [vmem:[#allocation2 + $0x8] sm:$0xff] 0.0
          %522 = vst [vmem:[#allocation2 + $0x10] sm:$0xff] 0.0
          %523 = vst [vmem:[#allocation2 + $0x18] sm:$0xff] 0.0
        $region96: #{tpu_custom_call.1} parent=55 // pred_fallthru
          _
        %v524 = vld [vmem:[#allocation2] sm:$0xff]
        %v525 = vld [vmem:[#allocation2 + $0x8] sm:$0xff]
        %v526 = vld [vmem:[#allocation2 + $0x10] sm:$0xff]
        %v527 = vld [vmem:[#allocation2 + $0x18] sm:$0xff]
        %v528 = vld [vmem:[%s433] sm:$0xff]
        %v529 = vld [vmem:[%s433 + $0x8] sm:$0xff]
        %v530 = vld [vmem:[%s433 + $0x10] sm:$0xff]
        %v531 = vld [vmem:[%s448] sm:$0xff]
        %v532 = vld [vmem:[%s448 + $0x8] sm:$0xff]
        %v533 = vld [vmem:[%s448 + $0x10] sm:$0xff]
        %v534 = vld [vmem:[%s448 + $0x18] sm:$0xff]
        %v535 = vld [vmem:[%s448 + $0x20] sm:$0xff]
        %v536 = vld [vmem:[%s448 + $0x28] sm:$0xff]
        %v537 = vld [vmem:[%s448 + $0x30] sm:$0xff]
        %v538 = vld [vmem:[%s448 + $0x38] sm:$0xff]
        %v539 = vld [vmem:[%s448 + $0x40] sm:$0xff]
        %v540 = vld [vmem:[%s448 + $0x48] sm:$0xff]
        %v541 = vld [vmem:[%s448 + $0x50] sm:$0xff]
        %v542 = vld [vmem:[%s448 + $0x58] sm:$0xff]
        %v543 = vld [vmem:[%s448 + $0x60] sm:$0xff]
        %v544 = vld [vmem:[%s448 + $0x68] sm:$0xff]
        %v545 = vld [vmem:[%s448 + $0x70] sm:$0xff]
        %v546 = vld [vmem:[%s448 + $0x78] sm:$0xff]
        %v547 = vld [vmem:[%s448 + $0x80] sm:$0xff]
        %v548 = vld [vmem:[%s448 + $0x88] sm:$0xff]
        %v549 = vld [vmem:[%s448 + $0x90] sm:$0xff]
        %v550 = vld [vmem:[%s448 + $0x98] sm:$0xff]
        %v551 = vld [vmem:[%s448 + $0xa0] sm:$0xff]
        %v552 = vld [vmem:[%s448 + $0xa8] sm:$0xff]
        %v553 = vld [vmem:[%s448 + $0xb0] sm:$0xff]
        %v554 = vld [vmem:[%s448 + $0xb8] sm:$0xff]
        %v555 = vld [vmem:[%s448 + $0xc0] sm:$0xff]
        %v556 = vld [vmem:[%s448 + $0xc8] sm:$0xff]
        %v557 = vld [vmem:[%s448 + $0xd0] sm:$0xff]
        %v558 = vld [vmem:[%s448 + $0xd8] sm:$0xff]
        %v559 = vld [vmem:[%s448 + $0xe0] sm:$0xff]
        %v560 = vld [vmem:[%s448 + $0xe8] sm:$0xff]
        %v561 = vld [vmem:[%s448 + $0xf0] sm:$0xff]
        %v562 = vld [vmem:[%s448 + $0xf8] sm:$0xff]
        %v563 = vld [vmem:[%s448 + $0x100] sm:$0xff]
        %v564 = vld [vmem:[%s448 + $0x108] sm:$0xff]
        %v565 = vld [vmem:[%s448 + $0x110] sm:$0xff]
        %v566 = vld [vmem:[%s448 + $0x118] sm:$0xff]
        %v567 = vld [vmem:[%s448 + $0x120] sm:$0xff]
        %v568 = vld [vmem:[%s448 + $0x128] sm:$0xff]
        %v569 = vld [vmem:[%s448 + $0x130] sm:$0xff]
        %v570 = vld [vmem:[%s448 + $0x138] sm:$0xff]
        %v571 = vld [vmem:[%s448 + $0x140] sm:$0xff]
        %v572 = vld [vmem:[%s448 + $0x148] sm:$0xff]
        %v573 = vld [vmem:[%s448 + $0x150] sm:$0xff]
        %v574 = vld [vmem:[%s448 + $0x158] sm:$0xff]
        %v575 = vld [vmem:[%s448 + $0x160] sm:$0xff]
        %v576 = vld [vmem:[%s448 + $0x168] sm:$0xff]
        %v577 = vld [vmem:[%s448 + $0x170] sm:$0xff]
        %v578 = vld [vmem:[%s448 + $0x178] sm:$0xff]
        %v579 = vld [vmem:[%s448 + $0x180] sm:$0xff]
        %v580 = vld [vmem:[%s448 + $0x188] sm:$0xff]
        %v581 = vld [vmem:[%s448 + $0x190] sm:$0xff]
        %v582 = vld [vmem:[%s448 + $0x198] sm:$0xff]
        %v583 = vld [vmem:[%s448 + $0x1a0] sm:$0xff]
        %v584 = vld [vmem:[%s448 + $0x1a8] sm:$0xff]
        %v585 = vld [vmem:[%s448 + $0x1b0] sm:$0xff]
        %v586 = vld [vmem:[%s448 + $0x1b8] sm:$0xff]
        %v587 = vld [vmem:[%s448 + $0x1c0] sm:$0xff]
        %v588 = vld [vmem:[%s448 + $0x1c8] sm:$0xff]
        %v589 = vld [vmem:[%s448 + $0x1d0] sm:$0xff]
        %v590 = vld [vmem:[%s448 + $0x1d8] sm:$0xff]
        %v591 = vld [vmem:[%s448 + $0x1e0] sm:$0xff]
        %v592 = vld [vmem:[%s448 + $0x1e8] sm:$0xff]
        %v593 = vld [vmem:[%s448 + $0x1f0] sm:$0xff]
        %v594 = vld [vmem:[%s448 + $0x1f8] sm:$0xff]
        %v595 = vld [vmem:[%s448 + $0x200] sm:$0xff]
        %v596 = vld [vmem:[%s448 + $0x208] sm:$0xff]
        %v597 = vld [vmem:[%s448 + $0x210] sm:$0xff]
        %v598 = vld [vmem:[%s448 + $0x218] sm:$0xff]
        %v599 = vld [vmem:[%s448 + $0x220] sm:$0xff]
        %v600 = vld [vmem:[%s448 + $0x228] sm:$0xff]
        %v601 = vld [vmem:[%s448 + $0x230] sm:$0xff]
        %v602 = vld [vmem:[%s448 + $0x238] sm:$0xff]
        %v603 = vld [vmem:[%s448 + $0x240] sm:$0xff]
        %v604 = vld [vmem:[%s448 + $0x248] sm:$0xff]
        %v605 = vld [vmem:[%s448 + $0x250] sm:$0xff]
        %v606 = vld [vmem:[%s448 + $0x258] sm:$0xff]
        %v607 = vld [vmem:[%s448 + $0x260] sm:$0xff]
        %v608 = vld [vmem:[%s448 + $0x268] sm:$0xff]
        %v609 = vld [vmem:[%s448 + $0x270] sm:$0xff]
        %v610 = vld [vmem:[%s448 + $0x278] sm:$0xff]
        %v611 = vld [vmem:[%s448 + $0x280] sm:$0xff]
        %v612 = vld [vmem:[%s448 + $0x288] sm:$0xff]
        %v613 = vld [vmem:[%s448 + $0x290] sm:$0xff]
        %v614 = vld [vmem:[%s448 + $0x298] sm:$0xff]
        %v615 = vld [vmem:[%s448 + $0x2a0] sm:$0xff]
        %v616 = vld [vmem:[%s448 + $0x2a8] sm:$0xff]
        %v617 = vld [vmem:[%s448 + $0x2b0] sm:$0xff]
        %v618 = vld [vmem:[%s448 + $0x2b8] sm:$0xff]
        %v619 = vld [vmem:[%s448 + $0x2c0] sm:$0xff]
        %v620 = vld [vmem:[%s448 + $0x2c8] sm:$0xff]
        %v621 = vld [vmem:[%s448 + $0x2d0] sm:$0xff]
        %v622 = vld [vmem:[%s448 + $0x2d8] sm:$0xff]
        %v623 = vld [vmem:[%s448 + $0x2e0] sm:$0xff]
        %v624 = vld [vmem:[%s448 + $0x2e8] sm:$0xff]
        %v625 = vld [vmem:[%s448 + $0x2f0] sm:$0xff]
        %v626 = vld [vmem:[%s448 + $0x2f8] sm:$0xff]
        %v627 = vld [vmem:[%s448 + $0x300] sm:$0xff]
        %v628 = vld [vmem:[%s448 + $0x308] sm:$0xff]
        %v629 = vld [vmem:[%s448 + $0x310] sm:$0xff]
        %v630 = vld [vmem:[%s448 + $0x318] sm:$0xff]
        %v631 = vld [vmem:[%s448 + $0x320] sm:$0xff]
        %v632 = vld [vmem:[%s448 + $0x328] sm:$0xff]
        %v633 = vld [vmem:[%s448 + $0x330] sm:$0xff]
        %v634 = vld [vmem:[%s448 + $0x338] sm:$0xff]
        %v635 = vld [vmem:[%s448 + $0x340] sm:$0xff]
        %v636 = vld [vmem:[%s448 + $0x348] sm:$0xff]
        %v637 = vld [vmem:[%s448 + $0x350] sm:$0xff]
        %v638 = vld [vmem:[%s448 + $0x358] sm:$0xff]
        %v639 = vld [vmem:[%s448 + $0x360] sm:$0xff]
        %v640 = vld [vmem:[%s448 + $0x368] sm:$0xff]
        %v641 = vld [vmem:[%s448 + $0x370] sm:$0xff]
        %v642 = vld [vmem:[%s448 + $0x378] sm:$0xff]
        %v643 = vld [vmem:[%s448 + $0x380] sm:$0xff]
        %v644 = vld [vmem:[%s448 + $0x388] sm:$0xff]
        %v645 = vld [vmem:[%s448 + $0x390] sm:$0xff]
        %v646 = vld [vmem:[%s448 + $0x398] sm:$0xff]
        %v647 = vld [vmem:[%s448 + $0x3a0] sm:$0xff]
        %v648 = vld [vmem:[%s448 + $0x3a8] sm:$0xff]
        %v649 = vld [vmem:[%s448 + $0x3b0] sm:$0xff]
        %v650 = vld [vmem:[%s448 + $0x3b8] sm:$0xff]
        %v651 = vld [vmem:[%s448 + $0x3c0] sm:$0xff]
        %v652 = vld [vmem:[%s448 + $0x3c8] sm:$0xff]
        %v653 = vld [vmem:[%s448 + $0x3d0] sm:$0xff]
        %v654 = vld [vmem:[%s448 + $0x3d8] sm:$0xff]
        %v655 = vld [vmem:[%s448 + $0x3e0] sm:$0xff]
        %v656 = vld [vmem:[%s448 + $0x3e8] sm:$0xff]
        %v657 = vld [vmem:[%s448 + $0x3f0] sm:$0xff]
        %v658 = vld [vmem:[%s448 + $0x3f8] sm:$0xff]
        %v659 = vld [vmem:[%s448 + $0x400] sm:$0xff]
        %v660 = vld [vmem:[%s448 + $0x408] sm:$0xff]
        %v661 = vld [vmem:[%s448 + $0x410] sm:$0xff]
        %v662 = vld [vmem:[%s448 + $0x418] sm:$0xff]
        %v663 = vld [vmem:[%s448 + $0x420] sm:$0xff]
        %v664 = vld [vmem:[%s448 + $0x428] sm:$0xff]
        %v665 = vld [vmem:[%s448 + $0x430] sm:$0xff]
        %v666 = vld [vmem:[%s448 + $0x438] sm:$0xff]
        %v667 = vld [vmem:[%s448 + $0x440] sm:$0xff]
        %v668 = vld [vmem:[%s448 + $0x448] sm:$0xff]
        %v669 = vld [vmem:[%s448 + $0x450] sm:$0xff]
        %v670 = vld [vmem:[%s448 + $0x458] sm:$0xff]
        %v671 = vld [vmem:[%s448 + $0x460] sm:$0xff]
        %v672 = vld [vmem:[%s448 + $0x468] sm:$0xff]
        %v673 = vld [vmem:[%s448 + $0x470] sm:$0xff]
        %v674 = vld [vmem:[%s448 + $0x478] sm:$0xff]
        %v675 = vld [vmem:[%s448 + $0x480] sm:$0xff]
        %v676 = vld [vmem:[%s448 + $0x488] sm:$0xff]
        %v677 = vld [vmem:[%s448 + $0x490] sm:$0xff]
        %v678 = vld [vmem:[%s448 + $0x498] sm:$0xff]
        %v679 = vld [vmem:[%s448 + $0x4a0] sm:$0xff]
        %v680 = vld [vmem:[%s448 + $0x4a8] sm:$0xff]
        %v681 = vld [vmem:[%s448 + $0x4b0] sm:$0xff]
        %v682 = vld [vmem:[%s448 + $0x4b8] sm:$0xff]
        %v683 = vld [vmem:[%s448 + $0x4c0] sm:$0xff]
        %v684 = vld [vmem:[%s448 + $0x4c8] sm:$0xff]
        %v685 = vld [vmem:[%s448 + $0x4d0] sm:$0xff]
        %v686 = vld [vmem:[%s448 + $0x4d8] sm:$0xff]
        %v687 = vld [vmem:[%s448 + $0x4e0] sm:$0xff]
        %v688 = vld [vmem:[%s448 + $0x4e8] sm:$0xff]
        %v689 = vld [vmem:[%s448 + $0x4f0] sm:$0xff]
        %v690 = vld [vmem:[%s448 + $0x4f8] sm:$0xff]
        %v691 = vld [vmem:[%s448 + $0x500] sm:$0xff]
        %v692 = vld [vmem:[%s448 + $0x508] sm:$0xff]
        %v693 = vld [vmem:[%s448 + $0x510] sm:$0xff]
        %v694 = vld [vmem:[%s448 + $0x518] sm:$0xff]
        %v695 = vld [vmem:[%s448 + $0x520] sm:$0xff]
        %v696 = vld [vmem:[%s448 + $0x528] sm:$0xff]
        %v697 = vld [vmem:[%s448 + $0x530] sm:$0xff]
        %v698 = vld [vmem:[%s448 + $0x538] sm:$0xff]
        %v699 = vld [vmem:[%s448 + $0x540] sm:$0xff]
        %v700 = vld [vmem:[%s448 + $0x548] sm:$0xff]
        %v701 = vld [vmem:[%s448 + $0x550] sm:$0xff]
        %v702 = vld [vmem:[%s448 + $0x558] sm:$0xff]
        %v703 = vld [vmem:[%s448 + $0x560] sm:$0xff]
        %v704 = vld [vmem:[%s448 + $0x568] sm:$0xff]
        %v705 = vld [vmem:[%s448 + $0x570] sm:$0xff]
        %v706 = vld [vmem:[%s448 + $0x578] sm:$0xff]
        %v707 = vld [vmem:[%s448 + $0x580] sm:$0xff]
        %v708 = vld [vmem:[%s448 + $0x588] sm:$0xff]
        %v709 = vld [vmem:[%s448 + $0x590] sm:$0xff]
        %v710 = vld [vmem:[%s448 + $0x598] sm:$0xff]
        %v711 = vld [vmem:[%s448 + $0x5a0] sm:$0xff]
        %v712 = vld [vmem:[%s448 + $0x5a8] sm:$0xff]
        %v713 = vld [vmem:[%s448 + $0x5b0] sm:$0xff]
        %v714 = vld [vmem:[%s448 + $0x5b8] sm:$0xff]
        %v715 = vld [vmem:[%s448 + $0x5c0] sm:$0xff]
        %v716 = vld [vmem:[%s448 + $0x5c8] sm:$0xff]
        %v717 = vld [vmem:[%s448 + $0x5d0] sm:$0xff]
        %v718 = vld [vmem:[%s448 + $0x5d8] sm:$0xff]
        %v719 = vld [vmem:[%s448 + $0x5e0] sm:$0xff]
        %v720 = vld [vmem:[%s448 + $0x5e8] sm:$0xff]
        %v721 = vld [vmem:[%s448 + $0x5f0] sm:$0xff]
        %v722 = vld [vmem:[%s448 + $0x5f8] sm:$0xff]
        %v726 = vunpack.c.l.b16 %v528
        %v727 = vunpack.c.h.b16 %v528
        %v728 = vunpack.c.l.b16 %v529
        %v729 = vunpack.c.h.b16 %v529
        %v730 = vunpack.c.l.b16 %v530
        %v731 = vunpack.c.h.b16 %v530
        %v732 = vpack.c.b16 %v726, %v726
        %v733 = vpack.c.b16 %v727, %v727
        %v734 = vpack.c.b16 %v728, %v728
        %v735 = vpack.c.b16 %v729, %v729
        %v736 = vpack.c.b16 %v730, %v730
        %v737 = vpack.c.b16 %v731, %v731
        %v936 = vunpack.c.l.b16 %v531
        %v937 = vunpack.c.h.b16 %v531
        %v938 = vunpack.c.l.b16 %v532
        %v939 = vunpack.c.h.b16 %v532
        %v940 = vunpack.c.l.b16 %v533
        %v941 = vunpack.c.h.b16 %v533
        %v942 = vunpack.c.l.b16 %v534
        %v943 = vunpack.c.h.b16 %v534
        %v944 = vunpack.c.l.b16 %v535
        %v945 = vunpack.c.h.b16 %v535
        %v946 = vunpack.c.l.b16 %v536
        %v947 = vunpack.c.h.b16 %v536
        %v948 = vunpack.c.l.b16 %v537
        %v949 = vunpack.c.h.b16 %v537
        %v950 = vunpack.c.l.b16 %v538
        %v951 = vunpack.c.h.b16 %v538
        %v952 = vunpack.c.l.b16 %v539
        %v953 = vunpack.c.h.b16 %v539
        %v954 = vunpack.c.l.b16 %v540
        %v955 = vunpack.c.h.b16 %v540
        %v956 = vunpack.c.l.b16 %v541
        %v957 = vunpack.c.h.b16 %v541
        %v958 = vunpack.c.l.b16 %v542
        %v959 = vunpack.c.h.b16 %v542
        %v960 = vunpack.c.l.b16 %v543
        %v961 = vunpack.c.h.b16 %v543
        %v962 = vunpack.c.l.b16 %v544
        %v963 = vunpack.c.h.b16 %v544
        %v964 = vunpack.c.l.b16 %v545
        %v965 = vunpack.c.h.b16 %v545
        %v966 = vunpack.c.l.b16 %v546
        %v967 = vunpack.c.h.b16 %v546
        %v968 = vunpack.c.l.b16 %v547
        %v969 = vunpack.c.h.b16 %v547
        %v970 = vunpack.c.l.b16 %v548
        %v971 = vunpack.c.h.b16 %v548
        %v972 = vunpack.c.l.b16 %v549
        %v973 = vunpack.c.h.b16 %v549
        %v974 = vunpack.c.l.b16 %v550
        %v975 = vunpack.c.h.b16 %v550
        %v976 = vunpack.c.l.b16 %v551
        %v977 = vunpack.c.h.b16 %v551
        %v978 = vunpack.c.l.b16 %v552
        %v979 = vunpack.c.h.b16 %v552
        %v980 = vunpack.c.l.b16 %v553
        %v981 = vunpack.c.h.b16 %v553
        %v982 = vunpack.c.l.b16 %v554
        %v983 = vunpack.c.h.b16 %v554
        %v984 = vunpack.c.l.b16 %v555
        %v985 = vunpack.c.h.b16 %v555
        %v986 = vunpack.c.l.b16 %v556
        %v987 = vunpack.c.h.b16 %v556
        %v988 = vunpack.c.l.b16 %v557
        %v989 = vunpack.c.h.b16 %v557
        %v990 = vunpack.c.l.b16 %v558
        %v991 = vunpack.c.h.b16 %v558
        %v992 = vunpack.c.l.b16 %v559
        %v993 = vunpack.c.h.b16 %v559
        %v994 = vunpack.c.l.b16 %v560
        %v995 = vunpack.c.h.b16 %v560
        %v996 = vunpack.c.l.b16 %v561
        %v997 = vunpack.c.h.b16 %v561
        %v998 = vunpack.c.l.b16 %v562
        %v999 = vunpack.c.h.b16 %v562
        %v1000 = vunpack.c.l.b16 %v563
        %v1001 = vunpack.c.h.b16 %v563
        %v1002 = vunpack.c.l.b16 %v564
        %v1003 = vunpack.c.h.b16 %v564
        %v1004 = vunpack.c.l.b16 %v565
        %v1005 = vunpack.c.h.b16 %v565
        %v1006 = vunpack.c.l.b16 %v566
        %v1007 = vunpack.c.h.b16 %v566
        %v1008 = vunpack.c.l.b16 %v567
        %v1009 = vunpack.c.h.b16 %v567
        %v1010 = vunpack.c.l.b16 %v568
        %v1011 = vunpack.c.h.b16 %v568
        %v1012 = vunpack.c.l.b16 %v569
        %v1013 = vunpack.c.h.b16 %v569
        %v1014 = vunpack.c.l.b16 %v570
        %v1015 = vunpack.c.h.b16 %v570
        %v1016 = vunpack.c.l.b16 %v571
        %v1017 = vunpack.c.h.b16 %v571
        %v1018 = vunpack.c.l.b16 %v572
        %v1019 = vunpack.c.h.b16 %v572
        %v1020 = vunpack.c.l.b16 %v573
        %v1021 = vunpack.c.h.b16 %v573
        %v1022 = vunpack.c.l.b16 %v574
        %v1023 = vunpack.c.h.b16 %v574
        %v1024 = vunpack.c.l.b16 %v575
        %v1025 = vunpack.c.h.b16 %v575
        %v1026 = vunpack.c.l.b16 %v576
        %v1027 = vunpack.c.h.b16 %v576
        %v1028 = vunpack.c.l.b16 %v577
        %v1029 = vunpack.c.h.b16 %v577
        %v1030 = vunpack.c.l.b16 %v578
        %v1031 = vunpack.c.h.b16 %v578
        %v1032 = vunpack.c.l.b16 %v579
        %v1033 = vunpack.c.h.b16 %v579
        %v1034 = vunpack.c.l.b16 %v580
        %v1035 = vunpack.c.h.b16 %v580
        %v1036 = vunpack.c.l.b16 %v581
        %v1037 = vunpack.c.h.b16 %v581
        %v1038 = vunpack.c.l.b16 %v582
        %v1039 = vunpack.c.h.b16 %v582
        %v1040 = vunpack.c.l.b16 %v583
        %v1041 = vunpack.c.h.b16 %v583
        %v1042 = vunpack.c.l.b16 %v584
        %v1043 = vunpack.c.h.b16 %v584
        %v1044 = vunpack.c.l.b16 %v585
        %v1045 = vunpack.c.h.b16 %v585
        %v1046 = vunpack.c.l.b16 %v586
        %v1047 = vunpack.c.h.b16 %v586
        %v1048 = vunpack.c.l.b16 %v587
        %v1049 = vunpack.c.h.b16 %v587
        %v1050 = vunpack.c.l.b16 %v588
        %v1051 = vunpack.c.h.b16 %v588
        %v1052 = vunpack.c.l.b16 %v589
        %v1053 = vunpack.c.h.b16 %v589
        %v1054 = vunpack.c.l.b16 %v590
        %v1055 = vunpack.c.h.b16 %v590
        %v1056 = vunpack.c.l.b16 %v591
        %v1057 = vunpack.c.h.b16 %v591
        %v1058 = vunpack.c.l.b16 %v592
        %v1059 = vunpack.c.h.b16 %v592
        %v1060 = vunpack.c.l.b16 %v593
        %v1061 = vunpack.c.h.b16 %v593
        %v1062 = vunpack.c.l.b16 %v594
        %v1063 = vunpack.c.h.b16 %v594
        %v1064 = vunpack.c.l.b16 %v595
        %v1065 = vunpack.c.h.b16 %v595
        %v1066 = vunpack.c.l.b16 %v596
        %v1067 = vunpack.c.h.b16 %v596
        %v1068 = vunpack.c.l.b16 %v597
        %v1069 = vunpack.c.h.b16 %v597
        %v1070 = vunpack.c.l.b16 %v598
        %v1071 = vunpack.c.h.b16 %v598
        %v1072 = vunpack.c.l.b16 %v599
        %v1073 = vunpack.c.h.b16 %v599
        %v1074 = vunpack.c.l.b16 %v600
        %v1075 = vunpack.c.h.b16 %v600
        %v1076 = vunpack.c.l.b16 %v601
        %v1077 = vunpack.c.h.b16 %v601
        %v1078 = vunpack.c.l.b16 %v602
        %v1079 = vunpack.c.h.b16 %v602
        %v1080 = vunpack.c.l.b16 %v603
        %v1081 = vunpack.c.h.b16 %v603
        %v1082 = vunpack.c.l.b16 %v604
        %v1083 = vunpack.c.h.b16 %v604
        %v1084 = vunpack.c.l.b16 %v605
        %v1085 = vunpack.c.h.b16 %v605
        %v1086 = vunpack.c.l.b16 %v606
        %v1087 = vunpack.c.h.b16 %v606
        %v1088 = vunpack.c.l.b16 %v607
        %v1089 = vunpack.c.h.b16 %v607
        %v1090 = vunpack.c.l.b16 %v608
        %v1091 = vunpack.c.h.b16 %v608
        %v1092 = vunpack.c.l.b16 %v609
        %v1093 = vunpack.c.h.b16 %v609
        %v1094 = vunpack.c.l.b16 %v610
        %v1095 = vunpack.c.h.b16 %v610
        %v1096 = vunpack.c.l.b16 %v611
        %v1097 = vunpack.c.h.b16 %v611
        %v1098 = vunpack.c.l.b16 %v612
        %v1099 = vunpack.c.h.b16 %v612
        %v1100 = vunpack.c.l.b16 %v613
        %v1101 = vunpack.c.h.b16 %v613
        %v1102 = vunpack.c.l.b16 %v614
        %v1103 = vunpack.c.h.b16 %v614
        %v1104 = vunpack.c.l.b16 %v615
        %v1105 = vunpack.c.h.b16 %v615
        %v1106 = vunpack.c.l.b16 %v616
        %v1107 = vunpack.c.h.b16 %v616
        %v1108 = vunpack.c.l.b16 %v617
        %v1109 = vunpack.c.h.b16 %v617
        %v1110 = vunpack.c.l.b16 %v618
        %v1111 = vunpack.c.h.b16 %v618
        %v1112 = vunpack.c.l.b16 %v619
        %v1113 = vunpack.c.h.b16 %v619
        %v1114 = vunpack.c.l.b16 %v620
        %v1115 = vunpack.c.h.b16 %v620
        %v1116 = vunpack.c.l.b16 %v621
        %v1117 = vunpack.c.h.b16 %v621
        %v1118 = vunpack.c.l.b16 %v622
        %v1119 = vunpack.c.h.b16 %v622
        %v1120 = vunpack.c.l.b16 %v623
        %v1121 = vunpack.c.h.b16 %v623
        %v1122 = vunpack.c.l.b16 %v624
        %v1123 = vunpack.c.h.b16 %v624
        %v1124 = vunpack.c.l.b16 %v625
        %v1125 = vunpack.c.h.b16 %v625
        %v1126 = vunpack.c.l.b16 %v626
        %v1127 = vunpack.c.h.b16 %v626
        %v1128 = vunpack.c.l.b16 %v627
        %v1129 = vunpack.c.h.b16 %v627
        %v1130 = vunpack.c.l.b16 %v628
        %v1131 = vunpack.c.h.b16 %v628
        %v1132 = vunpack.c.l.b16 %v629
        %v1133 = vunpack.c.h.b16 %v629
        %v1134 = vunpack.c.l.b16 %v630
        %v1135 = vunpack.c.h.b16 %v630
        %v1136 = vunpack.c.l.b16 %v631
        %v1137 = vunpack.c.h.b16 %v631
        %v1138 = vunpack.c.l.b16 %v632
        %v1139 = vunpack.c.h.b16 %v632
        %v1140 = vunpack.c.l.b16 %v633
        %v1141 = vunpack.c.h.b16 %v633
        %v1142 = vunpack.c.l.b16 %v634
        %v1143 = vunpack.c.h.b16 %v634
        %v1144 = vunpack.c.l.b16 %v635
        %v1145 = vunpack.c.h.b16 %v635
        %v1146 = vunpack.c.l.b16 %v636
        %v1147 = vunpack.c.h.b16 %v636
        %v1148 = vunpack.c.l.b16 %v637
        %v1149 = vunpack.c.h.b16 %v637
        %v1150 = vunpack.c.l.b16 %v638
        %v1151 = vunpack.c.h.b16 %v638
        %v1152 = vunpack.c.l.b16 %v639
        %v1153 = vunpack.c.h.b16 %v639
        %v1154 = vunpack.c.l.b16 %v640
        %v1155 = vunpack.c.h.b16 %v640
        %v1156 = vunpack.c.l.b16 %v641
        %v1157 = vunpack.c.h.b16 %v641
        %v1158 = vunpack.c.l.b16 %v642
        %v1159 = vunpack.c.h.b16 %v642
        %v1160 = vunpack.c.l.b16 %v643
        %v1161 = vunpack.c.h.b16 %v643
        %v1162 = vunpack.c.l.b16 %v644
        %v1163 = vunpack.c.h.b16 %v644
        %v1164 = vunpack.c.l.b16 %v645
        %v1165 = vunpack.c.h.b16 %v645
        %v1166 = vunpack.c.l.b16 %v646
        %v1167 = vunpack.c.h.b16 %v646
        %v1168 = vunpack.c.l.b16 %v647
        %v1169 = vunpack.c.h.b16 %v647
        %v1170 = vunpack.c.l.b16 %v648
        %v1171 = vunpack.c.h.b16 %v648
        %v1172 = vunpack.c.l.b16 %v649
        %v1173 = vunpack.c.h.b16 %v649
        %v1174 = vunpack.c.l.b16 %v650
        %v1175 = vunpack.c.h.b16 %v650
        %v1176 = vunpack.c.l.b16 %v651
        %v1177 = vunpack.c.h.b16 %v651
        %v1178 = vunpack.c.l.b16 %v652
        %v1179 = vunpack.c.h.b16 %v652
        %v1180 = vunpack.c.l.b16 %v653
        %v1181 = vunpack.c.h.b16 %v653
        %v1182 = vunpack.c.l.b16 %v654
        %v1183 = vunpack.c.h.b16 %v654
        %v1184 = vunpack.c.l.b16 %v655
        %v1185 = vunpack.c.h.b16 %v655
        %v1186 = vunpack.c.l.b16 %v656
        %v1187 = vunpack.c.h.b16 %v656
        %v1188 = vunpack.c.l.b16 %v657
        %v1189 = vunpack.c.h.b16 %v657
        %v1190 = vunpack.c.l.b16 %v658
        %v1191 = vunpack.c.h.b16 %v658
        %v1192 = vunpack.c.l.b16 %v659
        %v1193 = vunpack.c.h.b16 %v659
        %v1194 = vunpack.c.l.b16 %v660
        %v1195 = vunpack.c.h.b16 %v660
        %v1196 = vunpack.c.l.b16 %v661
        %v1197 = vunpack.c.h.b16 %v661
        %v1198 = vunpack.c.l.b16 %v662
        %v1199 = vunpack.c.h.b16 %v662
        %v1200 = vunpack.c.l.b16 %v663
        %v1201 = vunpack.c.h.b16 %v663
        %v1202 = vunpack.c.l.b16 %v664
        %v1203 = vunpack.c.h.b16 %v664
        %v1204 = vunpack.c.l.b16 %v665
        %v1205 = vunpack.c.h.b16 %v665
        %v1206 = vunpack.c.l.b16 %v666
        %v1207 = vunpack.c.h.b16 %v666
        %v1208 = vunpack.c.l.b16 %v667
        %v1209 = vunpack.c.h.b16 %v667
        %v1210 = vunpack.c.l.b16 %v668
        %v1211 = vunpack.c.h.b16 %v668
        %v1212 = vunpack.c.l.b16 %v669
        %v1213 = vunpack.c.h.b16 %v669
        %v1214 = vunpack.c.l.b16 %v670
        %v1215 = vunpack.c.h.b16 %v670
        %v1216 = vunpack.c.l.b16 %v671
        %v1217 = vunpack.c.h.b16 %v671
        %v1218 = vunpack.c.l.b16 %v672
        %v1219 = vunpack.c.h.b16 %v672
        %v1220 = vunpack.c.l.b16 %v673
        %v1221 = vunpack.c.h.b16 %v673
        %v1222 = vunpack.c.l.b16 %v674
        %v1223 = vunpack.c.h.b16 %v674
        %v1224 = vunpack.c.l.b16 %v675
        %v1225 = vunpack.c.h.b16 %v675
        %v1226 = vunpack.c.l.b16 %v676
        %v1227 = vunpack.c.h.b16 %v676
        %v1228 = vunpack.c.l.b16 %v677
        %v1229 = vunpack.c.h.b16 %v677
        %v1230 = vunpack.c.l.b16 %v678
        %v1231 = vunpack.c.h.b16 %v678
        %v1232 = vunpack.c.l.b16 %v679
        %v1233 = vunpack.c.h.b16 %v679
        %v1234 = vunpack.c.l.b16 %v680
        %v1235 = vunpack.c.h.b16 %v680
        %v1236 = vunpack.c.l.b16 %v681
        %v1237 = vunpack.c.h.b16 %v681
        %v1238 = vunpack.c.l.b16 %v682
        %v1239 = vunpack.c.h.b16 %v682
        %v1240 = vunpack.c.l.b16 %v683
        %v1241 = vunpack.c.h.b16 %v683
        %v1242 = vunpack.c.l.b16 %v684
        %v1243 = vunpack.c.h.b16 %v684
        %v1244 = vunpack.c.l.b16 %v685
        %v1245 = vunpack.c.h.b16 %v685
        %v1246 = vunpack.c.l.b16 %v686
        %v1247 = vunpack.c.h.b16 %v686
        %v1248 = vunpack.c.l.b16 %v687
        %v1249 = vunpack.c.h.b16 %v687
        %v1250 = vunpack.c.l.b16 %v688
        %v1251 = vunpack.c.h.b16 %v688
        %v1252 = vunpack.c.l.b16 %v689
        %v1253 = vunpack.c.h.b16 %v689
        %v1254 = vunpack.c.l.b16 %v690
        %v1255 = vunpack.c.h.b16 %v690
        %v1256 = vunpack.c.l.b16 %v691
        %v1257 = vunpack.c.h.b16 %v691
        %v1258 = vunpack.c.l.b16 %v692
        %v1259 = vunpack.c.h.b16 %v692
        %v1260 = vunpack.c.l.b16 %v693
        %v1261 = vunpack.c.h.b16 %v693
        %v1262 = vunpack.c.l.b16 %v694
        %v1263 = vunpack.c.h.b16 %v694
        %v1264 = vunpack.c.l.b16 %v695
        %v1265 = vunpack.c.h.b16 %v695
        %v1266 = vunpack.c.l.b16 %v696
        %v1267 = vunpack.c.h.b16 %v696
        %v1268 = vunpack.c.l.b16 %v697
        %v1269 = vunpack.c.h.b16 %v697
        %v1270 = vunpack.c.l.b16 %v698
        %v1271 = vunpack.c.h.b16 %v698
        %v1272 = vunpack.c.l.b16 %v699
        %v1273 = vunpack.c.h.b16 %v699
        %v1274 = vunpack.c.l.b16 %v700
        %v1275 = vunpack.c.h.b16 %v700
        %v1276 = vunpack.c.l.b16 %v701
        %v1277 = vunpack.c.h.b16 %v701
        %v1278 = vunpack.c.l.b16 %v702
        %v1279 = vunpack.c.h.b16 %v702
        %v1280 = vunpack.c.l.b16 %v703
        %v1281 = vunpack.c.h.b16 %v703
        %v1282 = vunpack.c.l.b16 %v704
        %v1283 = vunpack.c.h.b16 %v704
        %v1284 = vunpack.c.l.b16 %v705
        %v1285 = vunpack.c.h.b16 %v705
        %v1286 = vunpack.c.l.b16 %v706
        %v1287 = vunpack.c.h.b16 %v706
        %v1288 = vunpack.c.l.b16 %v707
        %v1289 = vunpack.c.h.b16 %v707
        %v1290 = vunpack.c.l.b16 %v708
        %v1291 = vunpack.c.h.b16 %v708
        %v1292 = vunpack.c.l.b16 %v709
        %v1293 = vunpack.c.h.b16 %v709
        %v1294 = vunpack.c.l.b16 %v710
        %v1295 = vunpack.c.h.b16 %v710
        %v1296 = vunpack.c.l.b16 %v711
        %v1297 = vunpack.c.h.b16 %v711
        %v1298 = vunpack.c.l.b16 %v712
        %v1299 = vunpack.c.h.b16 %v712
        %v1300 = vunpack.c.l.b16 %v713
        %v1301 = vunpack.c.h.b16 %v713
        %v1302 = vunpack.c.l.b16 %v714
        %v1303 = vunpack.c.h.b16 %v714
        %v1304 = vunpack.c.l.b16 %v715
        %v1305 = vunpack.c.h.b16 %v715
        %v1306 = vunpack.c.l.b16 %v716
        %v1307 = vunpack.c.h.b16 %v716
        %v1308 = vunpack.c.l.b16 %v717
        %v1309 = vunpack.c.h.b16 %v717
        %v1310 = vunpack.c.l.b16 %v718
        %v1311 = vunpack.c.h.b16 %v718
        %v1312 = vunpack.c.l.b16 %v719
        %v1313 = vunpack.c.h.b16 %v719
        %v1314 = vunpack.c.l.b16 %v720
        %v1315 = vunpack.c.h.b16 %v720
        %v1316 = vunpack.c.l.b16 %v721
        %v1317 = vunpack.c.h.b16 %v721
        %v1318 = vunpack.c.l.b16 %v722
        %v1319 = vunpack.c.h.b16 %v722
        %v1320 = vpack.c.b16 %v940, %v936
        %v1321 = vpack.c.b16 %v941, %v937
        %v1322 = vpack.c.b16 %v942, %v938
        %v1323 = vpack.c.b16 %v943, %v939
        %v1324 = vpack.c.b16 %v948, %v944
        %v1325 = vpack.c.b16 %v949, %v945
        %v1326 = vpack.c.b16 %v950, %v946
        %v1327 = vpack.c.b16 %v951, %v947
        %v1328 = vpack.c.b16 %v956, %v952
        %v1329 = vpack.c.b16 %v957, %v953
        %v1330 = vpack.c.b16 %v958, %v954
        %v1331 = vpack.c.b16 %v959, %v955
        %v1332 = vpack.c.b16 %v964, %v960
        %v1333 = vpack.c.b16 %v965, %v961
        %v1334 = vpack.c.b16 %v966, %v962
        %v1335 = vpack.c.b16 %v967, %v963
        %v1336 = vpack.c.b16 %v972, %v968
        %v1337 = vpack.c.b16 %v973, %v969
        %v1338 = vpack.c.b16 %v974, %v970
        %v1339 = vpack.c.b16 %v975, %v971
        %v1340 = vpack.c.b16 %v980, %v976
        %v1341 = vpack.c.b16 %v981, %v977
        %v1342 = vpack.c.b16 %v982, %v978
        %v1343 = vpack.c.b16 %v983, %v979
        %v1344 = vpack.c.b16 %v988, %v984
        %v1345 = vpack.c.b16 %v989, %v985
        %v1346 = vpack.c.b16 %v990, %v986
        %v1347 = vpack.c.b16 %v991, %v987
        %v1348 = vpack.c.b16 %v996, %v992
        %v1349 = vpack.c.b16 %v997, %v993
        %v1350 = vpack.c.b16 %v998, %v994
        %v1351 = vpack.c.b16 %v999, %v995
        %v1352 = vpack.c.b16 %v1004, %v1000
        %v1353 = vpack.c.b16 %v1005, %v1001
        %v1354 = vpack.c.b16 %v1006, %v1002
        %v1355 = vpack.c.b16 %v1007, %v1003
        %v1356 = vpack.c.b16 %v1012, %v1008
        %v1357 = vpack.c.b16 %v1013, %v1009
        %v1358 = vpack.c.b16 %v1014, %v1010
        %v1359 = vpack.c.b16 %v1015, %v1011
        %v1360 = vpack.c.b16 %v1020, %v1016
        %v1361 = vpack.c.b16 %v1021, %v1017
        %v1362 = vpack.c.b16 %v1022, %v1018
        %v1363 = vpack.c.b16 %v1023, %v1019
        %v1364 = vpack.c.b16 %v1028, %v1024
        %v1365 = vpack.c.b16 %v1029, %v1025
        %v1366 = vpack.c.b16 %v1030, %v1026
        %v1367 = vpack.c.b16 %v1031, %v1027
        %v1368 = vpack.c.b16 %v1036, %v1032
        %v1369 = vpack.c.b16 %v1037, %v1033
        %v1370 = vpack.c.b16 %v1038, %v1034
        %v1371 = vpack.c.b16 %v1039, %v1035
        %v1372 = vpack.c.b16 %v1044, %v1040
        %v1373 = vpack.c.b16 %v1045, %v1041
        %v1374 = vpack.c.b16 %v1046, %v1042
        %v1375 = vpack.c.b16 %v1047, %v1043
        %v1376 = vpack.c.b16 %v1052, %v1048
        %v1377 = vpack.c.b16 %v1053, %v1049
        %v1378 = vpack.c.b16 %v1054, %v1050
        %v1379 = vpack.c.b16 %v1055, %v1051
        %v1380 = vpack.c.b16 %v1060, %v1056
        %v1381 = vpack.c.b16 %v1061, %v1057
        %v1382 = vpack.c.b16 %v1062, %v1058
        %v1383 = vpack.c.b16 %v1063, %v1059
        %v1384 = vpack.c.b16 %v1068, %v1064
        %v1385 = vpack.c.b16 %v1069, %v1065
        %v1386 = vpack.c.b16 %v1070, %v1066
        %v1387 = vpack.c.b16 %v1071, %v1067
        %v1388 = vpack.c.b16 %v1076, %v1072
        %v1389 = vpack.c.b16 %v1077, %v1073
        %v1390 = vpack.c.b16 %v1078, %v1074
        %v1391 = vpack.c.b16 %v1079, %v1075
        %v1392 = vpack.c.b16 %v1084, %v1080
        %v1393 = vpack.c.b16 %v1085, %v1081
        %v1394 = vpack.c.b16 %v1086, %v1082
        %v1395 = vpack.c.b16 %v1087, %v1083
        %v1396 = vpack.c.b16 %v1092, %v1088
        %v1397 = vpack.c.b16 %v1093, %v1089
        %v1398 = vpack.c.b16 %v1094, %v1090
        %v1399 = vpack.c.b16 %v1095, %v1091
        %v1400 = vpack.c.b16 %v1100, %v1096
        %v1401 = vpack.c.b16 %v1101, %v1097
        %v1402 = vpack.c.b16 %v1102, %v1098
        %v1403 = vpack.c.b16 %v1103, %v1099
        %v1404 = vpack.c.b16 %v1108, %v1104
        %v1405 = vpack.c.b16 %v1109, %v1105
        %v1406 = vpack.c.b16 %v1110, %v1106
        %v1407 = vpack.c.b16 %v1111, %v1107
        %v1408 = vpack.c.b16 %v1116, %v1112
        %v1409 = vpack.c.b16 %v1117, %v1113
        %v1410 = vpack.c.b16 %v1118, %v1114
        %v1411 = vpack.c.b16 %v1119, %v1115
        %v1412 = vpack.c.b16 %v1124, %v1120
        %v1413 = vpack.c.b16 %v1125, %v1121
        %v1414 = vpack.c.b16 %v1126, %v1122
        %v1415 = vpack.c.b16 %v1127, %v1123
        %v1416 = vpack.c.b16 %v1132, %v1128
        %v1417 = vpack.c.b16 %v1133, %v1129
        %v1418 = vpack.c.b16 %v1134, %v1130
        %v1419 = vpack.c.b16 %v1135, %v1131
        %v1420 = vpack.c.b16 %v1140, %v1136
        %v1421 = vpack.c.b16 %v1141, %v1137
        %v1422 = vpack.c.b16 %v1142, %v1138
        %v1423 = vpack.c.b16 %v1143, %v1139
        %v1424 = vpack.c.b16 %v1148, %v1144
        %v1425 = vpack.c.b16 %v1149, %v1145
        %v1426 = vpack.c.b16 %v1150, %v1146
        %v1427 = vpack.c.b16 %v1151, %v1147
        %v1428 = vpack.c.b16 %v1156, %v1152
        %v1429 = vpack.c.b16 %v1157, %v1153
        %v1430 = vpack.c.b16 %v1158, %v1154
        %v1431 = vpack.c.b16 %v1159, %v1155
        %v1432 = vpack.c.b16 %v1164, %v1160
        %v1433 = vpack.c.b16 %v1165, %v1161
        %v1434 = vpack.c.b16 %v1166, %v1162
        %v1435 = vpack.c.b16 %v1167, %v1163
        %v1436 = vpack.c.b16 %v1172, %v1168
        %v1437 = vpack.c.b16 %v1173, %v1169
        %v1438 = vpack.c.b16 %v1174, %v1170
        %v1439 = vpack.c.b16 %v1175, %v1171
        %v1440 = vpack.c.b16 %v1180, %v1176
        %v1441 = vpack.c.b16 %v1181, %v1177
        %v1442 = vpack.c.b16 %v1182, %v1178
        %v1443 = vpack.c.b16 %v1183, %v1179
        %v1444 = vpack.c.b16 %v1188, %v1184
        %v1445 = vpack.c.b16 %v1189, %v1185
        %v1446 = vpack.c.b16 %v1190, %v1186
        %v1447 = vpack.c.b16 %v1191, %v1187
        %v1448 = vpack.c.b16 %v1196, %v1192
        %v1449 = vpack.c.b16 %v1197, %v1193
        %v1450 = vpack.c.b16 %v1198, %v1194
        %v1451 = vpack.c.b16 %v1199, %v1195
        %v1452 = vpack.c.b16 %v1204, %v1200
        %v1453 = vpack.c.b16 %v1205, %v1201
        %v1454 = vpack.c.b16 %v1206, %v1202
        %v1455 = vpack.c.b16 %v1207, %v1203
        %v1456 = vpack.c.b16 %v1212, %v1208
        %v1457 = vpack.c.b16 %v1213, %v1209
        %v1458 = vpack.c.b16 %v1214, %v1210
        %v1459 = vpack.c.b16 %v1215, %v1211
        %v1460 = vpack.c.b16 %v1220, %v1216
        %v1461 = vpack.c.b16 %v1221, %v1217
        %v1462 = vpack.c.b16 %v1222, %v1218
        %v1463 = vpack.c.b16 %v1223, %v1219
        %v1464 = vpack.c.b16 %v1228, %v1224
        %v1465 = vpack.c.b16 %v1229, %v1225
        %v1466 = vpack.c.b16 %v1230, %v1226
        %v1467 = vpack.c.b16 %v1231, %v1227
        %v1468 = vpack.c.b16 %v1236, %v1232
        %v1469 = vpack.c.b16 %v1237, %v1233
        %v1470 = vpack.c.b16 %v1238, %v1234
        %v1471 = vpack.c.b16 %v1239, %v1235
        %v1472 = vpack.c.b16 %v1244, %v1240
        %v1473 = vpack.c.b16 %v1245, %v1241
        %v1474 = vpack.c.b16 %v1246, %v1242
        %v1475 = vpack.c.b16 %v1247, %v1243
        %v1476 = vpack.c.b16 %v1252, %v1248
        %v1477 = vpack.c.b16 %v1253, %v1249
        %v1478 = vpack.c.b16 %v1254, %v1250
        %v1479 = vpack.c.b16 %v1255, %v1251
        %v1480 = vpack.c.b16 %v1260, %v1256
        %v1481 = vpack.c.b16 %v1261, %v1257
        %v1482 = vpack.c.b16 %v1262, %v1258
        %v1483 = vpack.c.b16 %v1263, %v1259
        %v1484 = vpack.c.b16 %v1268, %v1264
        %v1485 = vpack.c.b16 %v1269, %v1265
        %v1486 = vpack.c.b16 %v1270, %v1266
        %v1487 = vpack.c.b16 %v1271, %v1267
        %v1488 = vpack.c.b16 %v1276, %v1272
        %v1489 = vpack.c.b16 %v1277, %v1273
        %v1490 = vpack.c.b16 %v1278, %v1274
        %v1491 = vpack.c.b16 %v1279, %v1275
        %v1492 = vpack.c.b16 %v1284, %v1280
        %v1493 = vpack.c.b16 %v1285, %v1281
        %v1494 = vpack.c.b16 %v1286, %v1282
        %v1495 = vpack.c.b16 %v1287, %v1283
        %v1496 = vpack.c.b16 %v1292, %v1288
        %v1497 = vpack.c.b16 %v1293, %v1289
        %v1498 = vpack.c.b16 %v1294, %v1290
        %v1499 = vpack.c.b16 %v1295, %v1291
        %v1500 = vpack.c.b16 %v1300, %v1296
        %v1501 = vpack.c.b16 %v1301, %v1297
        %v1502 = vpack.c.b16 %v1302, %v1298
        %v1503 = vpack.c.b16 %v1303, %v1299
        %v1504 = vpack.c.b16 %v1308, %v1304
        %v1505 = vpack.c.b16 %v1309, %v1305
        %v1506 = vpack.c.b16 %v1310, %v1306
        %v1507 = vpack.c.b16 %v1311, %v1307
        %v1508 = vpack.c.b16 %v1316, %v1312
        %v1509 = vpack.c.b16 %v1317, %v1313
        %v1510 = vpack.c.b16 %v1318, %v1314
        %v1511 = vpack.c.b16 %v1319, %v1315
        %1704 = vmatpush.bf16.msra.mxu0 %v1348
        %1705 = vmatpush.bf16.msra.mxu0 %v1344
        %1706 = vmatpush.bf16.msra.mxu0 %v1340
        %1707 = vmatpush.bf16.msra.mxu0 %v1336
        %1708 = vmatpush.bf16.msra.mxu0 %v1332
        %1709 = vmatpush.bf16.msra.mxu0 %v1328
        %1710 = vmatpush.bf16.msra.mxu0 %v1324
        %1711 = vmatpush.bf16.msra.mxu0 %v1320
        %1712 = vmatmul.bf16.gmra.mxu0 %v732
        %v1713 = vpop.f32.mrf.mxu0
        %v1714 = vadd.f32 0.0, %v1713
        %v1715 = vpop.f32.mrf.mxu0
        %1716 = vdwg.mxu0
        %1717 = vmatpush.bf16.msra.mxu0 %v1380
        %1718 = vmatpush.bf16.msra.mxu0 %v1376
        %1719 = vmatpush.bf16.msra.mxu0 %v1372
        %1720 = vmatpush.bf16.msra.mxu0 %v1368
        %1721 = vmatpush.bf16.msra.mxu0 %v1364
        %1722 = vmatpush.bf16.msra.mxu0 %v1360
        %1723 = vmatpush.bf16.msra.mxu0 %v1356
        %1724 = vmatpush.bf16.msra.mxu0 %v1352
        %1725 = vmatmul.bf16.gmra.mxu0 %v733
        %v1726 = vpop.f32.mrf.mxu0
        %v1727 = vadd.f32 %v1714, %v1726
        %v1728 = vpop.f32.mrf.mxu0
        %1729 = vdwg.mxu0
        %1730 = vmatpush.bf16.msra.mxu0 %v1412
        %1731 = vmatpush.bf16.msra.mxu0 %v1408
        %1732 = vmatpush.bf16.msra.mxu0 %v1404
        %1733 = vmatpush.bf16.msra.mxu0 %v1400
        %1734 = vmatpush.bf16.msra.mxu0 %v1396
        %1735 = vmatpush.bf16.msra.mxu0 %v1392
        %1736 = vmatpush.bf16.msra.mxu0 %v1388
        %1737 = vmatpush.bf16.msra.mxu0 %v1384
        %1738 = vmatmul.bf16.gmra.mxu0 %v734
        %v1739 = vpop.f32.mrf.mxu0
        %v1740 = vadd.f32 %v1727, %v1739
        %v1741 = vpop.f32.mrf.mxu0
        %1742 = vdwg.mxu0
        %1743 = vmatpush.bf16.msra.mxu0 %v1444
        %1744 = vmatpush.bf16.msra.mxu0 %v1440
        %1745 = vmatpush.bf16.msra.mxu0 %v1436
        %1746 = vmatpush.bf16.msra.mxu0 %v1432
        %1747 = vmatpush.bf16.msra.mxu0 %v1428
        %1748 = vmatpush.bf16.msra.mxu0 %v1424
        %1749 = vmatpush.bf16.msra.mxu0 %v1420
        %1750 = vmatpush.bf16.msra.mxu0 %v1416
        %1751 = vmatmul.bf16.gmra.mxu0 %v735
        %v1752 = vpop.f32.mrf.mxu0
        %v1753 = vadd.f32 %v1740, %v1752
        %v1754 = vpop.f32.mrf.mxu0
        %1755 = vdwg.mxu0
        %1756 = vmatpush.bf16.msra.mxu0 %v1476
        %1757 = vmatpush.bf16.msra.mxu0 %v1472
        %1758 = vmatpush.bf16.msra.mxu0 %v1468
        %1759 = vmatpush.bf16.msra.mxu0 %v1464
        %1760 = vmatpush.bf16.msra.mxu0 %v1460
        %1761 = vmatpush.bf16.msra.mxu0 %v1456
        %1762 = vmatpush.bf16.msra.mxu0 %v1452
        %1763 = vmatpush.bf16.msra.mxu0 %v1448
        %1764 = vmatmul.bf16.gmra.mxu0 %v736
        %v1765 = vpop.f32.mrf.mxu0
        %v1766 = vadd.f32 %v1753, %v1765
        %v1767 = vpop.f32.mrf.mxu0
        %1768 = vdwg.mxu0
        %1769 = vmatpush.bf16.msra.mxu0 %v1508
        %1770 = vmatpush.bf16.msra.mxu0 %v1504
        %1771 = vmatpush.bf16.msra.mxu0 %v1500
        %1772 = vmatpush.bf16.msra.mxu0 %v1496
        %1773 = vmatpush.bf16.msra.mxu0 %v1492
        %1774 = vmatpush.bf16.msra.mxu0 %v1488
        %1775 = vmatpush.bf16.msra.mxu0 %v1484
        %1776 = vmatpush.bf16.msra.mxu0 %v1480
        %1777 = vmatmul.bf16.gmra.mxu0 %v737
        %v1778 = vpop.f32.mrf.mxu0
        %v1779 = vadd.f32 %v1766, %v1778
        %v1780 = vpop.f32.mrf.mxu0
        %1781 = vdwg.mxu0
        %1782 = vmatpush.bf16.msra.mxu0 %v1349
        %1783 = vmatpush.bf16.msra.mxu0 %v1345
        %1784 = vmatpush.bf16.msra.mxu0 %v1341
        %1785 = vmatpush.bf16.msra.mxu0 %v1337
        %1786 = vmatpush.bf16.msra.mxu0 %v1333
        %1787 = vmatpush.bf16.msra.mxu0 %v1329
        %1788 = vmatpush.bf16.msra.mxu0 %v1325
        %1789 = vmatpush.bf16.msra.mxu0 %v1321
        %1790 = vmatmul.bf16.gmra.mxu0 %v732
        %v1791 = vpop.f32.mrf.mxu0
        %v1792 = vadd.f32 0.0, %v1791
        %v1793 = vpop.f32.mrf.mxu0
        %1794 = vdwg.mxu0
        %1795 = vmatpush.bf16.msra.mxu0 %v1381
        %1796 = vmatpush.bf16.msra.mxu0 %v1377
        %1797 = vmatpush.bf16.msra.mxu0 %v1373
        %1798 = vmatpush.bf16.msra.mxu0 %v1369
        %1799 = vmatpush.bf16.msra.mxu0 %v1365
        %1800 = vmatpush.bf16.msra.mxu0 %v1361
        %1801 = vmatpush.bf16.msra.mxu0 %v1357
        %1802 = vmatpush.bf16.msra.mxu0 %v1353
        %1803 = vmatmul.bf16.gmra.mxu0 %v733
        %v1804 = vpop.f32.mrf.mxu0
        %v1805 = vadd.f32 %v1792, %v1804
        %v1806 = vpop.f32.mrf.mxu0
        %1807 = vdwg.mxu0
        %1808 = vmatpush.bf16.msra.mxu0 %v1413
        %1809 = vmatpush.bf16.msra.mxu0 %v1409
        %1810 = vmatpush.bf16.msra.mxu0 %v1405
        %1811 = vmatpush.bf16.msra.mxu0 %v1401
        %1812 = vmatpush.bf16.msra.mxu0 %v1397
        %1813 = vmatpush.bf16.msra.mxu0 %v1393
        %1814 = vmatpush.bf16.msra.mxu0 %v1389
        %1815 = vmatpush.bf16.msra.mxu0 %v1385
        %1816 = vmatmul.bf16.gmra.mxu0 %v734
        %v1817 = vpop.f32.mrf.mxu0
        %v1818 = vadd.f32 %v1805, %v1817
        %v1819 = vpop.f32.mrf.mxu0
        %1820 = vdwg.mxu0
        %1821 = vmatpush.bf16.msra.mxu0 %v1445
        %1822 = vmatpush.bf16.msra.mxu0 %v1441
        %1823 = vmatpush.bf16.msra.mxu0 %v1437
        %1824 = vmatpush.bf16.msra.mxu0 %v1433
        %1825 = vmatpush.bf16.msra.mxu0 %v1429
        %1826 = vmatpush.bf16.msra.mxu0 %v1425
        %1827 = vmatpush.bf16.msra.mxu0 %v1421
        %1828 = vmatpush.bf16.msra.mxu0 %v1417
        %1829 = vmatmul.bf16.gmra.mxu0 %v735
        %v1830 = vpop.f32.mrf.mxu0
        %v1831 = vadd.f32 %v1818, %v1830
        %v1832 = vpop.f32.mrf.mxu0
        %1833 = vdwg.mxu0
        %1834 = vmatpush.bf16.msra.mxu0 %v1477
        %1835 = vmatpush.bf16.msra.mxu0 %v1473
        %1836 = vmatpush.bf16.msra.mxu0 %v1469
        %1837 = vmatpush.bf16.msra.mxu0 %v1465
        %1838 = vmatpush.bf16.msra.mxu0 %v1461
        %1839 = vmatpush.bf16.msra.mxu0 %v1457
        %1840 = vmatpush.bf16.msra.mxu0 %v1453
        %1841 = vmatpush.bf16.msra.mxu0 %v1449
        %1842 = vmatmul.bf16.gmra.mxu0 %v736
        %v1843 = vpop.f32.mrf.mxu0
        %v1844 = vadd.f32 %v1831, %v1843
        %v1845 = vpop.f32.mrf.mxu0
        %1846 = vdwg.mxu0
        %1847 = vmatpush.bf16.msra.mxu0 %v1509
        %1848 = vmatpush.bf16.msra.mxu0 %v1505
        %1849 = vmatpush.bf16.msra.mxu0 %v1501
        %1850 = vmatpush.bf16.msra.mxu0 %v1497
        %1851 = vmatpush.bf16.msra.mxu0 %v1493
        %1852 = vmatpush.bf16.msra.mxu0 %v1489
        %1853 = vmatpush.bf16.msra.mxu0 %v1485
        %1854 = vmatpush.bf16.msra.mxu0 %v1481
        %1855 = vmatmul.bf16.gmra.mxu0 %v737
        %v1856 = vpop.f32.mrf.mxu0
        %v1857 = vadd.f32 %v1844, %v1856
        %v1858 = vpop.f32.mrf.mxu0
        %1859 = vdwg.mxu0
        %1860 = vmatpush.bf16.msra.mxu0 %v1350
        %1861 = vmatpush.bf16.msra.mxu0 %v1346
        %1862 = vmatpush.bf16.msra.mxu0 %v1342
        %1863 = vmatpush.bf16.msra.mxu0 %v1338
        %1864 = vmatpush.bf16.msra.mxu0 %v1334
        %1865 = vmatpush.bf16.msra.mxu0 %v1330
        %1866 = vmatpush.bf16.msra.mxu0 %v1326
        %1867 = vmatpush.bf16.msra.mxu0 %v1322
        %1868 = vmatmul.bf16.gmra.mxu0 %v732
        %v1869 = vpop.f32.mrf.mxu0
        %v1870 = vadd.f32 0.0, %v1869
        %v1871 = vpop.f32.mrf.mxu0
        %1872 = vdwg.mxu0
        %1873 = vmatpush.bf16.msra.mxu0 %v1382
        %1874 = vmatpush.bf16.msra.mxu0 %v1378
        %1875 = vmatpush.bf16.msra.mxu0 %v1374
        %1876 = vmatpush.bf16.msra.mxu0 %v1370
        %1877 = vmatpush.bf16.msra.mxu0 %v1366
        %1878 = vmatpush.bf16.msra.mxu0 %v1362
        %1879 = vmatpush.bf16.msra.mxu0 %v1358
        %1880 = vmatpush.bf16.msra.mxu0 %v1354
        %1881 = vmatmul.bf16.gmra.mxu0 %v733
        %v1882 = vpop.f32.mrf.mxu0
        %v1883 = vadd.f32 %v1870, %v1882
        %v1884 = vpop.f32.mrf.mxu0
        %1885 = vdwg.mxu0
        %1886 = vmatpush.bf16.msra.mxu0 %v1414
        %1887 = vmatpush.bf16.msra.mxu0 %v1410
        %1888 = vmatpush.bf16.msra.mxu0 %v1406
        %1889 = vmatpush.bf16.msra.mxu0 %v1402
        %1890 = vmatpush.bf16.msra.mxu0 %v1398
        %1891 = vmatpush.bf16.msra.mxu0 %v1394
        %1892 = vmatpush.bf16.msra.mxu0 %v1390
        %1893 = vmatpush.bf16.msra.mxu0 %v1386
        %1894 = vmatmul.bf16.gmra.mxu0 %v734
        %v1895 = vpop.f32.mrf.mxu0
        %v1896 = vadd.f32 %v1883, %v1895
        %v1897 = vpop.f32.mrf.mxu0
        %1898 = vdwg.mxu0
        %1899 = vmatpush.bf16.msra.mxu0 %v1446
        %1900 = vmatpush.bf16.msra.mxu0 %v1442
        %1901 = vmatpush.bf16.msra.mxu0 %v1438
        %1902 = vmatpush.bf16.msra.mxu0 %v1434
        %1903 = vmatpush.bf16.msra.mxu0 %v1430
        %1904 = vmatpush.bf16.msra.mxu0 %v1426
        %1905 = vmatpush.bf16.msra.mxu0 %v1422
        %1906 = vmatpush.bf16.msra.mxu0 %v1418
        %1907 = vmatmul.bf16.gmra.mxu0 %v735
        %v1908 = vpop.f32.mrf.mxu0
        %v1909 = vadd.f32 %v1896, %v1908
        %v1910 = vpop.f32.mrf.mxu0
        %1911 = vdwg.mxu0
        %1912 = vmatpush.bf16.msra.mxu0 %v1478
        %1913 = vmatpush.bf16.msra.mxu0 %v1474
        %1914 = vmatpush.bf16.msra.mxu0 %v1470
        %1915 = vmatpush.bf16.msra.mxu0 %v1466
        %1916 = vmatpush.bf16.msra.mxu0 %v1462
        %1917 = vmatpush.bf16.msra.mxu0 %v1458
        %1918 = vmatpush.bf16.msra.mxu0 %v1454
        %1919 = vmatpush.bf16.msra.mxu0 %v1450
        %1920 = vmatmul.bf16.gmra.mxu0 %v736
        %v1921 = vpop.f32.mrf.mxu0
        %v1922 = vadd.f32 %v1909, %v1921
        %v1923 = vpop.f32.mrf.mxu0
        %1924 = vdwg.mxu0
        %1925 = vmatpush.bf16.msra.mxu0 %v1510
        %1926 = vmatpush.bf16.msra.mxu0 %v1506
        %1927 = vmatpush.bf16.msra.mxu0 %v1502
        %1928 = vmatpush.bf16.msra.mxu0 %v1498
        %1929 = vmatpush.bf16.msra.mxu0 %v1494
        %1930 = vmatpush.bf16.msra.mxu0 %v1490
        %1931 = vmatpush.bf16.msra.mxu0 %v1486
        %1932 = vmatpush.bf16.msra.mxu0 %v1482
        %1933 = vmatmul.bf16.gmra.mxu0 %v737
        %v1934 = vpop.f32.mrf.mxu0
        %v1935 = vadd.f32 %v1922, %v1934
        %v1936 = vpop.f32.mrf.mxu0
        %1937 = vdwg.mxu0
        %1938 = vmatpush.bf16.msra.mxu0 %v1351
        %1939 = vmatpush.bf16.msra.mxu0 %v1347
        %1940 = vmatpush.bf16.msra.mxu0 %v1343
        %1941 = vmatpush.bf16.msra.mxu0 %v1339
        %1942 = vmatpush.bf16.msra.mxu0 %v1335
        %1943 = vmatpush.bf16.msra.mxu0 %v1331
        %1944 = vmatpush.bf16.msra.mxu0 %v1327
        %1945 = vmatpush.bf16.msra.mxu0 %v1323
        %1946 = vmatmul.bf16.gmra.mxu0 %v732
        %v1947 = vpop.f32.mrf.mxu0
        %v1948 = vadd.f32 0.0, %v1947
        %v1949 = vpop.f32.mrf.mxu0
        %1950 = vdwg.mxu0
        %1951 = vmatpush.bf16.msra.mxu0 %v1383
        %1952 = vmatpush.bf16.msra.mxu0 %v1379
        %1953 = vmatpush.bf16.msra.mxu0 %v1375
        %1954 = vmatpush.bf16.msra.mxu0 %v1371
        %1955 = vmatpush.bf16.msra.mxu0 %v1367
        %1956 = vmatpush.bf16.msra.mxu0 %v1363
        %1957 = vmatpush.bf16.msra.mxu0 %v1359
        %1958 = vmatpush.bf16.msra.mxu0 %v1355
        %1959 = vmatmul.bf16.gmra.mxu0 %v733
        %v1960 = vpop.f32.mrf.mxu0
        %v1961 = vadd.f32 %v1948, %v1960
        %v1962 = vpop.f32.mrf.mxu0
        %1963 = vdwg.mxu0
        %1964 = vmatpush.bf16.msra.mxu0 %v1415
        %1965 = vmatpush.bf16.msra.mxu0 %v1411
        %1966 = vmatpush.bf16.msra.mxu0 %v1407
        %1967 = vmatpush.bf16.msra.mxu0 %v1403
        %1968 = vmatpush.bf16.msra.mxu0 %v1399
        %1969 = vmatpush.bf16.msra.mxu0 %v1395
        %1970 = vmatpush.bf16.msra.mxu0 %v1391
        %1971 = vmatpush.bf16.msra.mxu0 %v1387
        %1972 = vmatmul.bf16.gmra.mxu0 %v734
        %v1973 = vpop.f32.mrf.mxu0
        %v1974 = vadd.f32 %v1961, %v1973
        %v1975 = vpop.f32.mrf.mxu0
        %1976 = vdwg.mxu0
        %1977 = vmatpush.bf16.msra.mxu0 %v1447
        %1978 = vmatpush.bf16.msra.mxu0 %v1443
        %1979 = vmatpush.bf16.msra.mxu0 %v1439
        %1980 = vmatpush.bf16.msra.mxu0 %v1435
        %1981 = vmatpush.bf16.msra.mxu0 %v1431
        %1982 = vmatpush.bf16.msra.mxu0 %v1427
        %1983 = vmatpush.bf16.msra.mxu0 %v1423
        %1984 = vmatpush.bf16.msra.mxu0 %v1419
        %1985 = vmatmul.bf16.gmra.mxu0 %v735
        %v1986 = vpop.f32.mrf.mxu0
        %v1987 = vadd.f32 %v1974, %v1986
        %v1988 = vpop.f32.mrf.mxu0
        %1989 = vdwg.mxu0
        %1990 = vmatpush.bf16.msra.mxu0 %v1479
        %1991 = vmatpush.bf16.msra.mxu0 %v1475
        %1992 = vmatpush.bf16.msra.mxu0 %v1471
        %1993 = vmatpush.bf16.msra.mxu0 %v1467
        %1994 = vmatpush.bf16.msra.mxu0 %v1463
        %1995 = vmatpush.bf16.msra.mxu0 %v1459
        %1996 = vmatpush.bf16.msra.mxu0 %v1455
        %1997 = vmatpush.bf16.msra.mxu0 %v1451
        %1998 = vmatmul.bf16.gmra.mxu0 %v736
        %v1999 = vpop.f32.mrf.mxu0
        %v2000 = vadd.f32 %v1987, %v1999
        %v2001 = vpop.f32.mrf.mxu0
        %2002 = vdwg.mxu0
        %2003 = vmatpush.bf16.msra.mxu0 %v1511
        %2004 = vmatpush.bf16.msra.mxu0 %v1507
        %2005 = vmatpush.bf16.msra.mxu0 %v1503
        %2006 = vmatpush.bf16.msra.mxu0 %v1499
        %2007 = vmatpush.bf16.msra.mxu0 %v1495
        %2008 = vmatpush.bf16.msra.mxu0 %v1491
        %2009 = vmatpush.bf16.msra.mxu0 %v1487
        %2010 = vmatpush.bf16.msra.mxu0 %v1483
        %2011 = vmatmul.bf16.gmra.mxu0 %v737
        %v2012 = vpop.f32.mrf.mxu0
        %v2013 = vadd.f32 %v2000, %v2012
        %v2014 = vpop.f32.mrf.mxu0
        %2015 = vdwg.mxu0
        %v2016 = vadd.f32 %v524, %v1779
        %v2017 = vadd.f32 %v525, %v1857
        %v2018 = vadd.f32 %v526, %v1935
        %v2019 = vadd.f32 %v527, %v2013
        %2020 = vst [vmem:[#allocation2] sm:$0xff] %v2016
        %2021 = vst [vmem:[#allocation2 + $0x8] sm:$0xff] %v2017
        %2022 = vst [vmem:[#allocation2 + $0x10] sm:$0xff] %v2018
        %2023 = vst [vmem:[#allocation2 + $0x18] sm:$0xff] %v2019
        %p2024 = scmp.eq.s32.totalorder %s33, 2
        // Predicated region
        $region97: #{tpu_custom_call.1} parent=55 // pred_check
          %p2025 = pneg %p2024
        $region98: #{tpu_custom_call.1} parent=55 // pred_check_branch
          %2027 = sbr.rel (%p2025) target = $region100
        $region99: #{tpu_custom_call.1} parent=55 // pred_region
          %v2028 = vld [vmem:[#allocation2] sm:$0xff]
          %v2029 = vld [vmem:[#allocation2 + $0x8] sm:$0xff]
          %v2030 = vld [vmem:[#allocation2 + $0x10] sm:$0xff]
          %v2031 = vld [vmem:[#allocation2 + $0x18] sm:$0xff]
          %v2032 = vld [vmem:[#allocation6] sm:$0xff]
          %v2033 = vld [vmem:[#allocation6 + $0x8] sm:$0xff]
          %v2034 = vld [vmem:[#allocation6 + $0x10] sm:$0xff]
          %v2035 = vld [vmem:[#allocation9] sm:$0xff]
          %v2036 = vld [vmem:[#allocation9 + $0x8] sm:$0xff]
          %v2037 = vld [vmem:[#allocation9 + $0x10] sm:$0xff]
          %v2038 = vld [vmem:[#allocation9 + $0x18] sm:$0xff]
          %v2039 = vld [vmem:[#allocation9 + $0x20] sm:$0xff]
          %v2040 = vld [vmem:[#allocation9 + $0x28] sm:$0xff]
          %v2041 = vld [vmem:[#allocation9 + $0x30] sm:$0xff]
          %v2042 = vld [vmem:[#allocation9 + $0x38] sm:$0xff]
          %v2043 = vld [vmem:[#allocation9 + $0x40] sm:$0xff]
          %v2044 = vld [vmem:[#allocation9 + $0x48] sm:$0xff]
          %v2045 = vld [vmem:[#allocation9 + $0x50] sm:$0xff]
          %v2046 = vld [vmem:[#allocation9 + $0x58] sm:$0xff]
          %v2047 = vld [vmem:[#allocation9 + $0x60] sm:$0xff]
          %v2048 = vld [vmem:[#allocation9 + $0x68] sm:$0xff]
          %v2049 = vld [vmem:[#allocation9 + $0x70] sm:$0xff]
          %v2050 = vld [vmem:[#allocation9 + $0x78] sm:$0xff]
          %v2051 = vld [vmem:[#allocation9 + $0x80] sm:$0xff]
          %v2052 = vld [vmem:[#allocation9 + $0x88] sm:$0xff]
          %v2053 = vld [vmem:[#allocation9 + $0x90] sm:$0xff]
          %v2054 = vld [vmem:[#allocation9 + $0x98] sm:$0xff]
          %v2055 = vld [vmem:[#allocation9 + $0xa0] sm:$0xff]
          %v2056 = vld [vmem:[#allocation9 + $0xa8] sm:$0xff]
          %v2057 = vld [vmem:[#allocation9 + $0xb0] sm:$0xff]
          %v2058 = vld [vmem:[#allocation9 + $0xb8] sm:$0xff]
          %v2059 = vld [vmem:[#allocation9 + $0xc0] sm:$0xff]
          %v2060 = vld [vmem:[#allocation9 + $0xc8] sm:$0xff]
          %v2061 = vld [vmem:[#allocation9 + $0xd0] sm:$0xff]
          %v2062 = vld [vmem:[#allocation9 + $0xd8] sm:$0xff]
          %v2063 = vld [vmem:[#allocation9 + $0xe0] sm:$0xff]
          %v2064 = vld [vmem:[#allocation9 + $0xe8] sm:$0xff]
          %v2065 = vld [vmem:[#allocation9 + $0xf0] sm:$0xff]
          %v2066 = vld [vmem:[#allocation9 + $0xf8] sm:$0xff]
          %v2067 = vld [vmem:[#allocation9 + $0x100] sm:$0xff]
          %v2068 = vld [vmem:[#allocation9 + $0x108] sm:$0xff]
          %v2069 = vld [vmem:[#allocation9 + $0x110] sm:$0xff]
          %v2070 = vld [vmem:[#allocation9 + $0x118] sm:$0xff]
          %v2071 = vld [vmem:[#allocation9 + $0x120] sm:$0xff]
          %v2072 = vld [vmem:[#allocation9 + $0x128] sm:$0xff]
          %v2073 = vld [vmem:[#allocation9 + $0x130] sm:$0xff]
          %v2074 = vld [vmem:[#allocation9 + $0x138] sm:$0xff]
          %v2075 = vld [vmem:[#allocation9 + $0x140] sm:$0xff]
          %v2076 = vld [vmem:[#allocation9 + $0x148] sm:$0xff]
          %v2077 = vld [vmem:[#allocation9 + $0x150] sm:$0xff]
          %v2078 = vld [vmem:[#allocation9 + $0x158] sm:$0xff]
          %v2079 = vld [vmem:[#allocation9 + $0x160] sm:$0xff]
          %v2080 = vld [vmem:[#allocation9 + $0x168] sm:$0xff]
          %v2081 = vld [vmem:[#allocation9 + $0x170] sm:$0xff]
          %v2082 = vld [vmem:[#allocation9 + $0x178] sm:$0xff]
          %v2083 = vld [vmem:[#allocation9 + $0x180] sm:$0xff]
          %v2084 = vld [vmem:[#allocation9 + $0x188] sm:$0xff]
          %v2085 = vld [vmem:[#allocation9 + $0x190] sm:$0xff]
          %v2086 = vld [vmem:[#allocation9 + $0x198] sm:$0xff]
          %v2087 = vld [vmem:[#allocation9 + $0x1a0] sm:$0xff]
          %v2088 = vld [vmem:[#allocation9 + $0x1a8] sm:$0xff]
          %v2089 = vld [vmem:[#allocation9 + $0x1b0] sm:$0xff]
          %v2090 = vld [vmem:[#allocation9 + $0x1b8] sm:$0xff]
          %v2091 = vld [vmem:[#allocation9 + $0x1c0] sm:$0xff]
          %v2092 = vld [vmem:[#allocation9 + $0x1c8] sm:$0xff]
          %v2093 = vld [vmem:[#allocation9 + $0x1d0] sm:$0xff]
          %v2094 = vld [vmem:[#allocation9 + $0x1d8] sm:$0xff]
          %v2095 = vld [vmem:[#allocation9 + $0x1e0] sm:$0xff]
          %v2096 = vld [vmem:[#allocation9 + $0x1e8] sm:$0xff]
          %v2097 = vld [vmem:[#allocation9 + $0x1f0] sm:$0xff]
          %v2098 = vld [vmem:[#allocation9 + $0x1f8] sm:$0xff]
          %v2099 = vld [vmem:[#allocation9 + $0x200] sm:$0xff]
          %v2100 = vld [vmem:[#allocation9 + $0x208] sm:$0xff]
          %v2101 = vld [vmem:[#allocation9 + $0x210] sm:$0xff]
          %v2102 = vld [vmem:[#allocation9 + $0x218] sm:$0xff]
          %v2103 = vld [vmem:[#allocation9 + $0x220] sm:$0xff]
          %v2104 = vld [vmem:[#allocation9 + $0x228] sm:$0xff]
          %v2105 = vld [vmem:[#allocation9 + $0x230] sm:$0xff]
          %v2106 = vld [vmem:[#allocation9 + $0x238] sm:$0xff]
          %v2107 = vld [vmem:[#allocation9 + $0x240] sm:$0xff]
          %v2108 = vld [vmem:[#allocation9 + $0x248] sm:$0xff]
          %v2109 = vld [vmem:[#allocation9 + $0x250] sm:$0xff]
          %v2110 = vld [vmem:[#allocation9 + $0x258] sm:$0xff]
          %v2111 = vld [vmem:[#allocation9 + $0x260] sm:$0xff]
          %v2112 = vld [vmem:[#allocation9 + $0x268] sm:$0xff]
          %v2113 = vld [vmem:[#allocation9 + $0x270] sm:$0xff]
          %v2114 = vld [vmem:[#allocation9 + $0x278] sm:$0xff]
          %v2115 = vld [vmem:[#allocation9 + $0x280] sm:$0xff]
          %v2116 = vld [vmem:[#allocation9 + $0x288] sm:$0xff]
          %v2117 = vld [vmem:[#allocation9 + $0x290] sm:$0xff]
          %v2118 = vld [vmem:[#allocation9 + $0x298] sm:$0xff]
          %v2119 = vld [vmem:[#allocation9 + $0x2a0] sm:$0xff]
          %v2120 = vld [vmem:[#allocation9 + $0x2a8] sm:$0xff]
          %v2121 = vld [vmem:[#allocation9 + $0x2b0] sm:$0xff]
          %v2122 = vld [vmem:[#allocation9 + $0x2b8] sm:$0xff]
          %v2123 = vld [vmem:[#allocation9 + $0x2c0] sm:$0xff]
          %v2124 = vld [vmem:[#allocation9 + $0x2c8] sm:$0xff]
          %v2125 = vld [vmem:[#allocation9 + $0x2d0] sm:$0xff]
          %v2126 = vld [vmem:[#allocation9 + $0x2d8] sm:$0xff]
          %v2127 = vld [vmem:[#allocation9 + $0x2e0] sm:$0xff]
          %v2128 = vld [vmem:[#allocation9 + $0x2e8] sm:$0xff]
          %v2129 = vld [vmem:[#allocation9 + $0x2f0] sm:$0xff]
          %v2130 = vld [vmem:[#allocation9 + $0x2f8] sm:$0xff]
          %v2131 = vld [vmem:[#allocation9 + $0x300] sm:$0xff]
          %v2132 = vld [vmem:[#allocation9 + $0x308] sm:$0xff]
          %v2133 = vld [vmem:[#allocation9 + $0x310] sm:$0xff]
          %v2134 = vld [vmem:[#allocation9 + $0x318] sm:$0xff]
          %v2135 = vld [vmem:[#allocation9 + $0x320] sm:$0xff]
          %v2136 = vld [vmem:[#allocation9 + $0x328] sm:$0xff]
          %v2137 = vld [vmem:[#allocation9 + $0x330] sm:$0xff]
          %v2138 = vld [vmem:[#allocation9 + $0x338] sm:$0xff]
          %v2139 = vld [vmem:[#allocation9 + $0x340] sm:$0xff]
          %v2140 = vld [vmem:[#allocation9 + $0x348] sm:$0xff]
          %v2141 = vld [vmem:[#allocation9 + $0x350] sm:$0xff]
          %v2142 = vld [vmem:[#allocation9 + $0x358] sm:$0xff]
          %v2143 = vld [vmem:[#allocation9 + $0x360] sm:$0xff]
          %v2144 = vld [vmem:[#allocation9 + $0x368] sm:$0xff]
          %v2145 = vld [vmem:[#allocation9 + $0x370] sm:$0xff]
          %v2146 = vld [vmem:[#allocation9 + $0x378] sm:$0xff]
          %v2147 = vld [vmem:[#allocation9 + $0x380] sm:$0xff]
          %v2148 = vld [vmem:[#allocation9 + $0x388] sm:$0xff]
          %v2149 = vld [vmem:[#allocation9 + $0x390] sm:$0xff]
          %v2150 = vld [vmem:[#allocation9 + $0x398] sm:$0xff]
          %v2151 = vld [vmem:[#allocation9 + $0x3a0] sm:$0xff]
          %v2152 = vld [vmem:[#allocation9 + $0x3a8] sm:$0xff]
          %v2153 = vld [vmem:[#allocation9 + $0x3b0] sm:$0xff]
          %v2154 = vld [vmem:[#allocation9 + $0x3b8] sm:$0xff]
          %v2155 = vld [vmem:[#allocation9 + $0x3c0] sm:$0xff]
          %v2156 = vld [vmem:[#allocation9 + $0x3c8] sm:$0xff]
          %v2157 = vld [vmem:[#allocation9 + $0x3d0] sm:$0xff]
          %v2158 = vld [vmem:[#allocation9 + $0x3d8] sm:$0xff]
          %v2159 = vld [vmem:[#allocation9 + $0x3e0] sm:$0xff]
          %v2160 = vld [vmem:[#allocation9 + $0x3e8] sm:$0xff]
          %v2161 = vld [vmem:[#allocation9 + $0x3f0] sm:$0xff]
          %v2162 = vld [vmem:[#allocation9 + $0x3f8] sm:$0xff]
          %v2163 = vld [vmem:[#allocation9 + $0x400] sm:$0xff]
          %v2164 = vld [vmem:[#allocation9 + $0x408] sm:$0xff]
          %v2165 = vld [vmem:[#allocation9 + $0x410] sm:$0xff]
          %v2166 = vld [vmem:[#allocation9 + $0x418] sm:$0xff]
          %v2167 = vld [vmem:[#allocation9 + $0x420] sm:$0xff]
          %v2168 = vld [vmem:[#allocation9 + $0x428] sm:$0xff]
          %v2169 = vld [vmem:[#allocation9 + $0x430] sm:$0xff]
          %v2170 = vld [vmem:[#allocation9 + $0x438] sm:$0xff]
          %v2171 = vld [vmem:[#allocation9 + $0x440] sm:$0xff]
          %v2172 = vld [vmem:[#allocation9 + $0x448] sm:$0xff]
          %v2173 = vld [vmem:[#allocation9 + $0x450] sm:$0xff]
          %v2174 = vld [vmem:[#allocation9 + $0x458] sm:$0xff]
          %v2175 = vld [vmem:[#allocation9 + $0x460] sm:$0xff]
          %v2176 = vld [vmem:[#allocation9 + $0x468] sm:$0xff]
          %v2177 = vld [vmem:[#allocation9 + $0x470] sm:$0xff]
          %v2178 = vld [vmem:[#allocation9 + $0x478] sm:$0xff]
          %v2179 = vld [vmem:[#allocation9 + $0x480] sm:$0xff]
          %v2180 = vld [vmem:[#allocation9 + $0x488] sm:$0xff]
          %v2181 = vld [vmem:[#allocation9 + $0x490] sm:$0xff]
          %v2182 = vld [vmem:[#allocation9 + $0x498] sm:$0xff]
          %v2183 = vld [vmem:[#allocation9 + $0x4a0] sm:$0xff]
          %v2184 = vld [vmem:[#allocation9 + $0x4a8] sm:$0xff]
          %v2185 = vld [vmem:[#allocation9 + $0x4b0] sm:$0xff]
          %v2186 = vld [vmem:[#allocation9 + $0x4b8] sm:$0xff]
          %v2187 = vld [vmem:[#allocation9 + $0x4c0] sm:$0xff]
          %v2188 = vld [vmem:[#allocation9 + $0x4c8] sm:$0xff]
          %v2189 = vld [vmem:[#allocation9 + $0x4d0] sm:$0xff]
          %v2190 = vld [vmem:[#allocation9 + $0x4d8] sm:$0xff]
          %v2191 = vld [vmem:[#allocation9 + $0x4e0] sm:$0xff]
          %v2192 = vld [vmem:[#allocation9 + $0x4e8] sm:$0xff]
          %v2193 = vld [vmem:[#allocation9 + $0x4f0] sm:$0xff]
          %v2194 = vld [vmem:[#allocation9 + $0x4f8] sm:$0xff]
          %v2195 = vld [vmem:[#allocation9 + $0x500] sm:$0xff]
          %v2196 = vld [vmem:[#allocation9 + $0x508] sm:$0xff]
          %v2197 = vld [vmem:[#allocation9 + $0x510] sm:$0xff]
          %v2198 = vld [vmem:[#allocation9 + $0x518] sm:$0xff]
          %v2199 = vld [vmem:[#allocation9 + $0x520] sm:$0xff]
          %v2200 = vld [vmem:[#allocation9 + $0x528] sm:$0xff]
          %v2201 = vld [vmem:[#allocation9 + $0x530] sm:$0xff]
          %v2202 = vld [vmem:[#allocation9 + $0x538] sm:$0xff]
          %v2203 = vld [vmem:[#allocation9 + $0x540] sm:$0xff]
          %v2204 = vld [vmem:[#allocation9 + $0x548] sm:$0xff]
          %v2205 = vld [vmem:[#allocation9 + $0x550] sm:$0xff]
          %v2206 = vld [vmem:[#allocation9 + $0x558] sm:$0xff]
          %v2207 = vld [vmem:[#allocation9 + $0x560] sm:$0xff]
          %v2208 = vld [vmem:[#allocation9 + $0x568] sm:$0xff]
          %v2209 = vld [vmem:[#allocation9 + $0x570] sm:$0xff]
          %v2210 = vld [vmem:[#allocation9 + $0x578] sm:$0xff]
          %v2211 = vld [vmem:[#allocation9 + $0x580] sm:$0xff]
          %v2212 = vld [vmem:[#allocation9 + $0x588] sm:$0xff]
          %v2213 = vld [vmem:[#allocation9 + $0x590] sm:$0xff]
          %v2214 = vld [vmem:[#allocation9 + $0x598] sm:$0xff]
          %v2215 = vld [vmem:[#allocation9 + $0x5a0] sm:$0xff]
          %v2216 = vld [vmem:[#allocation9 + $0x5a8] sm:$0xff]
          %v2217 = vld [vmem:[#allocation9 + $0x5b0] sm:$0xff]
          %v2218 = vld [vmem:[#allocation9 + $0x5b8] sm:$0xff]
          %v2219 = vld [vmem:[#allocation9 + $0x5c0] sm:$0xff]
          %v2220 = vld [vmem:[#allocation9 + $0x5c8] sm:$0xff]
          %v2221 = vld [vmem:[#allocation9 + $0x5d0] sm:$0xff]
          %v2222 = vld [vmem:[#allocation9 + $0x5d8] sm:$0xff]
          %v2223 = vld [vmem:[#allocation9 + $0x5e0] sm:$0xff]
          %v2224 = vld [vmem:[#allocation9 + $0x5e8] sm:$0xff]
          %v2225 = vld [vmem:[#allocation9 + $0x5f0] sm:$0xff]
          %v2226 = vld [vmem:[#allocation9 + $0x5f8] sm:$0xff]
          %v2230 = vunpack.c.l.b16 %v2032
          %v2231 = vunpack.c.h.b16 %v2032
          %v2232 = vunpack.c.l.b16 %v2033
          %v2233 = vunpack.c.h.b16 %v2033
          %v2234 = vunpack.c.l.b16 %v2034
          %v2235 = vunpack.c.h.b16 %v2034
          %v2236 = vpack.c.b16 %v2230, %v2230
          %v2237 = vpack.c.b16 %v2231, %v2231
          %v2238 = vpack.c.b16 %v2232, %v2232
          %v2239 = vpack.c.b16 %v2233, %v2233
          %v2240 = vpack.c.b16 %v2234, %v2234
          %v2241 = vpack.c.b16 %v2235, %v2235
          %v2440 = vunpack.c.l.b16 %v2035
          %v2441 = vunpack.c.h.b16 %v2035
          %v2442 = vunpack.c.l.b16 %v2036
          %v2443 = vunpack.c.h.b16 %v2036
          %v2444 = vunpack.c.l.b16 %v2037
          %v2445 = vunpack.c.h.b16 %v2037
          %v2446 = vunpack.c.l.b16 %v2038
          %v2447 = vunpack.c.h.b16 %v2038
          %v2448 = vunpack.c.l.b16 %v2039
          %v2449 = vunpack.c.h.b16 %v2039
          %v2450 = vunpack.c.l.b16 %v2040
          %v2451 = vunpack.c.h.b16 %v2040
          %v2452 = vunpack.c.l.b16 %v2041
          %v2453 = vunpack.c.h.b16 %v2041
          %v2454 = vunpack.c.l.b16 %v2042
          %v2455 = vunpack.c.h.b16 %v2042
          %v2456 = vunpack.c.l.b16 %v2043
          %v2457 = vunpack.c.h.b16 %v2043
          %v2458 = vunpack.c.l.b16 %v2044
          %v2459 = vunpack.c.h.b16 %v2044
          %v2460 = vunpack.c.l.b16 %v2045
          %v2461 = vunpack.c.h.b16 %v2045
          %v2462 = vunpack.c.l.b16 %v2046
          %v2463 = vunpack.c.h.b16 %v2046
          %v2464 = vunpack.c.l.b16 %v2047
          %v2465 = vunpack.c.h.b16 %v2047
          %v2466 = vunpack.c.l.b16 %v2048
          %v2467 = vunpack.c.h.b16 %v2048
          %v2468 = vunpack.c.l.b16 %v2049
          %v2469 = vunpack.c.h.b16 %v2049
          %v2470 = vunpack.c.l.b16 %v2050
          %v2471 = vunpack.c.h.b16 %v2050
          %v2472 = vunpack.c.l.b16 %v2051
          %v2473 = vunpack.c.h.b16 %v2051
          %v2474 = vunpack.c.l.b16 %v2052
          %v2475 = vunpack.c.h.b16 %v2052
          %v2476 = vunpack.c.l.b16 %v2053
          %v2477 = vunpack.c.h.b16 %v2053
          %v2478 = vunpack.c.l.b16 %v2054
          %v2479 = vunpack.c.h.b16 %v2054
          %v2480 = vunpack.c.l.b16 %v2055
          %v2481 = vunpack.c.h.b16 %v2055
          %v2482 = vunpack.c.l.b16 %v2056
          %v2483 = vunpack.c.h.b16 %v2056
          %v2484 = vunpack.c.l.b16 %v2057
          %v2485 = vunpack.c.h.b16 %v2057
          %v2486 = vunpack.c.l.b16 %v2058
          %v2487 = vunpack.c.h.b16 %v2058
          %v2488 = vunpack.c.l.b16 %v2059
          %v2489 = vunpack.c.h.b16 %v2059
          %v2490 = vunpack.c.l.b16 %v2060
          %v2491 = vunpack.c.h.b16 %v2060
          %v2492 = vunpack.c.l.b16 %v2061
          %v2493 = vunpack.c.h.b16 %v2061
          %v2494 = vunpack.c.l.b16 %v2062
          %v2495 = vunpack.c.h.b16 %v2062
          %v2496 = vunpack.c.l.b16 %v2063
          %v2497 = vunpack.c.h.b16 %v2063
          %v2498 = vunpack.c.l.b16 %v2064
          %v2499 = vunpack.c.h.b16 %v2064
          %v2500 = vunpack.c.l.b16 %v2065
          %v2501 = vunpack.c.h.b16 %v2065
          %v2502 = vunpack.c.l.b16 %v2066
          %v2503 = vunpack.c.h.b16 %v2066
          %v2504 = vunpack.c.l.b16 %v2067
          %v2505 = vunpack.c.h.b16 %v2067
          %v2506 = vunpack.c.l.b16 %v2068
          %v2507 = vunpack.c.h.b16 %v2068
          %v2508 = vunpack.c.l.b16 %v2069
          %v2509 = vunpack.c.h.b16 %v2069
          %v2510 = vunpack.c.l.b16 %v2070
          %v2511 = vunpack.c.h.b16 %v2070
          %v2512 = vunpack.c.l.b16 %v2071
          %v2513 = vunpack.c.h.b16 %v2071
          %v2514 = vunpack.c.l.b16 %v2072
          %v2515 = vunpack.c.h.b16 %v2072
          %v2516 = vunpack.c.l.b16 %v2073
          %v2517 = vunpack.c.h.b16 %v2073
          %v2518 = vunpack.c.l.b16 %v2074
          %v2519 = vunpack.c.h.b16 %v2074
          %v2520 = vunpack.c.l.b16 %v2075
          %v2521 = vunpack.c.h.b16 %v2075
          %v2522 = vunpack.c.l.b16 %v2076
          %v2523 = vunpack.c.h.b16 %v2076
          %v2524 = vunpack.c.l.b16 %v2077
          %v2525 = vunpack.c.h.b16 %v2077
          %v2526 = vunpack.c.l.b16 %v2078
          %v2527 = vunpack.c.h.b16 %v2078
          %v2528 = vunpack.c.l.b16 %v2079
          %v2529 = vunpack.c.h.b16 %v2079
          %v2530 = vunpack.c.l.b16 %v2080
          %v2531 = vunpack.c.h.b16 %v2080
          %v2532 = vunpack.c.l.b16 %v2081
          %v2533 = vunpack.c.h.b16 %v2081
          %v2534 = vunpack.c.l.b16 %v2082
          %v2535 = vunpack.c.h.b16 %v2082
          %v2536 = vunpack.c.l.b16 %v2083
          %v2537 = vunpack.c.h.b16 %v2083
          %v2538 = vunpack.c.l.b16 %v2084
          %v2539 = vunpack.c.h.b16 %v2084
          %v2540 = vunpack.c.l.b16 %v2085
          %v2541 = vunpack.c.h.b16 %v2085
          %v2542 = vunpack.c.l.b16 %v2086
          %v2543 = vunpack.c.h.b16 %v2086
          %v2544 = vunpack.c.l.b16 %v2087
          %v2545 = vunpack.c.h.b16 %v2087
          %v2546 = vunpack.c.l.b16 %v2088
          %v2547 = vunpack.c.h.b16 %v2088
          %v2548 = vunpack.c.l.b16 %v2089
          %v2549 = vunpack.c.h.b16 %v2089
          %v2550 = vunpack.c.l.b16 %v2090
          %v2551 = vunpack.c.h.b16 %v2090
          %v2552 = vunpack.c.l.b16 %v2091
          %v2553 = vunpack.c.h.b16 %v2091
          %v2554 = vunpack.c.l.b16 %v2092
          %v2555 = vunpack.c.h.b16 %v2092
          %v2556 = vunpack.c.l.b16 %v2093
          %v2557 = vunpack.c.h.b16 %v2093
          %v2558 = vunpack.c.l.b16 %v2094
          %v2559 = vunpack.c.h.b16 %v2094
          %v2560 = vunpack.c.l.b16 %v2095
          %v2561 = vunpack.c.h.b16 %v2095
          %v2562 = vunpack.c.l.b16 %v2096
          %v2563 = vunpack.c.h.b16 %v2096
          %v2564 = vunpack.c.l.b16 %v2097
          %v2565 = vunpack.c.h.b16 %v2097
          %v2566 = vunpack.c.l.b16 %v2098
          %v2567 = vunpack.c.h.b16 %v2098
          %v2568 = vunpack.c.l.b16 %v2099
          %v2569 = vunpack.c.h.b16 %v2099
          %v2570 = vunpack.c.l.b16 %v2100
          %v2571 = vunpack.c.h.b16 %v2100
          %v2572 = vunpack.c.l.b16 %v2101
          %v2573 = vunpack.c.h.b16 %v2101
          %v2574 = vunpack.c.l.b16 %v2102
          %v2575 = vunpack.c.h.b16 %v2102
          %v2576 = vunpack.c.l.b16 %v2103
          %v2577 = vunpack.c.h.b16 %v2103
          %v2578 = vunpack.c.l.b16 %v2104
          %v2579 = vunpack.c.h.b16 %v2104
          %v2580 = vunpack.c.l.b16 %v2105
          %v2581 = vunpack.c.h.b16 %v2105
          %v2582 = vunpack.c.l.b16 %v2106
          %v2583 = vunpack.c.h.b16 %v2106
          %v2584 = vunpack.c.l.b16 %v2107
          %v2585 = vunpack.c.h.b16 %v2107
          %v2586 = vunpack.c.l.b16 %v2108
          %v2587 = vunpack.c.h.b16 %v2108
          %v2588 = vunpack.c.l.b16 %v2109
          %v2589 = vunpack.c.h.b16 %v2109
          %v2590 = vunpack.c.l.b16 %v2110
          %v2591 = vunpack.c.h.b16 %v2110
          %v2592 = vunpack.c.l.b16 %v2111
          %v2593 = vunpack.c.h.b16 %v2111
          %v2594 = vunpack.c.l.b16 %v2112
          %v2595 = vunpack.c.h.b16 %v2112
          %v2596 = vunpack.c.l.b16 %v2113
          %v2597 = vunpack.c.h.b16 %v2113
          %v2598 = vunpack.c.l.b16 %v2114
          %v2599 = vunpack.c.h.b16 %v2114
          %v2600 = vunpack.c.l.b16 %v2115
          %v2601 = vunpack.c.h.b16 %v2115
          %v2602 = vunpack.c.l.b16 %v2116
          %v2603 = vunpack.c.h.b16 %v2116
          %v2604 = vunpack.c.l.b16 %v2117
          %v2605 = vunpack.c.h.b16 %v2117
          %v2606 = vunpack.c.l.b16 %v2118
          %v2607 = vunpack.c.h.b16 %v2118
          %v2608 = vunpack.c.l.b16 %v2119
          %v2609 = vunpack.c.h.b16 %v2119
          %v2610 = vunpack.c.l.b16 %v2120
          %v2611 = vunpack.c.h.b16 %v2120
          %v2612 = vunpack.c.l.b16 %v2121
          %v2613 = vunpack.c.h.b16 %v2121
          %v2614 = vunpack.c.l.b16 %v2122
          %v2615 = vunpack.c.h.b16 %v2122
          %v2616 = vunpack.c.l.b16 %v2123
          %v2617 = vunpack.c.h.b16 %v2123
          %v2618 = vunpack.c.l.b16 %v2124
          %v2619 = vunpack.c.h.b16 %v2124
          %v2620 = vunpack.c.l.b16 %v2125
          %v2621 = vunpack.c.h.b16 %v2125
          %v2622 = vunpack.c.l.b16 %v2126
          %v2623 = vunpack.c.h.b16 %v2126
          %v2624 = vunpack.c.l.b16 %v2127
          %v2625 = vunpack.c.h.b16 %v2127
          %v2626 = vunpack.c.l.b16 %v2128
          %v2627 = vunpack.c.h.b16 %v2128
          %v2628 = vunpack.c.l.b16 %v2129
          %v2629 = vunpack.c.h.b16 %v2129
          %v2630 = vunpack.c.l.b16 %v2130
          %v2631 = vunpack.c.h.b16 %v2130
          %v2632 = vunpack.c.l.b16 %v2131
          %v2633 = vunpack.c.h.b16 %v2131
          %v2634 = vunpack.c.l.b16 %v2132
          %v2635 = vunpack.c.h.b16 %v2132
          %v2636 = vunpack.c.l.b16 %v2133
          %v2637 = vunpack.c.h.b16 %v2133
          %v2638 = vunpack.c.l.b16 %v2134
          %v2639 = vunpack.c.h.b16 %v2134
          %v2640 = vunpack.c.l.b16 %v2135
          %v2641 = vunpack.c.h.b16 %v2135
          %v2642 = vunpack.c.l.b16 %v2136
          %v2643 = vunpack.c.h.b16 %v2136
          %v2644 = vunpack.c.l.b16 %v2137
          %v2645 = vunpack.c.h.b16 %v2137
          %v2646 = vunpack.c.l.b16 %v2138
          %v2647 = vunpack.c.h.b16 %v2138
          %v2648 = vunpack.c.l.b16 %v2139
          %v2649 = vunpack.c.h.b16 %v2139
          %v2650 = vunpack.c.l.b16 %v2140
          %v2651 = vunpack.c.h.b16 %v2140
          %v2652 = vunpack.c.l.b16 %v2141
          %v2653 = vunpack.c.h.b16 %v2141
          %v2654 = vunpack.c.l.b16 %v2142
          %v2655 = vunpack.c.h.b16 %v2142
          %v2656 = vunpack.c.l.b16 %v2143
          %v2657 = vunpack.c.h.b16 %v2143
          %v2658 = vunpack.c.l.b16 %v2144
          %v2659 = vunpack.c.h.b16 %v2144
          %v2660 = vunpack.c.l.b16 %v2145
          %v2661 = vunpack.c.h.b16 %v2145
          %v2662 = vunpack.c.l.b16 %v2146
          %v2663 = vunpack.c.h.b16 %v2146
          %v2664 = vunpack.c.l.b16 %v2147
          %v2665 = vunpack.c.h.b16 %v2147
          %v2666 = vunpack.c.l.b16 %v2148
          %v2667 = vunpack.c.h.b16 %v2148
          %v2668 = vunpack.c.l.b16 %v2149
          %v2669 = vunpack.c.h.b16 %v2149
          %v2670 = vunpack.c.l.b16 %v2150
          %v2671 = vunpack.c.h.b16 %v2150
          %v2672 = vunpack.c.l.b16 %v2151
          %v2673 = vunpack.c.h.b16 %v2151
          %v2674 = vunpack.c.l.b16 %v2152
          %v2675 = vunpack.c.h.b16 %v2152
          %v2676 = vunpack.c.l.b16 %v2153
          %v2677 = vunpack.c.h.b16 %v2153
          %v2678 = vunpack.c.l.b16 %v2154
          %v2679 = vunpack.c.h.b16 %v2154
          %v2680 = vunpack.c.l.b16 %v2155
          %v2681 = vunpack.c.h.b16 %v2155
          %v2682 = vunpack.c.l.b16 %v2156
          %v2683 = vunpack.c.h.b16 %v2156
          %v2684 = vunpack.c.l.b16 %v2157
          %v2685 = vunpack.c.h.b16 %v2157
          %v2686 = vunpack.c.l.b16 %v2158
          %v2687 = vunpack.c.h.b16 %v2158
          %v2688 = vunpack.c.l.b16 %v2159
          %v2689 = vunpack.c.h.b16 %v2159
          %v2690 = vunpack.c.l.b16 %v2160
          %v2691 = vunpack.c.h.b16 %v2160
          %v2692 = vunpack.c.l.b16 %v2161
          %v2693 = vunpack.c.h.b16 %v2161
          %v2694 = vunpack.c.l.b16 %v2162
          %v2695 = vunpack.c.h.b16 %v2162
          %v2696 = vunpack.c.l.b16 %v2163
          %v2697 = vunpack.c.h.b16 %v2163
          %v2698 = vunpack.c.l.b16 %v2164
          %v2699 = vunpack.c.h.b16 %v2164
          %v2700 = vunpack.c.l.b16 %v2165
          %v2701 = vunpack.c.h.b16 %v2165
          %v2702 = vunpack.c.l.b16 %v2166
          %v2703 = vunpack.c.h.b16 %v2166
          %v2704 = vunpack.c.l.b16 %v2167
          %v2705 = vunpack.c.h.b16 %v2167
          %v2706 = vunpack.c.l.b16 %v2168
          %v2707 = vunpack.c.h.b16 %v2168
          %v2708 = vunpack.c.l.b16 %v2169
          %v2709 = vunpack.c.h.b16 %v2169
          %v2710 = vunpack.c.l.b16 %v2170
          %v2711 = vunpack.c.h.b16 %v2170
          %v2712 = vunpack.c.l.b16 %v2171
          %v2713 = vunpack.c.h.b16 %v2171
          %v2714 = vunpack.c.l.b16 %v2172
          %v2715 = vunpack.c.h.b16 %v2172
          %v2716 = vunpack.c.l.b16 %v2173
          %v2717 = vunpack.c.h.b16 %v2173
          %v2718 = vunpack.c.l.b16 %v2174
          %v2719 = vunpack.c.h.b16 %v2174
          %v2720 = vunpack.c.l.b16 %v2175
          %v2721 = vunpack.c.h.b16 %v2175
          %v2722 = vunpack.c.l.b16 %v2176
          %v2723 = vunpack.c.h.b16 %v2176
          %v2724 = vunpack.c.l.b16 %v2177
          %v2725 = vunpack.c.h.b16 %v2177
          %v2726 = vunpack.c.l.b16 %v2178
          %v2727 = vunpack.c.h.b16 %v2178
          %v2728 = vunpack.c.l.b16 %v2179
          %v2729 = vunpack.c.h.b16 %v2179
          %v2730 = vunpack.c.l.b16 %v2180
          %v2731 = vunpack.c.h.b16 %v2180
          %v2732 = vunpack.c.l.b16 %v2181
          %v2733 = vunpack.c.h.b16 %v2181
          %v2734 = vunpack.c.l.b16 %v2182
          %v2735 = vunpack.c.h.b16 %v2182
          %v2736 = vunpack.c.l.b16 %v2183
          %v2737 = vunpack.c.h.b16 %v2183
          %v2738 = vunpack.c.l.b16 %v2184
          %v2739 = vunpack.c.h.b16 %v2184
          %v2740 = vunpack.c.l.b16 %v2185
          %v2741 = vunpack.c.h.b16 %v2185
          %v2742 = vunpack.c.l.b16 %v2186
          %v2743 = vunpack.c.h.b16 %v2186
          %v2744 = vunpack.c.l.b16 %v2187
          %v2745 = vunpack.c.h.b16 %v2187
          %v2746 = vunpack.c.l.b16 %v2188
          %v2747 = vunpack.c.h.b16 %v2188
          %v2748 = vunpack.c.l.b16 %v2189
          %v2749 = vunpack.c.h.b16 %v2189
          %v2750 = vunpack.c.l.b16 %v2190
          %v2751 = vunpack.c.h.b16 %v2190
          %v2752 = vunpack.c.l.b16 %v2191
          %v2753 = vunpack.c.h.b16 %v2191
          %v2754 = vunpack.c.l.b16 %v2192
          %v2755 = vunpack.c.h.b16 %v2192
          %v2756 = vunpack.c.l.b16 %v2193
          %v2757 = vunpack.c.h.b16 %v2193
          %v2758 = vunpack.c.l.b16 %v2194
          %v2759 = vunpack.c.h.b16 %v2194
          %v2760 = vunpack.c.l.b16 %v2195
          %v2761 = vunpack.c.h.b16 %v2195
          %v2762 = vunpack.c.l.b16 %v2196
          %v2763 = vunpack.c.h.b16 %v2196
          %v2764 = vunpack.c.l.b16 %v2197
          %v2765 = vunpack.c.h.b16 %v2197
          %v2766 = vunpack.c.l.b16 %v2198
          %v2767 = vunpack.c.h.b16 %v2198
          %v2768 = vunpack.c.l.b16 %v2199
          %v2769 = vunpack.c.h.b16 %v2199
          %v2770 = vunpack.c.l.b16 %v2200
          %v2771 = vunpack.c.h.b16 %v2200
          %v2772 = vunpack.c.l.b16 %v2201
          %v2773 = vunpack.c.h.b16 %v2201
          %v2774 = vunpack.c.l.b16 %v2202
          %v2775 = vunpack.c.h.b16 %v2202
          %v2776 = vunpack.c.l.b16 %v2203
          %v2777 = vunpack.c.h.b16 %v2203
          %v2778 = vunpack.c.l.b16 %v2204
          %v2779 = vunpack.c.h.b16 %v2204
          %v2780 = vunpack.c.l.b16 %v2205
          %v2781 = vunpack.c.h.b16 %v2205
          %v2782 = vunpack.c.l.b16 %v2206
          %v2783 = vunpack.c.h.b16 %v2206
          %v2784 = vunpack.c.l.b16 %v2207
          %v2785 = vunpack.c.h.b16 %v2207
          %v2786 = vunpack.c.l.b16 %v2208
          %v2787 = vunpack.c.h.b16 %v2208
          %v2788 = vunpack.c.l.b16 %v2209
          %v2789 = vunpack.c.h.b16 %v2209
          %v2790 = vunpack.c.l.b16 %v2210
          %v2791 = vunpack.c.h.b16 %v2210
          %v2792 = vunpack.c.l.b16 %v2211
          %v2793 = vunpack.c.h.b16 %v2211
          %v2794 = vunpack.c.l.b16 %v2212
          %v2795 = vunpack.c.h.b16 %v2212
          %v2796 = vunpack.c.l.b16 %v2213
          %v2797 = vunpack.c.h.b16 %v2213
          %v2798 = vunpack.c.l.b16 %v2214
          %v2799 = vunpack.c.h.b16 %v2214
          %v2800 = vunpack.c.l.b16 %v2215
          %v2801 = vunpack.c.h.b16 %v2215
          %v2802 = vunpack.c.l.b16 %v2216
          %v2803 = vunpack.c.h.b16 %v2216
          %v2804 = vunpack.c.l.b16 %v2217
          %v2805 = vunpack.c.h.b16 %v2217
          %v2806 = vunpack.c.l.b16 %v2218
          %v2807 = vunpack.c.h.b16 %v2218
          %v2808 = vunpack.c.l.b16 %v2219
          %v2809 = vunpack.c.h.b16 %v2219
          %v2810 = vunpack.c.l.b16 %v2220
          %v2811 = vunpack.c.h.b16 %v2220
          %v2812 = vunpack.c.l.b16 %v2221
          %v2813 = vunpack.c.h.b16 %v2221
          %v2814 = vunpack.c.l.b16 %v2222
          %v2815 = vunpack.c.h.b16 %v2222
          %v2816 = vunpack.c.l.b16 %v2223
          %v2817 = vunpack.c.h.b16 %v2223
          %v2818 = vunpack.c.l.b16 %v2224
          %v2819 = vunpack.c.h.b16 %v2224
          %v2820 = vunpack.c.l.b16 %v2225
          %v2821 = vunpack.c.h.b16 %v2225
          %v2822 = vunpack.c.l.b16 %v2226
          %v2823 = vunpack.c.h.b16 %v2226
          %v2824 = vpack.c.b16 %v2444, %v2440
          %v2825 = vpack.c.b16 %v2445, %v2441
          %v2826 = vpack.c.b16 %v2446, %v2442
          %v2827 = vpack.c.b16 %v2447, %v2443
          %v2828 = vpack.c.b16 %v2452, %v2448
          %v2829 = vpack.c.b16 %v2453, %v2449
          %v2830 = vpack.c.b16 %v2454, %v2450
          %v2831 = vpack.c.b16 %v2455, %v2451
          %v2832 = vpack.c.b16 %v2460, %v2456
          %v2833 = vpack.c.b16 %v2461, %v2457
          %v2834 = vpack.c.b16 %v2462, %v2458
          %v2835 = vpack.c.b16 %v2463, %v2459
          %v2836 = vpack.c.b16 %v2468, %v2464
          %v2837 = vpack.c.b16 %v2469, %v2465
          %v2838 = vpack.c.b16 %v2470, %v2466
          %v2839 = vpack.c.b16 %v2471, %v2467
          %v2840 = vpack.c.b16 %v2476, %v2472
          %v2841 = vpack.c.b16 %v2477, %v2473
          %v2842 = vpack.c.b16 %v2478, %v2474
          %v2843 = vpack.c.b16 %v2479, %v2475
          %v2844 = vpack.c.b16 %v2484, %v2480
          %v2845 = vpack.c.b16 %v2485, %v2481
          %v2846 = vpack.c.b16 %v2486, %v2482
          %v2847 = vpack.c.b16 %v2487, %v2483
          %v2848 = vpack.c.b16 %v2492, %v2488
          %v2849 = vpack.c.b16 %v2493, %v2489
          %v2850 = vpack.c.b16 %v2494, %v2490
          %v2851 = vpack.c.b16 %v2495, %v2491
          %v2852 = vpack.c.b16 %v2500, %v2496
          %v2853 = vpack.c.b16 %v2501, %v2497
          %v2854 = vpack.c.b16 %v2502, %v2498
          %v2855 = vpack.c.b16 %v2503, %v2499
          %v2856 = vpack.c.b16 %v2508, %v2504
          %v2857 = vpack.c.b16 %v2509, %v2505
          %v2858 = vpack.c.b16 %v2510, %v2506
          %v2859 = vpack.c.b16 %v2511, %v2507
          %v2860 = vpack.c.b16 %v2516, %v2512
          %v2861 = vpack.c.b16 %v2517, %v2513
          %v2862 = vpack.c.b16 %v2518, %v2514
          %v2863 = vpack.c.b16 %v2519, %v2515
          %v2864 = vpack.c.b16 %v2524, %v2520
          %v2865 = vpack.c.b16 %v2525, %v2521
          %v2866 = vpack.c.b16 %v2526, %v2522
          %v2867 = vpack.c.b16 %v2527, %v2523
          %v2868 = vpack.c.b16 %v2532, %v2528
          %v2869 = vpack.c.b16 %v2533, %v2529
          %v2870 = vpack.c.b16 %v2534, %v2530
          %v2871 = vpack.c.b16 %v2535, %v2531
          %v2872 = vpack.c.b16 %v2540, %v2536
          %v2873 = vpack.c.b16 %v2541, %v2537
          %v2874 = vpack.c.b16 %v2542, %v2538
          %v2875 = vpack.c.b16 %v2543, %v2539
          %v2876 = vpack.c.b16 %v2548, %v2544
          %v2877 = vpack.c.b16 %v2549, %v2545
          %v2878 = vpack.c.b16 %v2550, %v2546
          %v2879 = vpack.c.b16 %v2551, %v2547
          %v2880 = vpack.c.b16 %v2556, %v2552
          %v2881 = vpack.c.b16 %v2557, %v2553
          %v2882 = vpack.c.b16 %v2558, %v2554
          %v2883 = vpack.c.b16 %v2559, %v2555
          %v2884 = vpack.c.b16 %v2564, %v2560
          %v2885 = vpack.c.b16 %v2565, %v2561
          %v2886 = vpack.c.b16 %v2566, %v2562
          %v2887 = vpack.c.b16 %v2567, %v2563
          %v2888 = vpack.c.b16 %v2572, %v2568
          %v2889 = vpack.c.b16 %v2573, %v2569
          %v2890 = vpack.c.b16 %v2574, %v2570
          %v2891 = vpack.c.b16 %v2575, %v2571
          %v2892 = vpack.c.b16 %v2580, %v2576
          %v2893 = vpack.c.b16 %v2581, %v2577
          %v2894 = vpack.c.b16 %v2582, %v2578
          %v2895 = vpack.c.b16 %v2583, %v2579
          %v2896 = vpack.c.b16 %v2588, %v2584
          %v2897 = vpack.c.b16 %v2589, %v2585
          %v2898 = vpack.c.b16 %v2590, %v2586
          %v2899 = vpack.c.b16 %v2591, %v2587
          %v2900 = vpack.c.b16 %v2596, %v2592
          %v2901 = vpack.c.b16 %v2597, %v2593
          %v2902 = vpack.c.b16 %v2598, %v2594
          %v2903 = vpack.c.b16 %v2599, %v2595
          %v2904 = vpack.c.b16 %v2604, %v2600
          %v2905 = vpack.c.b16 %v2605, %v2601
          %v2906 = vpack.c.b16 %v2606, %v2602
          %v2907 = vpack.c.b16 %v2607, %v2603
          %v2908 = vpack.c.b16 %v2612, %v2608
          %v2909 = vpack.c.b16 %v2613, %v2609
          %v2910 = vpack.c.b16 %v2614, %v2610
          %v2911 = vpack.c.b16 %v2615, %v2611
          %v2912 = vpack.c.b16 %v2620, %v2616
          %v2913 = vpack.c.b16 %v2621, %v2617
          %v2914 = vpack.c.b16 %v2622, %v2618
          %v2915 = vpack.c.b16 %v2623, %v2619
          %v2916 = vpack.c.b16 %v2628, %v2624
          %v2917 = vpack.c.b16 %v2629, %v2625
          %v2918 = vpack.c.b16 %v2630, %v2626
          %v2919 = vpack.c.b16 %v2631, %v2627
          %v2920 = vpack.c.b16 %v2636, %v2632
          %v2921 = vpack.c.b16 %v2637, %v2633
          %v2922 = vpack.c.b16 %v2638, %v2634
          %v2923 = vpack.c.b16 %v2639, %v2635
          %v2924 = vpack.c.b16 %v2644, %v2640
          %v2925 = vpack.c.b16 %v2645, %v2641
          %v2926 = vpack.c.b16 %v2646, %v2642
          %v2927 = vpack.c.b16 %v2647, %v2643
          %v2928 = vpack.c.b16 %v2652, %v2648
          %v2929 = vpack.c.b16 %v2653, %v2649
          %v2930 = vpack.c.b16 %v2654, %v2650
          %v2931 = vpack.c.b16 %v2655, %v2651
          %v2932 = vpack.c.b16 %v2660, %v2656
          %v2933 = vpack.c.b16 %v2661, %v2657
          %v2934 = vpack.c.b16 %v2662, %v2658
          %v2935 = vpack.c.b16 %v2663, %v2659
          %v2936 = vpack.c.b16 %v2668, %v2664
          %v2937 = vpack.c.b16 %v2669, %v2665
          %v2938 = vpack.c.b16 %v2670, %v2666
          %v2939 = vpack.c.b16 %v2671, %v2667
          %v2940 = vpack.c.b16 %v2676, %v2672
          %v2941 = vpack.c.b16 %v2677, %v2673
          %v2942 = vpack.c.b16 %v2678, %v2674
          %v2943 = vpack.c.b16 %v2679, %v2675
          %v2944 = vpack.c.b16 %v2684, %v2680
          %v2945 = vpack.c.b16 %v2685, %v2681
          %v2946 = vpack.c.b16 %v2686, %v2682
          %v2947 = vpack.c.b16 %v2687, %v2683
          %v2948 = vpack.c.b16 %v2692, %v2688
          %v2949 = vpack.c.b16 %v2693, %v2689
          %v2950 = vpack.c.b16 %v2694, %v2690
          %v2951 = vpack.c.b16 %v2695, %v2691
          %v2952 = vpack.c.b16 %v2700, %v2696
          %v2953 = vpack.c.b16 %v2701, %v2697
          %v2954 = vpack.c.b16 %v2702, %v2698
          %v2955 = vpack.c.b16 %v2703, %v2699
          %v2956 = vpack.c.b16 %v2708, %v2704
          %v2957 = vpack.c.b16 %v2709, %v2705
          %v2958 = vpack.c.b16 %v2710, %v2706
          %v2959 = vpack.c.b16 %v2711, %v2707
          %v2960 = vpack.c.b16 %v2716, %v2712
          %v2961 = vpack.c.b16 %v2717, %v2713
          %v2962 = vpack.c.b16 %v2718, %v2714
          %v2963 = vpack.c.b16 %v2719, %v2715
          %v2964 = vpack.c.b16 %v2724, %v2720
          %v2965 = vpack.c.b16 %v2725, %v2721
          %v2966 = vpack.c.b16 %v2726, %v2722
          %v2967 = vpack.c.b16 %v2727, %v2723
          %v2968 = vpack.c.b16 %v2732, %v2728
          %v2969 = vpack.c.b16 %v2733, %v2729
          %v2970 = vpack.c.b16 %v2734, %v2730
          %v2971 = vpack.c.b16 %v2735, %v2731
          %v2972 = vpack.c.b16 %v2740, %v2736
          %v2973 = vpack.c.b16 %v2741, %v2737
          %v2974 = vpack.c.b16 %v2742, %v2738
          %v2975 = vpack.c.b16 %v2743, %v2739
          %v2976 = vpack.c.b16 %v2748, %v2744
          %v2977 = vpack.c.b16 %v2749, %v2745
          %v2978 = vpack.c.b16 %v2750, %v2746
          %v2979 = vpack.c.b16 %v2751, %v2747
          %v2980 = vpack.c.b16 %v2756, %v2752
          %v2981 = vpack.c.b16 %v2757, %v2753
          %v2982 = vpack.c.b16 %v2758, %v2754
          %v2983 = vpack.c.b16 %v2759, %v2755
          %v2984 = vpack.c.b16 %v2764, %v2760
          %v2985 = vpack.c.b16 %v2765, %v2761
          %v2986 = vpack.c.b16 %v2766, %v2762
          %v2987 = vpack.c.b16 %v2767, %v2763
          %v2988 = vpack.c.b16 %v2772, %v2768
          %v2989 = vpack.c.b16 %v2773, %v2769
          %v2990 = vpack.c.b16 %v2774, %v2770
          %v2991 = vpack.c.b16 %v2775, %v2771
          %v2992 = vpack.c.b16 %v2780, %v2776
          %v2993 = vpack.c.b16 %v2781, %v2777
          %v2994 = vpack.c.b16 %v2782, %v2778
          %v2995 = vpack.c.b16 %v2783, %v2779
          %v2996 = vpack.c.b16 %v2788, %v2784
          %v2997 = vpack.c.b16 %v2789, %v2785
          %v2998 = vpack.c.b16 %v2790, %v2786
          %v2999 = vpack.c.b16 %v2791, %v2787
          %v3000 = vpack.c.b16 %v2796, %v2792
          %v3001 = vpack.c.b16 %v2797, %v2793
          %v3002 = vpack.c.b16 %v2798, %v2794
          %v3003 = vpack.c.b16 %v2799, %v2795
          %v3004 = vpack.c.b16 %v2804, %v2800
          %v3005 = vpack.c.b16 %v2805, %v2801
          %v3006 = vpack.c.b16 %v2806, %v2802
          %v3007 = vpack.c.b16 %v2807, %v2803
          %v3008 = vpack.c.b16 %v2812, %v2808
          %v3009 = vpack.c.b16 %v2813, %v2809
          %v3010 = vpack.c.b16 %v2814, %v2810
          %v3011 = vpack.c.b16 %v2815, %v2811
          %v3012 = vpack.c.b16 %v2820, %v2816
          %v3013 = vpack.c.b16 %v2821, %v2817
          %v3014 = vpack.c.b16 %v2822, %v2818
          %v3015 = vpack.c.b16 %v2823, %v2819
          %3208 = vmatpush.bf16.msra.mxu0 %v2852
          %3209 = vmatpush.bf16.msra.mxu0 %v2848
          %3210 = vmatpush.bf16.msra.mxu0 %v2844
          %3211 = vmatpush.bf16.msra.mxu0 %v2840
          %3212 = vmatpush.bf16.msra.mxu0 %v2836
          %3213 = vmatpush.bf16.msra.mxu0 %v2832
          %3214 = vmatpush.bf16.msra.mxu0 %v2828
          %3215 = vmatpush.bf16.msra.mxu0 %v2824
          %3216 = vmatmul.bf16.gmra.mxu0 %v2236
          %v3217 = vpop.f32.mrf.mxu0
          %v3218 = vadd.f32 0.0, %v3217
          %v3219 = vpop.f32.mrf.mxu0
          %3220 = vdwg.mxu0
          %3221 = vmatpush.bf16.msra.mxu0 %v2884
          %3222 = vmatpush.bf16.msra.mxu0 %v2880
          %3223 = vmatpush.bf16.msra.mxu0 %v2876
          %3224 = vmatpush.bf16.msra.mxu0 %v2872
          %3225 = vmatpush.bf16.msra.mxu0 %v2868
          %3226 = vmatpush.bf16.msra.mxu0 %v2864
          %3227 = vmatpush.bf16.msra.mxu0 %v2860
          %3228 = vmatpush.bf16.msra.mxu0 %v2856
          %3229 = vmatmul.bf16.gmra.mxu0 %v2237
          %v3230 = vpop.f32.mrf.mxu0
          %v3231 = vadd.f32 %v3218, %v3230
          %v3232 = vpop.f32.mrf.mxu0
          %3233 = vdwg.mxu0
          %3234 = vmatpush.bf16.msra.mxu0 %v2916
          %3235 = vmatpush.bf16.msra.mxu0 %v2912
          %3236 = vmatpush.bf16.msra.mxu0 %v2908
          %3237 = vmatpush.bf16.msra.mxu0 %v2904
          %3238 = vmatpush.bf16.msra.mxu0 %v2900
          %3239 = vmatpush.bf16.msra.mxu0 %v2896
          %3240 = vmatpush.bf16.msra.mxu0 %v2892
          %3241 = vmatpush.bf16.msra.mxu0 %v2888
          %3242 = vmatmul.bf16.gmra.mxu0 %v2238
          %v3243 = vpop.f32.mrf.mxu0
          %v3244 = vadd.f32 %v3231, %v3243
          %v3245 = vpop.f32.mrf.mxu0
          %3246 = vdwg.mxu0
          %3247 = vmatpush.bf16.msra.mxu0 %v2948
          %3248 = vmatpush.bf16.msra.mxu0 %v2944
          %3249 = vmatpush.bf16.msra.mxu0 %v2940
          %3250 = vmatpush.bf16.msra.mxu0 %v2936
          %3251 = vmatpush.bf16.msra.mxu0 %v2932
          %3252 = vmatpush.bf16.msra.mxu0 %v2928
          %3253 = vmatpush.bf16.msra.mxu0 %v2924
          %3254 = vmatpush.bf16.msra.mxu0 %v2920
          %3255 = vmatmul.bf16.gmra.mxu0 %v2239
          %v3256 = vpop.f32.mrf.mxu0
          %v3257 = vadd.f32 %v3244, %v3256
          %v3258 = vpop.f32.mrf.mxu0
          %3259 = vdwg.mxu0
          %3260 = vmatpush.bf16.msra.mxu0 %v2980
          %3261 = vmatpush.bf16.msra.mxu0 %v2976
          %3262 = vmatpush.bf16.msra.mxu0 %v2972
          %3263 = vmatpush.bf16.msra.mxu0 %v2968
          %3264 = vmatpush.bf16.msra.mxu0 %v2964
          %3265 = vmatpush.bf16.msra.mxu0 %v2960
          %3266 = vmatpush.bf16.msra.mxu0 %v2956
          %3267 = vmatpush.bf16.msra.mxu0 %v2952
          %3268 = vmatmul.bf16.gmra.mxu0 %v2240
          %v3269 = vpop.f32.mrf.mxu0
          %v3270 = vadd.f32 %v3257, %v3269
          %v3271 = vpop.f32.mrf.mxu0
          %3272 = vdwg.mxu0
          %3273 = vmatpush.bf16.msra.mxu0 %v3012
          %3274 = vmatpush.bf16.msra.mxu0 %v3008
          %3275 = vmatpush.bf16.msra.mxu0 %v3004
          %3276 = vmatpush.bf16.msra.mxu0 %v3000
          %3277 = vmatpush.bf16.msra.mxu0 %v2996
          %3278 = vmatpush.bf16.msra.mxu0 %v2992
          %3279 = vmatpush.bf16.msra.mxu0 %v2988
          %3280 = vmatpush.bf16.msra.mxu0 %v2984
          %3281 = vmatmul.bf16.gmra.mxu0 %v2241
          %v3282 = vpop.f32.mrf.mxu0
          %v3283 = vadd.f32 %v3270, %v3282
          %v3284 = vpop.f32.mrf.mxu0
          %3285 = vdwg.mxu0
          %3286 = vmatpush.bf16.msra.mxu0 %v2853
          %3287 = vmatpush.bf16.msra.mxu0 %v2849
          %3288 = vmatpush.bf16.msra.mxu0 %v2845
          %3289 = vmatpush.bf16.msra.mxu0 %v2841
          %3290 = vmatpush.bf16.msra.mxu0 %v2837
          %3291 = vmatpush.bf16.msra.mxu0 %v2833
          %3292 = vmatpush.bf16.msra.mxu0 %v2829
          %3293 = vmatpush.bf16.msra.mxu0 %v2825
          %3294 = vmatmul.bf16.gmra.mxu0 %v2236
          %v3295 = vpop.f32.mrf.mxu0
          %v3296 = vadd.f32 0.0, %v3295
          %v3297 = vpop.f32.mrf.mxu0
          %3298 = vdwg.mxu0
          %3299 = vmatpush.bf16.msra.mxu0 %v2885
          %3300 = vmatpush.bf16.msra.mxu0 %v2881
          %3301 = vmatpush.bf16.msra.mxu0 %v2877
          %3302 = vmatpush.bf16.msra.mxu0 %v2873
          %3303 = vmatpush.bf16.msra.mxu0 %v2869
          %3304 = vmatpush.bf16.msra.mxu0 %v2865
          %3305 = vmatpush.bf16.msra.mxu0 %v2861
          %3306 = vmatpush.bf16.msra.mxu0 %v2857
          %3307 = vmatmul.bf16.gmra.mxu0 %v2237
          %v3308 = vpop.f32.mrf.mxu0
          %v3309 = vadd.f32 %v3296, %v3308
          %v3310 = vpop.f32.mrf.mxu0
          %3311 = vdwg.mxu0
          %3312 = vmatpush.bf16.msra.mxu0 %v2917
          %3313 = vmatpush.bf16.msra.mxu0 %v2913
          %3314 = vmatpush.bf16.msra.mxu0 %v2909
          %3315 = vmatpush.bf16.msra.mxu0 %v2905
          %3316 = vmatpush.bf16.msra.mxu0 %v2901
          %3317 = vmatpush.bf16.msra.mxu0 %v2897
          %3318 = vmatpush.bf16.msra.mxu0 %v2893
          %3319 = vmatpush.bf16.msra.mxu0 %v2889
          %3320 = vmatmul.bf16.gmra.mxu0 %v2238
          %v3321 = vpop.f32.mrf.mxu0
          %v3322 = vadd.f32 %v3309, %v3321
          %v3323 = vpop.f32.mrf.mxu0
          %3324 = vdwg.mxu0
          %3325 = vmatpush.bf16.msra.mxu0 %v2949
          %3326 = vmatpush.bf16.msra.mxu0 %v2945
          %3327 = vmatpush.bf16.msra.mxu0 %v2941
          %3328 = vmatpush.bf16.msra.mxu0 %v2937
          %3329 = vmatpush.bf16.msra.mxu0 %v2933
          %3330 = vmatpush.bf16.msra.mxu0 %v2929
          %3331 = vmatpush.bf16.msra.mxu0 %v2925
          %3332 = vmatpush.bf16.msra.mxu0 %v2921
          %3333 = vmatmul.bf16.gmra.mxu0 %v2239
          %v3334 = vpop.f32.mrf.mxu0
          %v3335 = vadd.f32 %v3322, %v3334
          %v3336 = vpop.f32.mrf.mxu0
          %3337 = vdwg.mxu0
          %3338 = vmatpush.bf16.msra.mxu0 %v2981
          %3339 = vmatpush.bf16.msra.mxu0 %v2977
          %3340 = vmatpush.bf16.msra.mxu0 %v2973
          %3341 = vmatpush.bf16.msra.mxu0 %v2969
          %3342 = vmatpush.bf16.msra.mxu0 %v2965
          %3343 = vmatpush.bf16.msra.mxu0 %v2961
          %3344 = vmatpush.bf16.msra.mxu0 %v2957
          %3345 = vmatpush.bf16.msra.mxu0 %v2953
          %3346 = vmatmul.bf16.gmra.mxu0 %v2240
          %v3347 = vpop.f32.mrf.mxu0
          %v3348 = vadd.f32 %v3335, %v3347
          %v3349 = vpop.f32.mrf.mxu0
          %3350 = vdwg.mxu0
          %3351 = vmatpush.bf16.msra.mxu0 %v3013
          %3352 = vmatpush.bf16.msra.mxu0 %v3009
          %3353 = vmatpush.bf16.msra.mxu0 %v3005
          %3354 = vmatpush.bf16.msra.mxu0 %v3001
          %3355 = vmatpush.bf16.msra.mxu0 %v2997
          %3356 = vmatpush.bf16.msra.mxu0 %v2993
          %3357 = vmatpush.bf16.msra.mxu0 %v2989
          %3358 = vmatpush.bf16.msra.mxu0 %v2985
          %3359 = vmatmul.bf16.gmra.mxu0 %v2241
          %v3360 = vpop.f32.mrf.mxu0
          %v3361 = vadd.f32 %v3348, %v3360
          %v3362 = vpop.f32.mrf.mxu0
          %3363 = vdwg.mxu0
          %3364 = vmatpush.bf16.msra.mxu0 %v2854
          %3365 = vmatpush.bf16.msra.mxu0 %v2850
          %3366 = vmatpush.bf16.msra.mxu0 %v2846
          %3367 = vmatpush.bf16.msra.mxu0 %v2842
          %3368 = vmatpush.bf16.msra.mxu0 %v2838
          %3369 = vmatpush.bf16.msra.mxu0 %v2834
          %3370 = vmatpush.bf16.msra.mxu0 %v2830
          %3371 = vmatpush.bf16.msra.mxu0 %v2826
          %3372 = vmatmul.bf16.gmra.mxu0 %v2236
          %v3373 = vpop.f32.mrf.mxu0
          %v3374 = vadd.f32 0.0, %v3373
          %v3375 = vpop.f32.mrf.mxu0
          %3376 = vdwg.mxu0
          %3377 = vmatpush.bf16.msra.mxu0 %v2886
          %3378 = vmatpush.bf16.msra.mxu0 %v2882
          %3379 = vmatpush.bf16.msra.mxu0 %v2878
          %3380 = vmatpush.bf16.msra.mxu0 %v2874
          %3381 = vmatpush.bf16.msra.mxu0 %v2870
          %3382 = vmatpush.bf16.msra.mxu0 %v2866
          %3383 = vmatpush.bf16.msra.mxu0 %v2862
          %3384 = vmatpush.bf16.msra.mxu0 %v2858
          %3385 = vmatmul.bf16.gmra.mxu0 %v2237
          %v3386 = vpop.f32.mrf.mxu0
          %v3387 = vadd.f32 %v3374, %v3386
          %v3388 = vpop.f32.mrf.mxu0
          %3389 = vdwg.mxu0
          %3390 = vmatpush.bf16.msra.mxu0 %v2918
          %3391 = vmatpush.bf16.msra.mxu0 %v2914
          %3392 = vmatpush.bf16.msra.mxu0 %v2910
          %3393 = vmatpush.bf16.msra.mxu0 %v2906
          %3394 = vmatpush.bf16.msra.mxu0 %v2902
          %3395 = vmatpush.bf16.msra.mxu0 %v2898
          %3396 = vmatpush.bf16.msra.mxu0 %v2894
          %3397 = vmatpush.bf16.msra.mxu0 %v2890
          %3398 = vmatmul.bf16.gmra.mxu0 %v2238
          %v3399 = vpop.f32.mrf.mxu0
          %v3400 = vadd.f32 %v3387, %v3399
          %v3401 = vpop.f32.mrf.mxu0
          %3402 = vdwg.mxu0
          %3403 = vmatpush.bf16.msra.mxu0 %v2950
          %3404 = vmatpush.bf16.msra.mxu0 %v2946
          %3405 = vmatpush.bf16.msra.mxu0 %v2942
          %3406 = vmatpush.bf16.msra.mxu0 %v2938
          %3407 = vmatpush.bf16.msra.mxu0 %v2934
          %3408 = vmatpush.bf16.msra.mxu0 %v2930
          %3409 = vmatpush.bf16.msra.mxu0 %v2926
          %3410 = vmatpush.bf16.msra.mxu0 %v2922
          %3411 = vmatmul.bf16.gmra.mxu0 %v2239
          %v3412 = vpop.f32.mrf.mxu0
          %v3413 = vadd.f32 %v3400, %v3412
          %v3414 = vpop.f32.mrf.mxu0
          %3415 = vdwg.mxu0
          %3416 = vmatpush.bf16.msra.mxu0 %v2982
          %3417 = vmatpush.bf16.msra.mxu0 %v2978
          %3418 = vmatpush.bf16.msra.mxu0 %v2974
          %3419 = vmatpush.bf16.msra.mxu0 %v2970
          %3420 = vmatpush.bf16.msra.mxu0 %v2966
          %3421 = vmatpush.bf16.msra.mxu0 %v2962
          %3422 = vmatpush.bf16.msra.mxu0 %v2958
          %3423 = vmatpush.bf16.msra.mxu0 %v2954
          %3424 = vmatmul.bf16.gmra.mxu0 %v2240
          %v3425 = vpop.f32.mrf.mxu0
          %v3426 = vadd.f32 %v3413, %v3425
          %v3427 = vpop.f32.mrf.mxu0
          %3428 = vdwg.mxu0
          %3429 = vmatpush.bf16.msra.mxu0 %v3014
          %3430 = vmatpush.bf16.msra.mxu0 %v3010
          %3431 = vmatpush.bf16.msra.mxu0 %v3006
          %3432 = vmatpush.bf16.msra.mxu0 %v3002
          %3433 = vmatpush.bf16.msra.mxu0 %v2998
          %3434 = vmatpush.bf16.msra.mxu0 %v2994
          %3435 = vmatpush.bf16.msra.mxu0 %v2990
          %3436 = vmatpush.bf16.msra.mxu0 %v2986
          %3437 = vmatmul.bf16.gmra.mxu0 %v2241
          %v3438 = vpop.f32.mrf.mxu0
          %v3439 = vadd.f32 %v3426, %v3438
          %v3440 = vpop.f32.mrf.mxu0
          %3441 = vdwg.mxu0
          %3442 = vmatpush.bf16.msra.mxu0 %v2855
          %3443 = vmatpush.bf16.msra.mxu0 %v2851
          %3444 = vmatpush.bf16.msra.mxu0 %v2847
          %3445 = vmatpush.bf16.msra.mxu0 %v2843
          %3446 = vmatpush.bf16.msra.mxu0 %v2839
          %3447 = vmatpush.bf16.msra.mxu0 %v2835
          %3448 = vmatpush.bf16.msra.mxu0 %v2831
          %3449 = vmatpush.bf16.msra.mxu0 %v2827
          %3450 = vmatmul.bf16.gmra.mxu0 %v2236
          %v3451 = vpop.f32.mrf.mxu0
          %v3452 = vadd.f32 0.0, %v3451
          %v3453 = vpop.f32.mrf.mxu0
          %3454 = vdwg.mxu0
          %3455 = vmatpush.bf16.msra.mxu0 %v2887
          %3456 = vmatpush.bf16.msra.mxu0 %v2883
          %3457 = vmatpush.bf16.msra.mxu0 %v2879
          %3458 = vmatpush.bf16.msra.mxu0 %v2875
          %3459 = vmatpush.bf16.msra.mxu0 %v2871
          %3460 = vmatpush.bf16.msra.mxu0 %v2867
          %3461 = vmatpush.bf16.msra.mxu0 %v2863
          %3462 = vmatpush.bf16.msra.mxu0 %v2859
          %3463 = vmatmul.bf16.gmra.mxu0 %v2237
          %v3464 = vpop.f32.mrf.mxu0
          %v3465 = vadd.f32 %v3452, %v3464
          %v3466 = vpop.f32.mrf.mxu0
          %3467 = vdwg.mxu0
          %3468 = vmatpush.bf16.msra.mxu0 %v2919
          %3469 = vmatpush.bf16.msra.mxu0 %v2915
          %3470 = vmatpush.bf16.msra.mxu0 %v2911
          %3471 = vmatpush.bf16.msra.mxu0 %v2907
          %3472 = vmatpush.bf16.msra.mxu0 %v2903
          %3473 = vmatpush.bf16.msra.mxu0 %v2899
          %3474 = vmatpush.bf16.msra.mxu0 %v2895
          %3475 = vmatpush.bf16.msra.mxu0 %v2891
          %3476 = vmatmul.bf16.gmra.mxu0 %v2238
          %v3477 = vpop.f32.mrf.mxu0
          %v3478 = vadd.f32 %v3465, %v3477
          %v3479 = vpop.f32.mrf.mxu0
          %3480 = vdwg.mxu0
          %3481 = vmatpush.bf16.msra.mxu0 %v2951
          %3482 = vmatpush.bf16.msra.mxu0 %v2947
          %3483 = vmatpush.bf16.msra.mxu0 %v2943
          %3484 = vmatpush.bf16.msra.mxu0 %v2939
          %3485 = vmatpush.bf16.msra.mxu0 %v2935
          %3486 = vmatpush.bf16.msra.mxu0 %v2931
          %3487 = vmatpush.bf16.msra.mxu0 %v2927
          %3488 = vmatpush.bf16.msra.mxu0 %v2923
          %3489 = vmatmul.bf16.gmra.mxu0 %v2239
          %v3490 = vpop.f32.mrf.mxu0
          %v3491 = vadd.f32 %v3478, %v3490
          %v3492 = vpop.f32.mrf.mxu0
          %3493 = vdwg.mxu0
          %3494 = vmatpush.bf16.msra.mxu0 %v2983
          %3495 = vmatpush.bf16.msra.mxu0 %v2979
          %3496 = vmatpush.bf16.msra.mxu0 %v2975
          %3497 = vmatpush.bf16.msra.mxu0 %v2971
          %3498 = vmatpush.bf16.msra.mxu0 %v2967
          %3499 = vmatpush.bf16.msra.mxu0 %v2963
          %3500 = vmatpush.bf16.msra.mxu0 %v2959
          %3501 = vmatpush.bf16.msra.mxu0 %v2955
          %3502 = vmatmul.bf16.gmra.mxu0 %v2240
          %v3503 = vpop.f32.mrf.mxu0
          %v3504 = vadd.f32 %v3491, %v3503
          %v3505 = vpop.f32.mrf.mxu0
          %3506 = vdwg.mxu0
          %3507 = vmatpush.bf16.msra.mxu0 %v3015
          %3508 = vmatpush.bf16.msra.mxu0 %v3011
          %3509 = vmatpush.bf16.msra.mxu0 %v3007
          %3510 = vmatpush.bf16.msra.mxu0 %v3003
          %3511 = vmatpush.bf16.msra.mxu0 %v2999
          %3512 = vmatpush.bf16.msra.mxu0 %v2995
          %3513 = vmatpush.bf16.msra.mxu0 %v2991
          %3514 = vmatpush.bf16.msra.mxu0 %v2987
          %3515 = vmatmul.bf16.gmra.mxu0 %v2241
          %v3516 = vpop.f32.mrf.mxu0
          %v3517 = vadd.f32 %v3504, %v3516
          %v3518 = vpop.f32.mrf.mxu0
          %3519 = vdwg.mxu0
          %v3520 = vadd.f32 %v2028, %v3283
          %v3521 = vadd.f32 %v2029, %v3361
          %v3522 = vld [vmem:[#allocation10] sm:$0x3]
          %v3524 = vperm.slane %v3522, 0
          %v3525 = vperm.slane %v3522, 1
          %v3528 = vadd.f32 %v3520, %v3524
          %v3529 = vadd.f32 %v3521, %v3525
          %v3530 = vmax.f32 %v3528, 0.0
          %v3531 = vmax.f32 %v3529, 0.0
          %v3532 = vld [vmem:[#allocation12] sm:$0x3]
          %v3534 = vperm.slane %v3532, 0
          %v3535 = vperm.slane %v3532, 1
          %v3538 = vadd.f32 %v2030, %v3534
          %v3539 = vadd.f32 %v2031, %v3535
          %v3540 = vmax.f32 %v3538, 0.0
          %v3541 = vmax.f32 %v3539, 0.0
          %v3542 = vld [vmem:[#allocation13] sm:$0x3]
          %v3544 = vperm.slane %v3542, 0
          %v3545 = vperm.slane %v3542, 1
          %v3548 = vadd.f32 %v3439, %v3544
          %v3549 = vadd.f32 %v3517, %v3545
          %v3550 = vmax.f32 %v3548, 0.0
          %v3551 = vmax.f32 %v3549, 0.0
          %v3552 = vadd.f32 %v3530, %v3540
          %v3553 = vadd.f32 %v3531, %v3541
          %v3554 = vadd.f32 %v3552, %v3550
          %v3555 = vadd.f32 %v3553, %v3551
          %v3556 = vpack.c.bf16 %v3554, %v3554
          %v3557 = vpack.c.bf16 %v3555, %v3555
          %v3558 = vld [vmem:[#allocation15] sm:$0xf]
          %v3559 = vld [vmem:[#allocation15 + $0x4] sm:$0xf]
          %v3560 = vld [vmem:[#allocation15 + $0x8] sm:$0xf]
          %v3561 = vld [vmem:[#allocation15 + $0xc] sm:$0xf]
          %v3562 = vld [vmem:[#allocation15 + $0x10] sm:$0xf]
          %v3563 = vld [vmem:[#allocation15 + $0x14] sm:$0xf]
          %v3564 = vld [vmem:[#allocation15 + $0x18] sm:$0xf]
          %v3565 = vld [vmem:[#allocation15 + $0x1c] sm:$0xf]
          %v3566 = vld [vmem:[#allocation15 + $0x20] sm:$0xf]
          %v3567 = vld [vmem:[#allocation15 + $0x24] sm:$0xf]
          %v3568 = vld [vmem:[#allocation15 + $0x28] sm:$0xf]
          %v3569 = vld [vmem:[#allocation15 + $0x2c] sm:$0xf]
          %v3570 = vld [vmem:[#allocation15 + $0x30] sm:$0xf]
          %v3571 = vld [vmem:[#allocation15 + $0x34] sm:$0xf]
          %v3572 = vld [vmem:[#allocation15 + $0x38] sm:$0xf]
          %v3573 = vld [vmem:[#allocation15 + $0x3c] sm:$0xf]
          %v3574 = vld [vmem:[#allocation15 + $0x40] sm:$0xf]
          %v3575 = vld [vmem:[#allocation15 + $0x44] sm:$0xf]
          %v3576 = vld [vmem:[#allocation15 + $0x48] sm:$0xf]
          %v3577 = vld [vmem:[#allocation15 + $0x4c] sm:$0xf]
          %v3578 = vld [vmem:[#allocation15 + $0x50] sm:$0xf]
          %v3579 = vld [vmem:[#allocation15 + $0x54] sm:$0xf]
          %v3580 = vld [vmem:[#allocation15 + $0x58] sm:$0xf]
          %v3581 = vld [vmem:[#allocation15 + $0x5c] sm:$0xf]
          %v3582 = vld [vmem:[#allocation15 + $0x60] sm:$0xf]
          %v3583 = vld [vmem:[#allocation15 + $0x64] sm:$0xf]
          %v3584 = vld [vmem:[#allocation15 + $0x68] sm:$0xf]
          %v3585 = vld [vmem:[#allocation15 + $0x6c] sm:$0xf]
          %v3586 = vld [vmem:[#allocation15 + $0x70] sm:$0xf]
          %v3587 = vld [vmem:[#allocation15 + $0x74] sm:$0xf]
          %v3588 = vld [vmem:[#allocation15 + $0x78] sm:$0xf]
          %v3589 = vld [vmem:[#allocation15 + $0x7c] sm:$0xf]
          %v3590 = vld [vmem:[#allocation16] sm:$0x1]
          %v3592 = vperm.slane %v3590, 0
          %v3626 = vunpack.c.l.b16 %v3558
          %v3627 = vunpack.c.l.b16 %v3559
          %v3628 = vunpack.c.l.b16 %v3560
          %v3629 = vunpack.c.l.b16 %v3561
          %v3630 = vunpack.c.l.b16 %v3562
          %v3631 = vunpack.c.l.b16 %v3563
          %v3632 = vunpack.c.l.b16 %v3564
          %v3633 = vunpack.c.l.b16 %v3565
          %v3634 = vunpack.c.l.b16 %v3566
          %v3635 = vunpack.c.l.b16 %v3567
          %v3636 = vunpack.c.l.b16 %v3568
          %v3637 = vunpack.c.l.b16 %v3569
          %v3638 = vunpack.c.l.b16 %v3570
          %v3639 = vunpack.c.l.b16 %v3571
          %v3640 = vunpack.c.l.b16 %v3572
          %v3641 = vunpack.c.l.b16 %v3573
          %v3642 = vunpack.c.l.b16 %v3574
          %v3643 = vunpack.c.l.b16 %v3575
          %v3644 = vunpack.c.l.b16 %v3576
          %v3645 = vunpack.c.l.b16 %v3577
          %v3646 = vunpack.c.l.b16 %v3578
          %v3647 = vunpack.c.l.b16 %v3579
          %v3648 = vunpack.c.l.b16 %v3580
          %v3649 = vunpack.c.l.b16 %v3581
          %v3650 = vunpack.c.l.b16 %v3582
          %v3651 = vunpack.c.l.b16 %v3583
          %v3652 = vunpack.c.l.b16 %v3584
          %v3653 = vunpack.c.l.b16 %v3585
          %v3654 = vunpack.c.l.b16 %v3586
          %v3655 = vunpack.c.l.b16 %v3587
          %v3656 = vunpack.c.l.b16 %v3588
          %v3657 = vunpack.c.l.b16 %v3589
          %v3658 = vpack.c.b16 %v3627, %v3626
          %v3659 = vpack.c.b16 %v3629, %v3628
          %v3660 = vpack.c.b16 %v3631, %v3630
          %v3661 = vpack.c.b16 %v3633, %v3632
          %v3662 = vpack.c.b16 %v3635, %v3634
          %v3663 = vpack.c.b16 %v3637, %v3636
          %v3664 = vpack.c.b16 %v3639, %v3638
          %v3665 = vpack.c.b16 %v3641, %v3640
          %v3666 = vpack.c.b16 %v3643, %v3642
          %v3667 = vpack.c.b16 %v3645, %v3644
          %v3668 = vpack.c.b16 %v3647, %v3646
          %v3669 = vpack.c.b16 %v3649, %v3648
          %v3670 = vpack.c.b16 %v3651, %v3650
          %v3671 = vpack.c.b16 %v3653, %v3652
          %v3672 = vpack.c.b16 %v3655, %v3654
          %v3673 = vpack.c.b16 %v3657, %v3656
          %3690 = vmatpush.bf16.msra.mxu0 %v3665
          %3691 = vmatpush.bf16.msra.mxu0 %v3664
          %3692 = vmatpush.bf16.msra.mxu0 %v3663
          %3693 = vmatpush.bf16.msra.mxu0 %v3662
          %3694 = vmatpush.bf16.msra.mxu0 %v3661
          %3695 = vmatpush.bf16.msra.mxu0 %v3660
          %3696 = vmatpush.bf16.msra.mxu0 %v3659
          %3697 = vmatpush.bf16.msra.mxu0 %v3658
          %3698 = vmatmul.bf16.gmra.mxu0 %v3556
          %v3699 = vpop.f32.mrf.mxu0
          %v3700 = vadd.f32 %v3592, %v3699
          %v3701 = vpop.f32.mrf.mxu0
          %3702 = vdwg.mxu0
          %3703 = vmatpush.bf16.msra.mxu0 %v3673
          %3704 = vmatpush.bf16.msra.mxu0 %v3672
          %3705 = vmatpush.bf16.msra.mxu0 %v3671
          %3706 = vmatpush.bf16.msra.mxu0 %v3670
          %3707 = vmatpush.bf16.msra.mxu0 %v3669
          %3708 = vmatpush.bf16.msra.mxu0 %v3668
          %3709 = vmatpush.bf16.msra.mxu0 %v3667
          %3710 = vmatpush.bf16.msra.mxu0 %v3666
          %3711 = vmatmul.bf16.gmra.mxu0 %v3557
          %v3712 = vpop.f32.mrf.mxu0
          %v3713 = vadd.f32 %v3700, %v3712
          %v3714 = vpop.f32.mrf.mxu0
          %3715 = vdwg.mxu0
          %3716 = vst [vmem:[#allocation18] sm:$0xff] %v3713
        $region100: #{tpu_custom_call.1} parent=55 // pred_fallthru
          _
        // Predicated region
        $region101: #{tpu_custom_call.1} parent=55 // pred_check
          %p3717 = pneg %p264
        $region102: #{tpu_custom_call.1} parent=55 // pred_check_branch
          %3719 = sbr.rel (%p3717) target = $region104
        $region103: #{tpu_custom_call.1} parent=55 // pred_region
          %3721 = vsyncadd [#allocation5], 0
          %s3722 = smul.addr %s32, 8
          %s3723 = scalar_lea.hbm %s9, %s3722
          %s3725 = sshll.u32 [#allocation18], 4
          %s3726 = int_to_ptr.vmem [resolvable:$true] %s3725
          %s3727 = sshll.u32 %s3723, 4
          %s3728 = int_to_ptr.hbm [resolvable:$true] %s3727
          %3730 = dma.vmem_to_hbm [thread:$0]  %s3726, 128, %s3728, [#allocation5]
        $region104: #{tpu_custom_call.1} parent=55 // pred_fallthru
          _
        // Predicated region
        $region105: #{tpu_custom_call.1} parent=55 // pred_check
          %p3731 = pneg %p264
        $region106: #{tpu_custom_call.1} parent=55 // pred_check_branch
          %3733 = sbr.rel (%p3731) target = $region108
        $region107: #{tpu_custom_call.1} parent=55 // pred_region
          %3735 = dma.done [#allocation5], 128
        $region108: #{tpu_custom_call.1} parent=55 // pred_fallthru
          _
      $region56: #{tpu_custom_call.1} parent=5 // pred_fallthru
        _
      %p3736 = scmp.le.s32.totalorder 2, %s23
      // Predicated region
      $region109: #{tpu_custom_call.1} parent=5 // pred_check
        %p3737 = pneg %p3736
      $region110: #{tpu_custom_call.1} parent=5 // pred_check_branch
        %3739 = sbr.rel (%p3737) target = $region112
      $region111: #{tpu_custom_call.1} parent=5 // pred_region
        %s3740 = ssub.s32 %s23, 2
      $region112: #{tpu_custom_call.1} parent=5 // pred_fallthru
        _
    $region6: #{tpu_custom_call.1} parent=1 // loop_footer
      %s27 = sadd.s32 1, %s23
    $region7: #{tpu_custom_call.1} parent=1 // loop_footer_branch
      %22 = sbr.rel target = $region3
    $region8: #{tpu_custom_call.1} parent=1 // loop_exit
      _
    %3741 = vsyncpa [#allocation4], 1
    %s3742 = scalar_lea.sflag [#allocation4], 1
    %3743 = vsyncpa %s3742, 1
    %3744 = vsyncpa [#allocation7], 1
    %3745 = vsyncpa [#allocation11], 1
    %3746 = vsyncpa [#allocation14], 1
    %3747 = vsyncpa [#allocation17], 1
    %3748 = vsyncpa [#allocation5], 1
    %s3749 = scalar_lea.sflag [#allocation5], 1
    %3750 = vsyncpa %s3749, 1

</llo_original>
